<compile_context>
chip_gen: v7x
topology: tpu7x:2x2x1
jax: 0.10.0
libtpu: 0.0.40
codegen_flags: <defaults>
</compile_context>

<pallas_src>
import numpy as np
import jax
import jax.numpy as jnp
from jax.experimental import pallas as pl
from jax.experimental.pallas import tpu as pltpu


# ----------------------------------------------------------------------------
# Glue: patch extraction (reproduces torch unfold + the scrambling reshape)
# ----------------------------------------------------------------------------
def extract_patches(x_nchw, P):
    B, C, H, W = x_nchw.shape
    Hp, Wp = H // P, W // P
    x = jnp.transpose(x_nchw, (0, 2, 3, 1))                     # NHWC
    # torch: x.unfold(1,P,P).unfold(2,P,P) -> (B, Hp, Wp, C, P, P)
    p = x.reshape(B, Hp, P, Wp, P, C).transpose(0, 1, 3, 5, 2, 4)
    # torch: .reshape(B, -1, P*P, C) reinterprets the contiguous (C, P, P)
    # block row-major as (P*P, C) -- reproduced exactly.
    return p.reshape(B, Hp * Wp, P * P, C)


# ----------------------------------------------------------------------------
# Glue: 1-D bilinear interpolation matrix, PyTorch align_corners=False
# ----------------------------------------------------------------------------
def _bilinear_matrix(n_in, n_out):
    scale = n_in / n_out
    dst = np.arange(n_out)
    src = (dst + 0.5) * scale - 0.5
    src = np.maximum(src, 0.0)                                   # torch clamps < 0
    i0 = np.minimum(np.floor(src).astype(np.int64), n_in - 1)
    i1 = np.minimum(i0 + 1, n_in - 1)
    w1 = (src - i0).astype(np.float32)
    w0 = 1.0 - w1
    U = np.zeros((n_out, n_in), dtype=np.float32)
    U[dst, i0] += w0
    U[dst, i1] += w1
    return U


# ----------------------------------------------------------------------------
# Pallas kernel (per batch element): feature path + separable upsample
# ----------------------------------------------------------------------------
def _make_kernel(Hp, Wp, H, W, D):
    def kernel(pm_ref, w1_ref, b1_ref, g_ref, be_ref, w2_ref, b2_ref,
               pn_ref, wcb_ref, uw_ref, uhc_ref, bc_ref, out_ref):
        # ---- feature path on (N, *) tokens -------------------------------
        pm = pm_ref[0]                                           # (N, PP)
        h = jnp.dot(pm, w1_ref[...], preferred_element_type=jnp.float32) + b1_ref[...]

        # LayerNorm (biased variance, eps=1e-5)
        mu = jnp.mean(h, axis=-1, keepdims=True)
        var = jnp.mean(jnp.square(h - mu), axis=-1, keepdims=True)
        hn = (h - mu) * jax.lax.rsqrt(var + 1e-5) * g_ref[...] + be_ref[...]

        y = jnp.dot(hn, w2_ref[...], preferred_element_type=jnp.float32) + b2_ref[...]

        # softmax gate (denominator reciprocal on the EUP)
        m = jnp.max(y, axis=-1, keepdims=True)
        e = jnp.exp(y - m)
        attn = e * pl.reciprocal(jnp.sum(e, axis=-1, keepdims=True), approx=True)
        lo = y * attn                                            # (N, D)

        # cosine similarity with pre-normalized prompt (F.normalize eps=1e-12)
        ss = jnp.sum(lo * lo, axis=-1, keepdims=True)
        lo_n = lo * jax.lax.rsqrt(jnp.maximum(ss, 1e-24))
        cos = jnp.sum(lo_n * pn_ref[...], axis=-1, keepdims=True)
        lo = lo * jnp.clip(cos, 0.0, 1.0)

        # top-down transform with the 1x1 conv weight folded in (tdt @ Wc):
        # applied on N tokens instead of H*W pixels.
        z = jnp.dot(lo, wcb_ref[...], preferred_element_type=jnp.float32)   # (N, D)

        # ---- separable bilinear upsample + conv bias, NCHW output --------
        uw = uw_ref[...]                                         # (W, Wp)
        # init with the conv bias (added after the upsample)
        out_ref[0] = jnp.broadcast_to(bc_ref[...], (D, H, W))
        for hp in range(Hp):                                     # static unroll
            z_hp = z[hp * Wp:(hp + 1) * Wp, :]                   # (Wp, D) row block
            c = jnp.dot(uw, z_hp, preferred_element_type=jnp.float32)   # (W, D) MXU
            cT = c.T                                             # (D, W)
            uh_col = uhc_ref[hp]                                 # (1, H, 1) = U_h[:, hp]
            # H-interp as rank-1 accumulation: out[d,h,w] += U_h[h,hp]*c[w,d]
            out_ref[0] = out_ref[0] + uh_col * cT[:, None, :]

    return kernel


# ----------------------------------------------------------------------------
# Wrapper
# ----------------------------------------------------------------------------
def local_global_attention(x_nchw, params, patch_size, output_dim):
    B, C, H, W = x_nchw.shape
    P, D = patch_size, output_dim
    Hp, Wp = H // P, W // P
    N, PP = Hp * Wp, P * P

    # channel mean done on the XLA side -> kernel reads (B, N, PP) only
    pm = extract_patches(x_nchw, P).mean(axis=-1)                # (B, N, PP)

    # separable bilinear factors (align_corners=False)
    U_h = _bilinear_matrix(Hp, H)                                # (H, Hp)
    U_w = jnp.asarray(_bilinear_matrix(Wp, W))                   # (W, Wp)
    uh_cols = jnp.asarray(U_h.T.reshape(Hp, 1, H, 1))            # per-hp column, pre-shaped

    # fold conv 1x1 weight into the top-down transform; pre-normalize prompt
    w_comb = params["tdt"] @ params["wc"]                        # (D, D)
    p = params["prompt"]
    p_n = p / jnp.maximum(jnp.linalg.norm(p, axis=-1, keepdims=True), 1e-12)
    bc3 = params["bc"].reshape(D, 1, 1)

    def full(shape):
        return pl.BlockSpec(shape, lambda b, _n=len(shape): (0,) * _n)

    kernel = _make_kernel(Hp, Wp, H, W, D)
    out = pl.pallas_call(
        kernel,
        out_shape=jax.ShapeDtypeStruct((B, D, H, W), jnp.float32),
        grid=(B,),
        in_specs=[
            pl.BlockSpec((1, N, PP), lambda b: (b, 0, 0)),
            full(params["w1"].shape),
            full(params["b1"].shape),
            full(params["gamma"].shape),
            full(params["beta"].shape),
            full(params["w2"].shape),
            full(params["b2"].shape),
            full(p_n.shape),
            full(w_comb.shape),
            full(U_w.shape),
            full(uh_cols.shape),
            full(bc3.shape),
        ],
        out_specs=pl.BlockSpec((1, D, H, W), lambda b: (b, 0, 0, 0)),
        compiler_params=pltpu.CompilerParams(
            dimension_semantics=("parallel",),          # megacore sharding on v7x
            vmem_limit_bytes=64 * 1024 * 1024),
    )(pm, params["w1"], params["b1"], params["gamma"], params["beta"],
      params["w2"], params["b2"], p_n, w_comb, U_w, uh_cols, bc3)

    return out                                                   # already NCHW


# ----------------------------------------------------------------------------
# Deterministic parameter init (shapes from the module's __init__)
# ----------------------------------------------------------------------------
def init_params(key, output_dim, patch_size):
    D, D2, PP = output_dim, output_dim // 2, patch_size * patch_size
    ks = jax.random.split(key, 8)

    def u(k, shape, fan_in):
        lim = 1.0 / np.sqrt(fan_in)
        return jax.random.uniform(k, shape, jnp.float32, -lim, lim)

    return dict(
        w1=u(ks[0], (PP, D2), PP),             # nn.Linear(PP, D/2) weight (transposed)
        b1=u(ks[1], (1, D2), PP),
        gamma=jnp.ones((1, D2), jnp.float32),  # LayerNorm defaults
        beta=jnp.zeros((1, D2), jnp.float32),
        w2=u(ks[2], (D2, D), D2),              # nn.Linear(D/2, D) weight (transposed)
        b2=u(ks[3], (1, D), D2),
        prompt=jax.random.normal(ks[4], (1, D), jnp.float32),
        tdt=jnp.eye(D, dtype=jnp.float32),     # top_down_transform init = eye
        wc=u(ks[5], (D, D), D),                # Conv2d 1x1 weight, stored (Cin, Cout)
        bc=u(ks[6], (1, D), D),
    )


# ----------------------------------------------------------------------------
# Pure-JAX reference (PyTorch op order: tdt -> upsample -> conv), no Pallas
# ----------------------------------------------------------------------------
def reference(x_nchw, params, patch_size, output_dim):
    B, C, H, W = x_nchw.shape
    P, D = patch_size, output_dim
    Hp, Wp = H // P, W // P
    patches = extract_patches(x_nchw, P)
    pm = patches.mean(axis=-1)
    h = pm @ params["w1"] + params["b1"]
    mu = h.mean(-1, keepdims=True)
    var = ((h - mu) ** 2).mean(-1, keepdims=True)
    hn = (h - mu) / jnp.sqrt(var + 1e-5) * params["gamma"] + params["beta"]
    y = hn @ params["w2"] + params["b2"]
    attn = jax.nn.softmax(y, axis=-1)
    lo = y * attn
    lo_n = lo / jnp.maximum(jnp.linalg.norm(lo, axis=-1, keepdims=True), 1e-12)
    p = params["prompt"][0]
    p_n = p / jnp.maximum(jnp.linalg.norm(p), 1e-12)
    mask = jnp.clip((lo_n * p_n).sum(-1, keepdims=True), 0.0, 1.0)
    lo = (lo * mask) @ params["tdt"]
    U2 = jnp.asarray(np.kron(_bilinear_matrix(Hp, H), _bilinear_matrix(Wp, W)))
    up = jnp.einsum("si,bid->bsd", U2, lo)
    out = up @ params["wc"] + params["bc"]
    return out.reshape(B, H, W, D).transpose(0, 3, 1, 2)


if __name__ == "__main__":
    key = jax.random.PRNGKey(0)
    kx, kp = jax.random.split(key)

    B, C, H, W = 2, 4, 16, 16
    patch_size, output_dim = 4, 32

    x = jax.random.normal(kx, (B, C, H, W), jnp.float32)
    params = init_params(kp, output_dim, patch_size)

    out = local_global_attention(x, params, patch_size, output_dim)
    out = jax.block_until_ready(out)

    assert out.shape == (B, output_dim, H, W)
    ref = reference(x, params, patch_size, output_dim)
    np.testing.assert_allclose(np.asarray(out), np.asarray(ref), rtol=2e-2, atol=2e-2)

    print("KERNEL_OK")
</pallas_src>

<mosaic_0001>
module attributes {stable_mosaic.version = 11 : i64} {
  func.func @kernel(%arg0: i32, %arg1: memref<1x16x16xf32, #tpu.memory_space<vmem>>, %arg2: memref<16x16xf32, #tpu.memory_space<vmem>>, %arg3: memref<1x16xf32, #tpu.memory_space<vmem>>, %arg4: memref<1x16xf32, #tpu.memory_space<vmem>>, %arg5: memref<1x16xf32, #tpu.memory_space<vmem>>, %arg6: memref<16x32xf32, #tpu.memory_space<vmem>>, %arg7: memref<1x32xf32, #tpu.memory_space<vmem>>, %arg8: memref<1x32xf32, #tpu.memory_space<vmem>>, %arg9: memref<32x32xf32, #tpu.memory_space<vmem>>, %arg10: memref<16x4xf32, #tpu.memory_space<vmem>>, %arg11: memref<4x1x16x1xf32, #tpu.memory_space<vmem>>, %arg12: memref<32x1x1xf32, #tpu.memory_space<vmem>>, %arg13: memref<1x32x16x16xf32, #tpu.memory_space<vmem>>) attributes {dimension_semantics = [#tpu.dimension_semantics<parallel>], iteration_bounds = array<i64: 2>, scalar_prefetch = 0 : i64, scratch_operands = 0 : i64, tpu.core_type = #tpu.core_type<tc>, window_params = [{transform_indices = @transform_0, window_bounds = array<i64: 1, 16, 16>}, {pipeline_mode = #tpu.pipeline_mode<synchronous>, transform_indices = @transform_1, window_bounds = array<i64: 16, 16>}, {pipeline_mode = #tpu.pipeline_mode<synchronous>, transform_indices = @transform_2, window_bounds = array<i64: 1, 16>}, {pipeline_mode = #tpu.pipeline_mode<synchronous>, transform_indices = @transform_3, window_bounds = array<i64: 1, 16>}, {pipeline_mode = #tpu.pipeline_mode<synchronous>, transform_indices = @transform_4, window_bounds = array<i64: 1, 16>}, {pipeline_mode = #tpu.pipeline_mode<synchronous>, transform_indices = @transform_5, window_bounds = array<i64: 16, 32>}, {pipeline_mode = #tpu.pipeline_mode<synchronous>, transform_indices = @transform_6, window_bounds = array<i64: 1, 32>}, {pipeline_mode = #tpu.pipeline_mode<synchronous>, transform_indices = @transform_7, window_bounds = array<i64: 1, 32>}, {pipeline_mode = #tpu.pipeline_mode<synchronous>, transform_indices = @transform_8, window_bounds = array<i64: 32, 32>}, {pipeline_mode = #tpu.pipeline_mode<synchronous>, transform_indices = @transform_9, window_bounds = array<i64: 16, 4>}, {pipeline_mode = #tpu.pipeline_mode<synchronous>, transform_indices = @transform_10, window_bounds = array<i64: 4, 1, 16, 1>}, {pipeline_mode = #tpu.pipeline_mode<synchronous>, transform_indices = @transform_11, window_bounds = array<i64: 32, 1, 1>}, {transform_indices = @transform_12, window_bounds = array<i64: 1, 32, 16, 16>}]} {
    %c0 = arith.constant 0 : index
    %c0_0 = arith.constant 0 : index
    %c0_1 = arith.constant 0 : index
    %0 = vector.load %arg1[%c0, %c0_0, %c0_1] : memref<1x16x16xf32, #tpu.memory_space<vmem>>, vector<1x16x16xf32>
    %1 = vector.shape_cast %0 : vector<1x16x16xf32> to vector<16x16xf32>
    %c0_2 = arith.constant 0 : index
    %c0_3 = arith.constant 0 : index
    %2 = vector.load %arg2[%c0_2, %c0_3] : memref<16x16xf32, #tpu.memory_space<vmem>>, vector<16x16xf32>
    %cst = arith.constant dense<0.000000e+00> : vector<16x16xf32>
    %3 = tpu.matmul %1, %2, %cst {dimension_numbers = #tpu.dot_dimension_numbers<[1], [0], [0], [1], [0, 0, 1, 1], [], []>} : vector<16x16xf32>, vector<16x16xf32>, vector<16x16xf32> -> vector<16x16xf32>
    %c0_4 = arith.constant 0 : index
    %c0_5 = arith.constant 0 : index
    %4 = vector.load %arg3[%c0_4, %c0_5] : memref<1x16xf32, #tpu.memory_space<vmem>>, vector<1x16xf32>
    %5 = vector.broadcast %4 : vector<1x16xf32> to vector<16x16xf32>
    %6 = arith.addf %3, %5 : vector<16x16xf32>
    %cst_6 = arith.constant dense<0.000000e+00> : vector<16xf32>
    %7 = vector.multi_reduction <add>, %6, %cst_6 [1] : vector<16x16xf32> to vector<16xf32>
    %8 = vector.shape_cast %7 : vector<16xf32> to vector<16x1xf32>
    %cst_7 = arith.constant 1.600000e+01 : f32
    %9 = vector.broadcast %cst_7 : f32 to vector<16x1xf32>
    %10 = arith.divf %8, %9 : vector<16x1xf32>
    %11 = vector.broadcast %10 : vector<16x1xf32> to vector<16x16xf32>
    %12 = arith.subf %6, %11 : vector<16x16xf32>
    %13 = arith.mulf %12, %12 : vector<16x16xf32>
    %cst_8 = arith.constant dense<0.000000e+00> : vector<16xf32>
    %14 = vector.multi_reduction <add>, %13, %cst_8 [1] : vector<16x16xf32> to vector<16xf32>
    %15 = vector.shape_cast %14 : vector<16xf32> to vector<16x1xf32>
    %cst_9 = arith.constant 1.600000e+01 : f32
    %16 = vector.broadcast %cst_9 : f32 to vector<16x1xf32>
    %17 = arith.divf %15, %16 : vector<16x1xf32>
    %18 = vector.broadcast %10 : vector<16x1xf32> to vector<16x16xf32>
    %19 = arith.subf %6, %18 : vector<16x16xf32>
    %cst_10 = arith.constant 9.99999974E-6 : f32
    %20 = vector.broadcast %cst_10 : f32 to vector<16x1xf32>
    %21 = arith.addf %17, %20 : vector<16x1xf32>
    %22 = math.rsqrt %21 : vector<16x1xf32>
    %23 = vector.broadcast %22 : vector<16x1xf32> to vector<16x16xf32>
    %24 = arith.mulf %19, %23 : vector<16x16xf32>
    %c0_11 = arith.constant 0 : index
    %c0_12 = arith.constant 0 : index
    %25 = vector.load %arg4[%c0_11, %c0_12] : memref<1x16xf32, #tpu.memory_space<vmem>>, vector<1x16xf32>
    %26 = vector.broadcast %25 : vector<1x16xf32> to vector<16x16xf32>
    %27 = arith.mulf %24, %26 : vector<16x16xf32>
    %c0_13 = arith.constant 0 : index
    %c0_14 = arith.constant 0 : index
    %28 = vector.load %arg5[%c0_13, %c0_14] : memref<1x16xf32, #tpu.memory_space<vmem>>, vector<1x16xf32>
    %29 = vector.broadcast %28 : vector<1x16xf32> to vector<16x16xf32>
    %30 = arith.addf %27, %29 : vector<16x16xf32>
    %c0_15 = arith.constant 0 : index
    %c0_16 = arith.constant 0 : index
    %31 = vector.load %arg6[%c0_15, %c0_16] : memref<16x32xf32, #tpu.memory_space<vmem>>, vector<16x32xf32>
    %cst_17 = arith.constant dense<0.000000e+00> : vector<16x32xf32>
    %32 = tpu.matmul %30, %31, %cst_17 {dimension_numbers = #tpu.dot_dimension_numbers<[1], [0], [0], [1], [0, 0, 1, 1], [], []>} : vector<16x16xf32>, vector<16x32xf32>, vector<16x32xf32> -> vector<16x32xf32>
    %c0_18 = arith.constant 0 : index
    %c0_19 = arith.constant 0 : index
    %33 = vector.load %arg7[%c0_18, %c0_19] : memref<1x32xf32, #tpu.memory_space<vmem>>, vector<1x32xf32>
    %34 = vector.broadcast %33 : vector<1x32xf32> to vector<16x32xf32>
    %35 = arith.addf %32, %34 : vector<16x32xf32>
    %cst_20 = arith.constant dense<0xFF800000> : vector<16xf32>
    %36 = vector.multi_reduction <maximumf>, %35, %cst_20 [1] : vector<16x32xf32> to vector<16xf32>
    %37 = vector.shape_cast %36 : vector<16xf32> to vector<16x1xf32>
    %38 = vector.broadcast %37 : vector<16x1xf32> to vector<16x32xf32>
    %39 = arith.subf %35, %38 : vector<16x32xf32>
    %40 = math.exp %39 : vector<16x32xf32>
    %cst_21 = arith.constant dense<0.000000e+00> : vector<16xf32>
    %41 = vector.multi_reduction <add>, %40, %cst_21 [1] : vector<16x32xf32> to vector<16xf32>
    %42 = vector.shape_cast %41 : vector<16xf32> to vector<16x1xf32>
    %43 = tpu.reciprocal %42 {approx = true} : vector<16x1xf32> -> vector<16x1xf32>
    %44 = vector.broadcast %43 : vector<16x1xf32> to vector<16x32xf32>
    %45 = arith.mulf %40, %44 : vector<16x32xf32>
    %46 = arith.mulf %35, %45 : vector<16x32xf32>
    %47 = arith.mulf %46, %46 : vector<16x32xf32>
    %cst_22 = arith.constant dense<0.000000e+00> : vector<16xf32>
    %48 = vector.multi_reduction <add>, %47, %cst_22 [1] : vector<16x32xf32> to vector<16xf32>
    %49 = vector.shape_cast %48 : vector<16xf32> to vector<16x1xf32>
    %cst_23 = arith.constant 1.000000e-24 : f32
    %50 = vector.broadcast %cst_23 : f32 to vector<16x1xf32>
    %51 = arith.maximumf %49, %50 : vector<16x1xf32>
    %52 = math.rsqrt %51 : vector<16x1xf32>
    %53 = vector.broadcast %52 : vector<16x1xf32> to vector<16x32xf32>
    %54 = arith.mulf %46, %53 : vector<16x32xf32>
    %c0_24 = arith.constant 0 : index
    %c0_25 = arith.constant 0 : index
    %55 = vector.load %arg8[%c0_24, %c0_25] : memref<1x32xf32, #tpu.memory_space<vmem>>, vector<1x32xf32>
    %56 = vector.broadcast %55 : vector<1x32xf32> to vector<16x32xf32>
    %57 = arith.mulf %54, %56 : vector<16x32xf32>
    %cst_26 = arith.constant dense<0.000000e+00> : vector<16xf32>
    %58 = vector.multi_reduction <add>, %57, %cst_26 [1] : vector<16x32xf32> to vector<16xf32>
    %59 = vector.shape_cast %58 : vector<16xf32> to vector<16x1xf32>
    %cst_27 = arith.constant 0.000000e+00 : f32
    %cst_28 = arith.constant 1.000000e+00 : f32
    %60 = vector.broadcast %cst_27 : f32 to vector<16x1xf32>
    %61 = arith.maximumf %60, %59 : vector<16x1xf32>
    %62 = vector.broadcast %cst_28 : f32 to vector<16x1xf32>
    %63 = arith.minimumf %62, %61 : vector<16x1xf32>
    %64 = vector.broadcast %63 : vector<16x1xf32> to vector<16x32xf32>
    %65 = arith.mulf %46, %64 : vector<16x32xf32>
    %c0_29 = arith.constant 0 : index
    %c0_30 = arith.constant 0 : index
    %66 = vector.load %arg9[%c0_29, %c0_30] : memref<32x32xf32, #tpu.memory_space<vmem>>, vector<32x32xf32>
    %cst_31 = arith.constant dense<0.000000e+00> : vector<16x32xf32>
    %67 = tpu.matmul %65, %66, %cst_31 {dimension_numbers = #tpu.dot_dimension_numbers<[1], [0], [0], [1], [0, 0, 1, 1], [], []>} : vector<16x32xf32>, vector<32x32xf32>, vector<16x32xf32> -> vector<16x32xf32>
    %c0_32 = arith.constant 0 : index
    %c0_33 = arith.constant 0 : index
    %68 = vector.load %arg10[%c0_32, %c0_33] : memref<16x4xf32, #tpu.memory_space<vmem>>, vector<16x4xf32>
    %c0_34 = arith.constant 0 : index
    %c0_35 = arith.constant 0 : index
    %c0_36 = arith.constant 0 : index
    %69 = vector.load %arg12[%c0_34, %c0_35, %c0_36] : memref<32x1x1xf32, #tpu.memory_space<vmem>>, vector<32x1x1xf32>
    %70 = vector.shape_cast %69 : vector<32x1x1xf32> to vector<32x1x1xf32>
    %71 = vector.broadcast %70 : vector<32x1x1xf32> to vector<32x16x16xf32>
    %c0_37 = arith.constant 0 : index
    %c0_38 = arith.constant 0 : index
    %c0_39 = arith.constant 0 : index
    %c0_40 = arith.constant 0 : index
    %72 = vector.load %arg13[%c0_37, %c0_38, %c0_39, %c0_40] : memref<1x32x16x16xf32, #tpu.memory_space<vmem>>, vector<1x32x16x16xf32>
    %73 = vector.shape_cast %72 : vector<1x32x16x16xf32> to vector<32x16x16xf32>
    %74 = vector.shape_cast %71 : vector<32x16x16xf32> to vector<1x32x16x16xf32>
    tpu.vector_store %arg13[%c0_37, %c0_38, %c0_39, %c0_40], %74 {strides = array<i32>} : memref<1x32x16x16xf32, #tpu.memory_space<vmem>>, vector<1x32x16x16xf32>,
    %75 = vector.extract_strided_slice %67 {offsets = [0, 0], sizes = [4, 32], strides = [1, 1]} : vector<16x32xf32> to vector<4x32xf32>
    %cst_41 = arith.constant dense<0.000000e+00> : vector<16x32xf32>
    %76 = tpu.matmul %68, %75, %cst_41 {dimension_numbers = #tpu.dot_dimension_numbers<[1], [0], [0], [1], [0, 0, 1, 1], [], []>} : vector<16x4xf32>, vector<4x32xf32>, vector<16x32xf32> -> vector<16x32xf32>
    %77 = tpu.transpose %76, [1, 0] : vector<16x32xf32> -> vector<32x16xf32>
    %c0_42 = arith.constant 0 : index
    %c0_43 = arith.constant 0 : index
    %c0_44 = arith.constant 0 : index
    %c0_45 = arith.constant 0 : index
    %78 = vector.load %arg11[%c0_42, %c0_43, %c0_44, %c0_45] : memref<4x1x16x1xf32, #tpu.memory_space<vmem>>, vector<1x1x16x1xf32>
    %79 = vector.shape_cast %78 : vector<1x1x16x1xf32> to vector<1x16x1xf32>
    %c0_46 = arith.constant 0 : index
    %c0_47 = arith.constant 0 : index
    %c0_48 = arith.constant 0 : index
    %c0_49 = arith.constant 0 : index
    %80 = vector.load %arg13[%c0_46, %c0_47, %c0_48, %c0_49] : memref<1x32x16x16xf32, #tpu.memory_space<vmem>>, vector<1x32x16x16xf32>
    %81 = vector.shape_cast %80 : vector<1x32x16x16xf32> to vector<32x16x16xf32>
    %82 = vector.shape_cast %77 : vector<32x16xf32> to vector<32x1x16xf32>
    %83 = vector.broadcast %79 : vector<1x16x1xf32> to vector<32x16x16xf32>
    %84 = vector.broadcast %82 : vector<32x1x16xf32> to vector<32x16x16xf32>
    %85 = arith.mulf %83, %84 : vector<32x16x16xf32>
    %86 = arith.addf %81, %85 : vector<32x16x16xf32>
    %c0_50 = arith.constant 0 : index
    %c0_51 = arith.constant 0 : index
    %c0_52 = arith.constant 0 : index
    %c0_53 = arith.constant 0 : index
    %87 = vector.load %arg13[%c0_50, %c0_51, %c0_52, %c0_53] : memref<1x32x16x16xf32, #tpu.memory_space<vmem>>, vector<1x32x16x16xf32>
    %88 = vector.shape_cast %87 : vector<1x32x16x16xf32> to vector<32x16x16xf32>
    %89 = vector.shape_cast %86 : vector<32x16x16xf32> to vector<1x32x16x16xf32>
    tpu.vector_store %arg13[%c0_50, %c0_51, %c0_52, %c0_53], %89 {strides = array<i32>} : memref<1x32x16x16xf32, #tpu.memory_space<vmem>>, vector<1x32x16x16xf32>,
    %90 = vector.extract_strided_slice %67 {offsets = [4, 0], sizes = [4, 32], strides = [1, 1]} : vector<16x32xf32> to vector<4x32xf32>
    %cst_54 = arith.constant dense<0.000000e+00> : vector<16x32xf32>
    %91 = tpu.matmul %68, %90, %cst_54 {dimension_numbers = #tpu.dot_dimension_numbers<[1], [0], [0], [1], [0, 0, 1, 1], [], []>} : vector<16x4xf32>, vector<4x32xf32>, vector<16x32xf32> -> vector<16x32xf32>
    %92 = tpu.transpose %91, [1, 0] : vector<16x32xf32> -> vector<32x16xf32>
    %c1 = arith.constant 1 : index
    %c0_55 = arith.constant 0 : index
    %c0_56 = arith.constant 0 : index
    %c0_57 = arith.constant 0 : index
    %93 = vector.load %arg11[%c1, %c0_55, %c0_56, %c0_57] : memref<4x1x16x1xf32, #tpu.memory_space<vmem>>, vector<1x1x16x1xf32>
    %94 = vector.shape_cast %93 : vector<1x1x16x1xf32> to vector<1x16x1xf32>
    %c0_58 = arith.constant 0 : index
    %c0_59 = arith.constant 0 : index
    %c0_60 = arith.constant 0 : index
    %c0_61 = arith.constant 0 : index
    %95 = vector.load %arg13[%c0_58, %c0_59, %c0_60, %c0_61] : memref<1x32x16x16xf32, #tpu.memory_space<vmem>>, vector<1x32x16x16xf32>
    %96 = vector.shape_cast %95 : vector<1x32x16x16xf32> to vector<32x16x16xf32>
    %97 = vector.shape_cast %92 : vector<32x16xf32> to vector<32x1x16xf32>
    %98 = vector.broadcast %94 : vector<1x16x1xf32> to vector<32x16x16xf32>
    %99 = vector.broadcast %97 : vector<32x1x16xf32> to vector<32x16x16xf32>
    %100 = arith.mulf %98, %99 : vector<32x16x16xf32>
    %101 = arith.addf %96, %100 : vector<32x16x16xf32>
    %c0_62 = arith.constant 0 : index
    %c0_63 = arith.constant 0 : index
    %c0_64 = arith.constant 0 : index
    %c0_65 = arith.constant 0 : index
    %102 = vector.load %arg13[%c0_62, %c0_63, %c0_64, %c0_65] : memref<1x32x16x16xf32, #tpu.memory_space<vmem>>, vector<1x32x16x16xf32>
    %103 = vector.shape_cast %102 : vector<1x32x16x16xf32> to vector<32x16x16xf32>
    %104 = vector.shape_cast %101 : vector<32x16x16xf32> to vector<1x32x16x16xf32>
    tpu.vector_store %arg13[%c0_62, %c0_63, %c0_64, %c0_65], %104 {strides = array<i32>} : memref<1x32x16x16xf32, #tpu.memory_space<vmem>>, vector<1x32x16x16xf32>,
    %105 = vector.extract_strided_slice %67 {offsets = [8, 0], sizes = [4, 32], strides = [1, 1]} : vector<16x32xf32> to vector<4x32xf32>
    %cst_66 = arith.constant dense<0.000000e+00> : vector<16x32xf32>
    %106 = tpu.matmul %68, %105, %cst_66 {dimension_numbers = #tpu.dot_dimension_numbers<[1], [0], [0], [1], [0, 0, 1, 1], [], []>} : vector<16x4xf32>, vector<4x32xf32>, vector<16x32xf32> -> vector<16x32xf32>
    %107 = tpu.transpose %106, [1, 0] : vector<16x32xf32> -> vector<32x16xf32>
    %c2 = arith.constant 2 : index
    %c0_67 = arith.constant 0 : index
    %c0_68 = arith.constant 0 : index
    %c0_69 = arith.constant 0 : index
    %108 = vector.load %arg11[%c2, %c0_67, %c0_68, %c0_69] : memref<4x1x16x1xf32, #tpu.memory_space<vmem>>, vector<1x1x16x1xf32>
    %109 = vector.shape_cast %108 : vector<1x1x16x1xf32> to vector<1x16x1xf32>
    %c0_70 = arith.constant 0 : index
    %c0_71 = arith.constant 0 : index
    %c0_72 = arith.constant 0 : index
    %c0_73 = arith.constant 0 : index
    %110 = vector.load %arg13[%c0_70, %c0_71, %c0_72, %c0_73] : memref<1x32x16x16xf32, #tpu.memory_space<vmem>>, vector<1x32x16x16xf32>
    %111 = vector.shape_cast %110 : vector<1x32x16x16xf32> to vector<32x16x16xf32>
    %112 = vector.shape_cast %107 : vector<32x16xf32> to vector<32x1x16xf32>
    %113 = vector.broadcast %109 : vector<1x16x1xf32> to vector<32x16x16xf32>
    %114 = vector.broadcast %112 : vector<32x1x16xf32> to vector<32x16x16xf32>
    %115 = arith.mulf %113, %114 : vector<32x16x16xf32>
    %116 = arith.addf %111, %115 : vector<32x16x16xf32>
    %c0_74 = arith.constant 0 : index
    %c0_75 = arith.constant 0 : index
    %c0_76 = arith.constant 0 : index
    %c0_77 = arith.constant 0 : index
    %117 = vector.load %arg13[%c0_74, %c0_75, %c0_76, %c0_77] : memref<1x32x16x16xf32, #tpu.memory_space<vmem>>, vector<1x32x16x16xf32>
    %118 = vector.shape_cast %117 : vector<1x32x16x16xf32> to vector<32x16x16xf32>
    %119 = vector.shape_cast %116 : vector<32x16x16xf32> to vector<1x32x16x16xf32>
    tpu.vector_store %arg13[%c0_74, %c0_75, %c0_76, %c0_77], %119 {strides = array<i32>} : memref<1x32x16x16xf32, #tpu.memory_space<vmem>>, vector<1x32x16x16xf32>,
    %120 = vector.extract_strided_slice %67 {offsets = [12, 0], sizes = [4, 32], strides = [1, 1]} : vector<16x32xf32> to vector<4x32xf32>
    %cst_78 = arith.constant dense<0.000000e+00> : vector<16x32xf32>
    %121 = tpu.matmul %68, %120, %cst_78 {dimension_numbers = #tpu.dot_dimension_numbers<[1], [0], [0], [1], [0, 0, 1, 1], [], []>} : vector<16x4xf32>, vector<4x32xf32>, vector<16x32xf32> -> vector<16x32xf32>
    %122 = tpu.transpose %121, [1, 0] : vector<16x32xf32> -> vector<32x16xf32>
    %c3 = arith.constant 3 : index
    %c0_79 = arith.constant 0 : index
    %c0_80 = arith.constant 0 : index
    %c0_81 = arith.constant 0 : index
    %123 = vector.load %arg11[%c3, %c0_79, %c0_80, %c0_81] : memref<4x1x16x1xf32, #tpu.memory_space<vmem>>, vector<1x1x16x1xf32>
    %124 = vector.shape_cast %123 : vector<1x1x16x1xf32> to vector<1x16x1xf32>
    %c0_82 = arith.constant 0 : index
    %c0_83 = arith.constant 0 : index
    %c0_84 = arith.constant 0 : index
    %c0_85 = arith.constant 0 : index
    %125 = vector.load %arg13[%c0_82, %c0_83, %c0_84, %c0_85] : memref<1x32x16x16xf32, #tpu.memory_space<vmem>>, vector<1x32x16x16xf32>
    %126 = vector.shape_cast %125 : vector<1x32x16x16xf32> to vector<32x16x16xf32>
    %127 = vector.shape_cast %122 : vector<32x16xf32> to vector<32x1x16xf32>
    %128 = vector.broadcast %124 : vector<1x16x1xf32> to vector<32x16x16xf32>
    %129 = vector.broadcast %127 : vector<32x1x16xf32> to vector<32x16x16xf32>
    %130 = arith.mulf %128, %129 : vector<32x16x16xf32>
    %131 = arith.addf %126, %130 : vector<32x16x16xf32>
    %c0_86 = arith.constant 0 : index
    %c0_87 = arith.constant 0 : index
    %c0_88 = arith.constant 0 : index
    %c0_89 = arith.constant 0 : index
    %132 = vector.load %arg13[%c0_86, %c0_87, %c0_88, %c0_89] : memref<1x32x16x16xf32, #tpu.memory_space<vmem>>, vector<1x32x16x16xf32>
    %133 = vector.shape_cast %132 : vector<1x32x16x16xf32> to vector<32x16x16xf32>
    %134 = vector.shape_cast %131 : vector<32x16x16xf32> to vector<1x32x16x16xf32>
    tpu.vector_store %arg13[%c0_86, %c0_87, %c0_88, %c0_89], %134 {strides = array<i32>} : memref<1x32x16x16xf32, #tpu.memory_space<vmem>>, vector<1x32x16x16xf32>,
    return
  }
  func.func @transform_0(%arg0: i32) -> (i32, i32, i32) {
    %c0_i32 = arith.constant 0 : i32
    %c0_i32_0 = arith.constant 0 : i32
    %c0_i32_1 = arith.constant 0 : i32
    return %arg0, %c0_i32, %c0_i32_0 : i32, i32, i32
  }
  func.func @transform_1(%arg0: i32) -> (i32, i32) {
    %c0_i32 = arith.constant 0 : i32
    %c0_i32_0 = arith.constant 0 : i32
    %c0_i32_1 = arith.constant 0 : i32
    return %c0_i32, %c0_i32_0 : i32, i32
  }
  func.func @transform_2(%arg0: i32) -> (i32, i32) {
    %c0_i32 = arith.constant 0 : i32
    %c0_i32_0 = arith.constant 0 : i32
    %c0_i32_1 = arith.constant 0 : i32
    return %c0_i32, %c0_i32_0 : i32, i32
  }
  func.func @transform_3(%arg0: i32) -> (i32, i32) {
    %c0_i32 = arith.constant 0 : i32
    %c0_i32_0 = arith.constant 0 : i32
    %c0_i32_1 = arith.constant 0 : i32
    return %c0_i32, %c0_i32_0 : i32, i32
  }
  func.func @transform_4(%arg0: i32) -> (i32, i32) {
    %c0_i32 = arith.constant 0 : i32
    %c0_i32_0 = arith.constant 0 : i32
    %c0_i32_1 = arith.constant 0 : i32
    return %c0_i32, %c0_i32_0 : i32, i32
  }
  func.func @transform_5(%arg0: i32) -> (i32, i32) {
    %c0_i32 = arith.constant 0 : i32
    %c0_i32_0 = arith.constant 0 : i32
    %c0_i32_1 = arith.constant 0 : i32
    return %c0_i32, %c0_i32_0 : i32, i32
  }
  func.func @transform_6(%arg0: i32) -> (i32, i32) {
    %c0_i32 = arith.constant 0 : i32
    %c0_i32_0 = arith.constant 0 : i32
    %c0_i32_1 = arith.constant 0 : i32
    return %c0_i32, %c0_i32_0 : i32, i32
  }
  func.func @transform_7(%arg0: i32) -> (i32, i32) {
    %c0_i32 = arith.constant 0 : i32
    %c0_i32_0 = arith.constant 0 : i32
    %c0_i32_1 = arith.constant 0 : i32
    return %c0_i32, %c0_i32_0 : i32, i32
  }
  func.func @transform_8(%arg0: i32) -> (i32, i32) {
    %c0_i32 = arith.constant 0 : i32
    %c0_i32_0 = arith.constant 0 : i32
    %c0_i32_1 = arith.constant 0 : i32
    return %c0_i32, %c0_i32_0 : i32, i32
  }
  func.func @transform_9(%arg0: i32) -> (i32, i32) {
    %c0_i32 = arith.constant 0 : i32
    %c0_i32_0 = arith.constant 0 : i32
    %c0_i32_1 = arith.constant 0 : i32
    return %c0_i32, %c0_i32_0 : i32, i32
  }
  func.func @transform_10(%arg0: i32) -> (i32, i32, i32, i32) {
    %c0_i32 = arith.constant 0 : i32
    %c0_i32_0 = arith.constant 0 : i32
    %c0_i32_1 = arith.constant 0 : i32
    %c0_i32_2 = arith.constant 0 : i32
    %c0_i32_3 = arith.constant 0 : i32
    return %c0_i32, %c0_i32_0, %c0_i32_1, %c0_i32_2 : i32, i32, i32, i32
  }
  func.func @transform_11(%arg0: i32) -> (i32, i32, i32) {
    %c0_i32 = arith.constant 0 : i32
    %c0_i32_0 = arith.constant 0 : i32
    %c0_i32_1 = arith.constant 0 : i32
    %c0_i32_2 = arith.constant 0 : i32
    return %c0_i32, %c0_i32_0, %c0_i32_1 : i32, i32, i32
  }
  func.func @transform_12(%arg0: i32) -> (i32, i32, i32, i32) {
    %c0_i32 = arith.constant 0 : i32
    %c0_i32_0 = arith.constant 0 : i32
    %c0_i32_1 = arith.constant 0 : i32
    %c0_i32_2 = arith.constant 0 : i32
    return %arg0, %c0_i32, %c0_i32_0, %c0_i32_1 : i32, i32, i32, i32
  }
}

</mosaic_0001>

<llo_original>
// kernel: tpu_custom_call.1
$region0: #{tpu_custom_call.1}
  #allocation0 [shape = 'u32[]', space=smem, size = 0x4, offset = 0x4, fixed_abs, tag = 'smem constant byte address 0x4 - core index']
  #allocation1 [shape = 'u32[144,128]{1,0:T(1,128)}', space=vmem, size = 0x12000, scoped, tag = 'internal scratch']
  %s0 = inlined_call_operand.hbm [shape: f32[2,16,16], index: 0, kind: input, shape index: {}]
  %s1 = inlined_call_operand.hbm [shape: f32[16,16], index: 1, kind: input, shape index: {}]
  %s2 = inlined_call_operand.hbm [shape: f32[1,16], index: 2, kind: input, shape index: {}]
  %s3 = inlined_call_operand.hbm [shape: f32[1,16], index: 3, kind: input, shape index: {}]
  %s4 = inlined_call_operand.hbm [shape: f32[1,16], index: 4, kind: input, shape index: {}]
  %s5 = inlined_call_operand.hbm [shape: f32[16,32], index: 5, kind: input, shape index: {}]
  %s6 = inlined_call_operand.hbm [shape: f32[1,32], index: 6, kind: input, shape index: {}]
  %s7 = inlined_call_operand.hbm [shape: f32[1,32], index: 7, kind: input, shape index: {}]
  %s8 = inlined_call_operand.hbm [shape: f32[32,32], index: 8, kind: input, shape index: {}]
  %s9 = inlined_call_operand.hbm [shape: f32[16,4], index: 9, kind: input, shape index: {}]
  %s10 = inlined_call_operand.hbm [shape: f32[4,1,16,1], index: 10, kind: input, shape index: {}]
  %s11 = inlined_call_operand.hbm [shape: f32[32,1,1], index: 11, kind: input, shape index: {}]
  %s12 = inlined_call_operand.hbm [shape: f32[2,32,16,16], index: 12, kind: output, shape index: {}]
  %s13 = sld [smem:[#allocation0]]
  $region129: #{tpu_custom_call.1} parent=0
    _
  %s15 = ssub.s32 1, %s13
  %s16 = scalar_select 0, %s15, %s13
  $region1: #{tpu_custom_call.1} parent=0
    #allocation2 [shape = 'u8[16384]{0}', space=vmem, size = 0x4000, scoped, tag = 'input window, operand 0']
    #allocation3 [shape = 's32[2]{0}', space=sflag, size = 0x8, scoped, tag = 'scoped memory for tpu_custom_call.1']
    #allocation4 [shape = 's32[2]{0}', space=sflag, size = 0x8, scoped, tag = 'scoped memory for tpu_custom_call.1']
    #allocation5 [shape = 'u8[8192]{0}', space=vmem, size = 0x2000, scoped, tag = 'input window, operand 1, single buffered']
    #allocation6 [shape = 's32[1]{0}', space=sflag, size = 0x4, scoped, tag = 'scoped memory for tpu_custom_call.1']
    #allocation7 [shape = 'u8[512]{0}', space=vmem, size = 0x400, scoped, tag = 'input window, operand 2, single buffered']
    #allocation8 [shape = 'u8[512]{0}', space=vmem, size = 0x400, scoped, tag = 'input window, operand 3, single buffered']
    #allocation9 [shape = 's32[1]{0}', space=sflag, size = 0x4, scoped, tag = 'scoped memory for tpu_custom_call.1']
    #allocation10 [shape = 'u8[512]{0}', space=vmem, size = 0x400, scoped, tag = 'input window, operand 4, single buffered']
    #allocation11 [shape = 'u8[8192]{0}', space=vmem, size = 0x2000, scoped, tag = 'input window, operand 5, single buffered']
    #allocation12 [shape = 's32[1]{0}', space=sflag, size = 0x4, scoped, tag = 'scoped memory for tpu_custom_call.1']
    #allocation13 [shape = 'u8[512]{0}', space=vmem, size = 0x400, scoped, tag = 'input window, operand 6, single buffered']
    #allocation14 [shape = 'u8[512]{0}', space=vmem, size = 0x400, scoped, tag = 'input window, operand 7, single buffered']
    #allocation15 [shape = 's32[1]{0}', space=sflag, size = 0x4, scoped, tag = 'scoped memory for tpu_custom_call.1']
    #allocation16 [shape = 'u8[16384]{0}', space=vmem, size = 0x4000, scoped, tag = 'input window, operand 8, single buffered']
    #allocation17 [shape = 'u8[8192]{0}', space=vmem, size = 0x2000, scoped, tag = 'input window, operand 9, single buffered']
    #allocation18 [shape = 's32[1]{0}', space=sflag, size = 0x4, scoped, tag = 'scoped memory for tpu_custom_call.1']
    #allocation19 [shape = 'u8[32768]{0}', space=vmem, size = 0x8000, scoped, tag = 'input window, operand 10, single buffered']
    #allocation20 [shape = 'u8[16384]{0}', space=vmem, size = 0x4000, scoped, tag = 'input window, operand 11, single buffered']
    #allocation21 [shape = 's32[1]{0}', space=sflag, size = 0x4, scoped, tag = 'scoped memory for tpu_custom_call.1']
    #allocation22 [shape = 'u8[524288]{0}', space=vmem, size = 0x80000, scoped, tag = 'output window, operand 0']
    %17 = vsyncpa [#allocation3], 0
    %s18 = scalar_lea.sflag [#allocation3], 1
    %19 = vsyncpa %s18, 0
    %20 = vsyncpa [#allocation6], 0
    %21 = vsyncpa [#allocation9], 0
    %22 = vsyncpa [#allocation12], 0
    %23 = vsyncpa [#allocation15], 0
    %24 = vsyncpa [#allocation18], 0
    %25 = vsyncpa [#allocation21], 0
    %26 = vsyncpa [#allocation4], 0
    %s27 = scalar_lea.sflag [#allocation4], 1
    %28 = vsyncpa %s27, 0
    loop: start=0, step=1, limit=4
    $region2: #{tpu_custom_call.1} parent=1 // loop_pre_header
      _
    $region3: #{tpu_custom_call.1} parent=1 // loop_header
      %s30 = sphi 0, %s34
      %p31 = scmp.ge.s32.totalorder %s30, 4
      %s40 = sphi 0, %s42
      %s43 = sphi 0, %s40
      %s44 = sphi 0, %s43
      %s60 = sphi 0, %s44
      %s64 = sphi 0, %s64
      %s66 = sphi 0, %s64
      %s67 = sphi 0, %s66
      %s81 = sphi 0, %s67
      %s85 = sphi 0, %s85
      %s87 = sphi 0, %s85
      %s88 = sphi 0, %s87
      %s102 = sphi 0, %s88
      %s106 = sphi 0, %s106
      %s108 = sphi 0, %s106
      %s109 = sphi 0, %s108
      %s123 = sphi 0, %s109
      %s127 = sphi 0, %s127
      %s129 = sphi 0, %s127
      %s130 = sphi 0, %s129
      %s144 = sphi 0, %s130
      %s148 = sphi 0, %s148
      %s150 = sphi 0, %s148
      %s151 = sphi 0, %s150
      %s165 = sphi 0, %s151
      %s169 = sphi 0, %s169
      %s171 = sphi 0, %s169
      %s172 = sphi 0, %s171
      %s186 = sphi 0, %s172
      %s190 = sphi 0, %s190
      %s192 = sphi 0, %s190
      %s193 = sphi 0, %s192
      %s207 = sphi 0, %s193
      %s211 = sphi 0, %s211
      %s213 = sphi 0, %s211
      %s214 = sphi 0, %s213
      %s228 = sphi 0, %s214
      %s232 = sphi 0, %s232
      %s234 = sphi 0, %s232
      %s235 = sphi 0, %s234
      %s249 = sphi 0, %s235
      %s253 = sphi 0, %s253
      %s255 = sphi 0, %s253
      %s256 = sphi 0, %s255
      %s270 = sphi 0, %s256
      %s274 = sphi 0, %s274
      %s276 = sphi 0, %s274
      %s277 = sphi 0, %s276
      %s291 = sphi 0, %s277
      %s297 = sphi 0, %s299
      %s300 = sphi 0, %s297
      %s301 = sphi 0, %s300
      %s317 = sphi 0, %s301
    $region4: #{tpu_custom_call.1} parent=1 // loop_header_branch
      %33 = sbr.rel (%p31) target = $region8
    $region5: #{tpu_custom_call.1} parent=1 // loop_body
      %s35 = ssub.s32 %s30, 1
      %s36 = ssub.s32 %s30, 2
      %s37 = sadd.s32 %s30, 1
      %s38 = ssub.s32 %s30, %s37
      %p39 = scmp.eq.s32.totalorder %s38, 0
      %s41 = sadd.s32 %s40, 1
      %s42 = scalar_select %p39, %s40, %s41
      %p45 = pneg %p39
      %p46 = scmp.eq.s32.totalorder %s30, 1
      %p47 = por %p45, %p46
      %p48 = scmp.ne.s32.totalorder %s40, %s43
      %p49 = scmp.eq.s32.totalorder %s30, 0
      %p50 = por %p48, %p49
      %p51 = scmp.ne.s32.totalorder %s40, %s43
      %p52 = scmp.eq.s32.totalorder %s35, 1
      %p53 = por %p51, %p52
      %p54 = scmp.ne.s32.totalorder %s43, %s44
      %p55 = scmp.eq.s32.totalorder %s35, 0
      %p56 = por %p54, %p55
      %p57 = scmp.ne.s32.totalorder %s43, %s44
      %p58 = scmp.eq.s32.totalorder %s36, 1
      %p59 = por %p57, %p58
      %p61 = scmp.ne.s32.totalorder %s44, %s60
      %p62 = scmp.eq.s32.totalorder %s36, 0
      %p63 = por %p61, %p62
      %s65 = sadd.s32 %s64, 1
      %p68 = scmp.eq.s32.totalorder %s30, 1
      %p69 = scmp.ne.s32.totalorder %s64, %s66
      %p70 = scmp.eq.s32.totalorder %s30, 0
      %p71 = por %p69, %p70
      %p72 = scmp.ne.s32.totalorder %s64, %s66
      %p73 = scmp.eq.s32.totalorder %s35, 1
      %p74 = por %p72, %p73
      %p75 = scmp.ne.s32.totalorder %s66, %s67
      %p76 = scmp.eq.s32.totalorder %s35, 0
      %p77 = por %p75, %p76
      %p78 = scmp.ne.s32.totalorder %s66, %s67
      %p79 = scmp.eq.s32.totalorder %s36, 1
      %p80 = por %p78, %p79
      %p82 = scmp.ne.s32.totalorder %s67, %s81
      %p83 = scmp.eq.s32.totalorder %s36, 0
      %p84 = por %p82, %p83
      %s86 = sadd.s32 %s85, 1
      %p89 = scmp.eq.s32.totalorder %s30, 1
      %p90 = scmp.ne.s32.totalorder %s85, %s87
      %p91 = scmp.eq.s32.totalorder %s30, 0
      %p92 = por %p90, %p91
      %p93 = scmp.ne.s32.totalorder %s85, %s87
      %p94 = scmp.eq.s32.totalorder %s35, 1
      %p95 = por %p93, %p94
      %p96 = scmp.ne.s32.totalorder %s87, %s88
      %p97 = scmp.eq.s32.totalorder %s35, 0
      %p98 = por %p96, %p97
      %p99 = scmp.ne.s32.totalorder %s87, %s88
      %p100 = scmp.eq.s32.totalorder %s36, 1
      %p101 = por %p99, %p100
      %p103 = scmp.ne.s32.totalorder %s88, %s102
      %p104 = scmp.eq.s32.totalorder %s36, 0
      %p105 = por %p103, %p104
      %s107 = sadd.s32 %s106, 1
      %p110 = scmp.eq.s32.totalorder %s30, 1
      %p111 = scmp.ne.s32.totalorder %s106, %s108
      %p112 = scmp.eq.s32.totalorder %s30, 0
      %p113 = por %p111, %p112
      %p114 = scmp.ne.s32.totalorder %s106, %s108
      %p115 = scmp.eq.s32.totalorder %s35, 1
      %p116 = por %p114, %p115
      %p117 = scmp.ne.s32.totalorder %s108, %s109
      %p118 = scmp.eq.s32.totalorder %s35, 0
      %p119 = por %p117, %p118
      %p120 = scmp.ne.s32.totalorder %s108, %s109
      %p121 = scmp.eq.s32.totalorder %s36, 1
      %p122 = por %p120, %p121
      %p124 = scmp.ne.s32.totalorder %s109, %s123
      %p125 = scmp.eq.s32.totalorder %s36, 0
      %p126 = por %p124, %p125
      %s128 = sadd.s32 %s127, 1
      %p131 = scmp.eq.s32.totalorder %s30, 1
      %p132 = scmp.ne.s32.totalorder %s127, %s129
      %p133 = scmp.eq.s32.totalorder %s30, 0
      %p134 = por %p132, %p133
      %p135 = scmp.ne.s32.totalorder %s127, %s129
      %p136 = scmp.eq.s32.totalorder %s35, 1
      %p137 = por %p135, %p136
      %p138 = scmp.ne.s32.totalorder %s129, %s130
      %p139 = scmp.eq.s32.totalorder %s35, 0
      %p140 = por %p138, %p139
      %p141 = scmp.ne.s32.totalorder %s129, %s130
      %p142 = scmp.eq.s32.totalorder %s36, 1
      %p143 = por %p141, %p142
      %p145 = scmp.ne.s32.totalorder %s130, %s144
      %p146 = scmp.eq.s32.totalorder %s36, 0
      %p147 = por %p145, %p146
      %s149 = sadd.s32 %s148, 1
      %p152 = scmp.eq.s32.totalorder %s30, 1
      %p153 = scmp.ne.s32.totalorder %s148, %s150
      %p154 = scmp.eq.s32.totalorder %s30, 0
      %p155 = por %p153, %p154
      %p156 = scmp.ne.s32.totalorder %s148, %s150
      %p157 = scmp.eq.s32.totalorder %s35, 1
      %p158 = por %p156, %p157
      %p159 = scmp.ne.s32.totalorder %s150, %s151
      %p160 = scmp.eq.s32.totalorder %s35, 0
      %p161 = por %p159, %p160
      %p162 = scmp.ne.s32.totalorder %s150, %s151
      %p163 = scmp.eq.s32.totalorder %s36, 1
      %p164 = por %p162, %p163
      %p166 = scmp.ne.s32.totalorder %s151, %s165
      %p167 = scmp.eq.s32.totalorder %s36, 0
      %p168 = por %p166, %p167
      %s170 = sadd.s32 %s169, 1
      %p173 = scmp.eq.s32.totalorder %s30, 1
      %p174 = scmp.ne.s32.totalorder %s169, %s171
      %p175 = scmp.eq.s32.totalorder %s30, 0
      %p176 = por %p174, %p175
      %p177 = scmp.ne.s32.totalorder %s169, %s171
      %p178 = scmp.eq.s32.totalorder %s35, 1
      %p179 = por %p177, %p178
      %p180 = scmp.ne.s32.totalorder %s171, %s172
      %p181 = scmp.eq.s32.totalorder %s35, 0
      %p182 = por %p180, %p181
      %p183 = scmp.ne.s32.totalorder %s171, %s172
      %p184 = scmp.eq.s32.totalorder %s36, 1
      %p185 = por %p183, %p184
      %p187 = scmp.ne.s32.totalorder %s172, %s186
      %p188 = scmp.eq.s32.totalorder %s36, 0
      %p189 = por %p187, %p188
      %s191 = sadd.s32 %s190, 1
      %p194 = scmp.eq.s32.totalorder %s30, 1
      %p195 = scmp.ne.s32.totalorder %s190, %s192
      %p196 = scmp.eq.s32.totalorder %s30, 0
      %p197 = por %p195, %p196
      %p198 = scmp.ne.s32.totalorder %s190, %s192
      %p199 = scmp.eq.s32.totalorder %s35, 1
      %p200 = por %p198, %p199
      %p201 = scmp.ne.s32.totalorder %s192, %s193
      %p202 = scmp.eq.s32.totalorder %s35, 0
      %p203 = por %p201, %p202
      %p204 = scmp.ne.s32.totalorder %s192, %s193
      %p205 = scmp.eq.s32.totalorder %s36, 1
      %p206 = por %p204, %p205
      %p208 = scmp.ne.s32.totalorder %s193, %s207
      %p209 = scmp.eq.s32.totalorder %s36, 0
      %p210 = por %p208, %p209
      %s212 = sadd.s32 %s211, 1
      %p215 = scmp.eq.s32.totalorder %s30, 1
      %p216 = scmp.ne.s32.totalorder %s211, %s213
      %p217 = scmp.eq.s32.totalorder %s30, 0
      %p218 = por %p216, %p217
      %p219 = scmp.ne.s32.totalorder %s211, %s213
      %p220 = scmp.eq.s32.totalorder %s35, 1
      %p221 = por %p219, %p220
      %p222 = scmp.ne.s32.totalorder %s213, %s214
      %p223 = scmp.eq.s32.totalorder %s35, 0
      %p224 = por %p222, %p223
      %p225 = scmp.ne.s32.totalorder %s213, %s214
      %p226 = scmp.eq.s32.totalorder %s36, 1
      %p227 = por %p225, %p226
      %p229 = scmp.ne.s32.totalorder %s214, %s228
      %p230 = scmp.eq.s32.totalorder %s36, 0
      %p231 = por %p229, %p230
      %s233 = sadd.s32 %s232, 1
      %p236 = scmp.eq.s32.totalorder %s30, 1
      %p237 = scmp.ne.s32.totalorder %s232, %s234
      %p238 = scmp.eq.s32.totalorder %s30, 0
      %p239 = por %p237, %p238
      %p240 = scmp.ne.s32.totalorder %s232, %s234
      %p241 = scmp.eq.s32.totalorder %s35, 1
      %p242 = por %p240, %p241
      %p243 = scmp.ne.s32.totalorder %s234, %s235
      %p244 = scmp.eq.s32.totalorder %s35, 0
      %p245 = por %p243, %p244
      %p246 = scmp.ne.s32.totalorder %s234, %s235
      %p247 = scmp.eq.s32.totalorder %s36, 1
      %p248 = por %p246, %p247
      %p250 = scmp.ne.s32.totalorder %s235, %s249
      %p251 = scmp.eq.s32.totalorder %s36, 0
      %p252 = por %p250, %p251
      %s254 = sadd.s32 %s253, 1
      %p257 = scmp.eq.s32.totalorder %s30, 1
      %p258 = scmp.ne.s32.totalorder %s253, %s255
      %p259 = scmp.eq.s32.totalorder %s30, 0
      %p260 = por %p258, %p259
      %p261 = scmp.ne.s32.totalorder %s253, %s255
      %p262 = scmp.eq.s32.totalorder %s35, 1
      %p263 = por %p261, %p262
      %p264 = scmp.ne.s32.totalorder %s255, %s256
      %p265 = scmp.eq.s32.totalorder %s35, 0
      %p266 = por %p264, %p265
      %p267 = scmp.ne.s32.totalorder %s255, %s256
      %p268 = scmp.eq.s32.totalorder %s36, 1
      %p269 = por %p267, %p268
      %p271 = scmp.ne.s32.totalorder %s256, %s270
      %p272 = scmp.eq.s32.totalorder %s36, 0
      %p273 = por %p271, %p272
      %s275 = sadd.s32 %s274, 1
      %p278 = scmp.eq.s32.totalorder %s30, 1
      %p279 = scmp.ne.s32.totalorder %s274, %s276
      %p280 = scmp.eq.s32.totalorder %s30, 0
      %p281 = por %p279, %p280
      %p282 = scmp.ne.s32.totalorder %s274, %s276
      %p283 = scmp.eq.s32.totalorder %s35, 1
      %p284 = por %p282, %p283
      %p285 = scmp.ne.s32.totalorder %s276, %s277
      %p286 = scmp.eq.s32.totalorder %s35, 0
      %p287 = por %p285, %p286
      %p288 = scmp.ne.s32.totalorder %s276, %s277
      %p289 = scmp.eq.s32.totalorder %s36, 1
      %p290 = por %p288, %p289
      %p292 = scmp.ne.s32.totalorder %s277, %s291
      %p293 = scmp.eq.s32.totalorder %s36, 0
      %p294 = por %p292, %p293
      %s295 = ssub.s32 %s30, %s37
      %p296 = scmp.eq.s32.totalorder %s295, 0
      %s298 = sadd.s32 %s297, 1
      %s299 = scalar_select %p296, %s297, %s298
      %p302 = pneg %p296
      %p303 = scmp.eq.s32.totalorder %s30, 1
      %p304 = por %p302, %p303
      %p305 = scmp.ne.s32.totalorder %s297, %s300
      %p306 = scmp.eq.s32.totalorder %s30, 0
      %p307 = por %p305, %p306
      %p308 = scmp.ne.s32.totalorder %s297, %s300
      %p309 = scmp.eq.s32.totalorder %s35, 1
      %p310 = por %p308, %p309
      %p311 = scmp.ne.s32.totalorder %s300, %s301
      %p312 = scmp.eq.s32.totalorder %s35, 0
      %p313 = por %p311, %p312
      %p314 = scmp.ne.s32.totalorder %s300, %s301
      %p315 = scmp.eq.s32.totalorder %s36, 1
      %p316 = por %p314, %p315
      %p318 = scmp.ne.s32.totalorder %s301, %s317
      %p319 = scmp.eq.s32.totalorder %s36, 0
      %p320 = por %p318, %p319
      %p321 = scmp.le.s32.totalorder 1, %s30
      %p322 = scmp.lt.s32.totalorder %s30, 3
      %p323 = pnand %p321, %p322
      %p324 = pneg %p323
      // Predicated region
      $region9: #{tpu_custom_call.1} parent=5 // pred_check
        _
      $region10: #{tpu_custom_call.1} parent=5 // pred_check_branch
        %326 = sbr.rel (%p323) target = $region12
      $region11: #{tpu_custom_call.1} parent=5 // pred_region
        %s327 = ssub.s32 %s30, 1
        // Predicated region
        $region13: #{tpu_custom_call.1} parent=11 // pred_check
          %p328 = pneg %p77
        $region14: #{tpu_custom_call.1} parent=11 // pred_check_branch
          %330 = sbr.rel (%p328) target = $region16
        $region15: #{tpu_custom_call.1} parent=11 // pred_region
          %s332 = ssub.s32 256, 256
          %333 = vsyncadd [#allocation6], %s332
          %s334 = sshll.u32 [#allocation5], 4
          %s335 = int_to_ptr.vmem [resolvable:$true] %s334
          %340 = dma.hbm_to_vmem [thread:$0]  %s1, 256, %s335, [#allocation6], 128, 128, 8
        $region16: #{tpu_custom_call.1} parent=11 // pred_fallthru
          _
        // Predicated region
        $region17: #{tpu_custom_call.1} parent=11 // pred_check
          %p341 = pneg %p98
        $region18: #{tpu_custom_call.1} parent=11 // pred_check_branch
          %343 = sbr.rel (%p341) target = $region20
        $region19: #{tpu_custom_call.1} parent=11 // pred_region
          %s345 = ssub.s32 16, 16
          %346 = vsyncadd [#allocation6], %s345
          %s348 = sshll.u32 [#allocation7], 4
          %s349 = int_to_ptr.vmem [resolvable:$true] %s348
          %351 = dma.hbm_to_vmem [thread:$0]  %s2, 16, %s349, [#allocation6]
        $region20: #{tpu_custom_call.1} parent=11 // pred_fallthru
          _
        // Predicated region
        $region21: #{tpu_custom_call.1} parent=11 // pred_check
          %p352 = pneg %p119
        $region22: #{tpu_custom_call.1} parent=11 // pred_check_branch
          %354 = sbr.rel (%p352) target = $region24
        $region23: #{tpu_custom_call.1} parent=11 // pred_region
          %s356 = ssub.s32 16, 16
          %357 = vsyncadd [#allocation9], %s356
          %s359 = sshll.u32 [#allocation8], 4
          %s360 = int_to_ptr.vmem [resolvable:$true] %s359
          %362 = dma.hbm_to_vmem [thread:$0]  %s3, 16, %s360, [#allocation9]
        $region24: #{tpu_custom_call.1} parent=11 // pred_fallthru
          _
        // Predicated region
        $region25: #{tpu_custom_call.1} parent=11 // pred_check
          %p363 = pneg %p140
        $region26: #{tpu_custom_call.1} parent=11 // pred_check_branch
          %365 = sbr.rel (%p363) target = $region28
        $region27: #{tpu_custom_call.1} parent=11 // pred_region
          %s367 = ssub.s32 16, 16
          %368 = vsyncadd [#allocation9], %s367
          %s370 = sshll.u32 [#allocation10], 4
          %s371 = int_to_ptr.vmem [resolvable:$true] %s370
          %373 = dma.hbm_to_vmem [thread:$0]  %s4, 16, %s371, [#allocation9]
        $region28: #{tpu_custom_call.1} parent=11 // pred_fallthru
          _
        // Predicated region
        $region29: #{tpu_custom_call.1} parent=11 // pred_check
          %p374 = pneg %p161
        $region30: #{tpu_custom_call.1} parent=11 // pred_check_branch
          %376 = sbr.rel (%p374) target = $region32
        $region31: #{tpu_custom_call.1} parent=11 // pred_region
          %s378 = ssub.s32 256, 256
          %379 = vsyncadd [#allocation12], %s378
          %s380 = sshll.u32 [#allocation11], 4
          %s381 = int_to_ptr.vmem [resolvable:$true] %s380
          %386 = dma.hbm_to_vmem [thread:$0]  %s5, 256, %s381, [#allocation12], 128, 128, 8
        $region32: #{tpu_custom_call.1} parent=11 // pred_fallthru
          _
        // Predicated region
        $region33: #{tpu_custom_call.1} parent=11 // pred_check
          %p387 = pneg %p182
        $region34: #{tpu_custom_call.1} parent=11 // pred_check_branch
          %389 = sbr.rel (%p387) target = $region36
        $region35: #{tpu_custom_call.1} parent=11 // pred_region
          %s391 = ssub.s32 16, 16
          %392 = vsyncadd [#allocation12], %s391
          %s394 = sshll.u32 [#allocation13], 4
          %s395 = int_to_ptr.vmem [resolvable:$true] %s394
          %397 = dma.hbm_to_vmem [thread:$0]  %s6, 16, %s395, [#allocation12]
        $region36: #{tpu_custom_call.1} parent=11 // pred_fallthru
          _
        // Predicated region
        $region37: #{tpu_custom_call.1} parent=11 // pred_check
          %p398 = pneg %p203
        $region38: #{tpu_custom_call.1} parent=11 // pred_check_branch
          %400 = sbr.rel (%p398) target = $region40
        $region39: #{tpu_custom_call.1} parent=11 // pred_region
          %s402 = ssub.s32 16, 16
          %403 = vsyncadd [#allocation15], %s402
          %s405 = sshll.u32 [#allocation14], 4
          %s406 = int_to_ptr.vmem [resolvable:$true] %s405
          %408 = dma.hbm_to_vmem [thread:$0]  %s7, 16, %s406, [#allocation15]
        $region40: #{tpu_custom_call.1} parent=11 // pred_fallthru
          _
        // Predicated region
        $region41: #{tpu_custom_call.1} parent=11 // pred_check
          %p409 = pneg %p224
        $region42: #{tpu_custom_call.1} parent=11 // pred_check_branch
          %411 = sbr.rel (%p409) target = $region44
        $region43: #{tpu_custom_call.1} parent=11 // pred_region
          %s413 = ssub.s32 512, 512
          %414 = vsyncadd [#allocation15], %s413
          %s415 = sshll.u32 [#allocation16], 4
          %s416 = int_to_ptr.vmem [resolvable:$true] %s415
          %421 = dma.hbm_to_vmem [thread:$0]  %s8, 512, %s416, [#allocation15], 128, 128, 8
        $region44: #{tpu_custom_call.1} parent=11 // pred_fallthru
          _
        // Predicated region
        $region45: #{tpu_custom_call.1} parent=11 // pred_check
          %p422 = pneg %p245
        $region46: #{tpu_custom_call.1} parent=11 // pred_check_branch
          %424 = sbr.rel (%p422) target = $region48
        $region47: #{tpu_custom_call.1} parent=11 // pred_region
          %s426 = ssub.s32 256, 256
          %427 = vsyncadd [#allocation18], %s426
          %s428 = sshll.u32 [#allocation17], 4
          %s429 = int_to_ptr.vmem [resolvable:$true] %s428
          %434 = dma.hbm_to_vmem [thread:$0]  %s9, 256, %s429, [#allocation18], 128, 128, 8
        $region48: #{tpu_custom_call.1} parent=11 // pred_fallthru
          _
        // Predicated region
        $region49: #{tpu_custom_call.1} parent=11 // pred_check
          %p435 = pneg %p266
        $region50: #{tpu_custom_call.1} parent=11 // pred_check_branch
          %437 = sbr.rel (%p435) target = $region52
        $region51: #{tpu_custom_call.1} parent=11 // pred_region
          %s439 = ssub.s32 1024, 1024
          %440 = vsyncadd [#allocation18], %s439
          %s441 = sshll.u32 [#allocation19], 4
          %s442 = int_to_ptr.vmem [resolvable:$true] %s441
          %447 = dma.hbm_to_vmem [thread:$0]  %s10, 1024, %s442, [#allocation18], 128, 128, 8
        $region52: #{tpu_custom_call.1} parent=11 // pred_fallthru
          _
        // Predicated region
        $region53: #{tpu_custom_call.1} parent=11 // pred_check
          %p448 = pneg %p287
        $region54: #{tpu_custom_call.1} parent=11 // pred_check_branch
          %450 = sbr.rel (%p448) target = $region56
        $region55: #{tpu_custom_call.1} parent=11 // pred_region
          %s452 = ssub.s32 512, 512
          %453 = vsyncadd [#allocation21], %s452
          %s454 = sshll.u32 [#allocation20], 4
          %s455 = int_to_ptr.vmem [resolvable:$true] %s454
          %460 = dma.hbm_to_vmem [thread:$0]  %s11, 512, %s455, [#allocation21], 16, 16, 1
        $region56: #{tpu_custom_call.1} parent=11 // pred_fallthru
          _
      $region12: #{tpu_custom_call.1} parent=5 // pred_fallthru
        _
      %p461 = scmp.lt.s32.totalorder %s30, 2
      // Predicated region
      $region57: #{tpu_custom_call.1} parent=5 // pred_check
        %p462 = pneg %p461
      $region58: #{tpu_custom_call.1} parent=5 // pred_check_branch
        %464 = sbr.rel (%p462) target = $region60
      $region59: #{tpu_custom_call.1} parent=5 // pred_region
        // Predicated region
        $region61: #{tpu_custom_call.1} parent=59 // pred_check
          %p465 = pneg %p50
        $region62: #{tpu_custom_call.1} parent=59 // pred_check_branch
          %467 = sbr.rel (%p465) target = $region64
        $region63: #{tpu_custom_call.1} parent=59 // pred_region
          %s468 = sand.u32 %s40, 1
          %s469 = scalar_lea.sflag [#allocation3], %s468
          %s470 = sand.u32 %s40, 1
          %s471 = smul.addr %s470, 16
          %s472 = scalar_lea.vmem [#allocation2], %s471
          %s474 = ssub.s32 256, 256
          %475 = vsyncadd %s469, %s474
          %s476 = smul.addr %s30, 2
          %s477 = smul.addr %s476, 128
          %s478 = scalar_lea.hbm %s0, %s477
          %s479 = sshll.u32 %s472, 4
          %s480 = int_to_ptr.vmem [resolvable:$true] %s479
          %485 = dma.hbm_to_vmem [thread:$0]  %s478, 256, %s480, %s469, 128, 128, 8
        $region64: #{tpu_custom_call.1} parent=59 // pred_fallthru
          _
      $region60: #{tpu_custom_call.1} parent=5 // pred_fallthru
        _
      %p486 = scmp.le.s32.totalorder 1, %s30
      %p487 = scmp.lt.s32.totalorder %s30, 3
      %p488 = pnand %p486, %p487
      %p489 = pneg %p488
      // Predicated region
      $region65: #{tpu_custom_call.1} parent=5 // pred_check
        _
      $region66: #{tpu_custom_call.1} parent=5 // pred_check_branch
        %491 = sbr.rel (%p488) target = $region68
      $region67: #{tpu_custom_call.1} parent=5 // pred_region
        %s492 = ssub.s32 %s30, 1
        %s493 = sand.u32 %s43, 1
        %s494 = scalar_lea.sflag [#allocation3], %s493
        %s495 = sand.u32 %s43, 1
        %s496 = smul.addr %s495, 16
        %s497 = scalar_lea.vmem [#allocation2], %s496
        // Predicated region
        $region69: #{tpu_custom_call.1} parent=67 // pred_check
          %p498 = pneg %p56
        $region70: #{tpu_custom_call.1} parent=67 // pred_check_branch
          %500 = sbr.rel (%p498) target = $region72
        $region71: #{tpu_custom_call.1} parent=67 // pred_region
          %501 = dma.done %s494, 256
        $region72: #{tpu_custom_call.1} parent=67 // pred_fallthru
          _
        // Predicated region
        $region73: #{tpu_custom_call.1} parent=67 // pred_check
          %p502 = pneg %p77
        $region74: #{tpu_custom_call.1} parent=67 // pred_check_branch
          %504 = sbr.rel (%p502) target = $region76
        $region75: #{tpu_custom_call.1} parent=67 // pred_region
          %505 = dma.done [#allocation6], 256
        $region76: #{tpu_custom_call.1} parent=67 // pred_fallthru
          _
        // Predicated region
        $region77: #{tpu_custom_call.1} parent=67 // pred_check
          %p506 = pneg %p98
        $region78: #{tpu_custom_call.1} parent=67 // pred_check_branch
          %508 = sbr.rel (%p506) target = $region80
        $region79: #{tpu_custom_call.1} parent=67 // pred_region
          %509 = dma.done [#allocation6], 16
        $region80: #{tpu_custom_call.1} parent=67 // pred_fallthru
          _
        // Predicated region
        $region81: #{tpu_custom_call.1} parent=67 // pred_check
          %p510 = pneg %p119
        $region82: #{tpu_custom_call.1} parent=67 // pred_check_branch
          %512 = sbr.rel (%p510) target = $region84
        $region83: #{tpu_custom_call.1} parent=67 // pred_region
          %513 = dma.done [#allocation9], 16
        $region84: #{tpu_custom_call.1} parent=67 // pred_fallthru
          _
        // Predicated region
        $region85: #{tpu_custom_call.1} parent=67 // pred_check
          %p514 = pneg %p140
        $region86: #{tpu_custom_call.1} parent=67 // pred_check_branch
          %516 = sbr.rel (%p514) target = $region88
        $region87: #{tpu_custom_call.1} parent=67 // pred_region
          %517 = dma.done [#allocation9], 16
        $region88: #{tpu_custom_call.1} parent=67 // pred_fallthru
          _
        // Predicated region
        $region89: #{tpu_custom_call.1} parent=67 // pred_check
          %p518 = pneg %p161
        $region90: #{tpu_custom_call.1} parent=67 // pred_check_branch
          %520 = sbr.rel (%p518) target = $region92
        $region91: #{tpu_custom_call.1} parent=67 // pred_region
          %521 = dma.done [#allocation12], 256
        $region92: #{tpu_custom_call.1} parent=67 // pred_fallthru
          _
        // Predicated region
        $region93: #{tpu_custom_call.1} parent=67 // pred_check
          %p522 = pneg %p182
        $region94: #{tpu_custom_call.1} parent=67 // pred_check_branch
          %524 = sbr.rel (%p522) target = $region96
        $region95: #{tpu_custom_call.1} parent=67 // pred_region
          %525 = dma.done [#allocation12], 16
        $region96: #{tpu_custom_call.1} parent=67 // pred_fallthru
          _
        // Predicated region
        $region97: #{tpu_custom_call.1} parent=67 // pred_check
          %p526 = pneg %p203
        $region98: #{tpu_custom_call.1} parent=67 // pred_check_branch
          %528 = sbr.rel (%p526) target = $region100
        $region99: #{tpu_custom_call.1} parent=67 // pred_region
          %529 = dma.done [#allocation15], 16
        $region100: #{tpu_custom_call.1} parent=67 // pred_fallthru
          _
        // Predicated region
        $region101: #{tpu_custom_call.1} parent=67 // pred_check
          %p530 = pneg %p224
        $region102: #{tpu_custom_call.1} parent=67 // pred_check_branch
          %532 = sbr.rel (%p530) target = $region104
        $region103: #{tpu_custom_call.1} parent=67 // pred_region
          %533 = dma.done [#allocation15], 512
        $region104: #{tpu_custom_call.1} parent=67 // pred_fallthru
          _
        // Predicated region
        $region105: #{tpu_custom_call.1} parent=67 // pred_check
          %p534 = pneg %p245
        $region106: #{tpu_custom_call.1} parent=67 // pred_check_branch
          %536 = sbr.rel (%p534) target = $region108
        $region107: #{tpu_custom_call.1} parent=67 // pred_region
          %537 = dma.done [#allocation18], 256
        $region108: #{tpu_custom_call.1} parent=67 // pred_fallthru
          _
        // Predicated region
        $region109: #{tpu_custom_call.1} parent=67 // pred_check
          %p538 = pneg %p266
        $region110: #{tpu_custom_call.1} parent=67 // pred_check_branch
          %540 = sbr.rel (%p538) target = $region112
        $region111: #{tpu_custom_call.1} parent=67 // pred_region
          %541 = dma.done [#allocation18], 1024
        $region112: #{tpu_custom_call.1} parent=67 // pred_fallthru
          _
        // Predicated region
        $region113: #{tpu_custom_call.1} parent=67 // pred_check
          %p542 = pneg %p287
        $region114: #{tpu_custom_call.1} parent=67 // pred_check_branch
          %544 = sbr.rel (%p542) target = $region116
        $region115: #{tpu_custom_call.1} parent=67 // pred_region
          %545 = dma.done [#allocation21], 512
        $region116: #{tpu_custom_call.1} parent=67 // pred_fallthru
          _
        %s546 = sand.u32 %s43, 1
        %s547 = scalar_lea.sflag [#allocation3], %s546
        %s548 = sand.u32 %s43, 1
        %s549 = smul.addr %s548, 16
        %s550 = scalar_lea.vmem [#allocation2], %s549
        %p551 = pneg %p56
        %p552 = pneg %p53
        %p553 = pneg %p77
        %p554 = pneg %p74
        %p555 = pneg %p98
        %p556 = pneg %p95
        %p557 = pneg %p119
        %p558 = pneg %p116
        %p559 = pneg %p140
        %p560 = pneg %p137
        %p561 = pneg %p161
        %p562 = pneg %p158
        %p563 = pneg %p182
        %p564 = pneg %p179
        %p565 = pneg %p203
        %p566 = pneg %p200
        %p567 = pneg %p224
        %p568 = pneg %p221
        %p569 = pneg %p245
        %p570 = pneg %p242
        %p571 = pneg %p266
        %p572 = pneg %p263
        %p573 = pneg %p287
        %p574 = pneg %p284
        %p575 = pneg %p313
        %p576 = pneg %p310
        %s577 = sand.u32 %s300, 1
        %s578 = scalar_lea.sflag [#allocation4], %s577
        %s579 = sand.u32 %s300, 1
        %s580 = smul.addr %s579, 512
        %s581 = scalar_lea.vmem [#allocation22], %s580
        %v582 = vld [vmem:[%s497] sm:$0xff]
        %v583 = vld [vmem:[%s497 + $0x8] sm:$0xff]
        %v584 = vld [vmem:[#allocation5] sm:$0xff]
        %v585 = vld [vmem:[#allocation5 + $0x8] sm:$0xff]
        %v586 = vld [vmem:[#allocation7] sm:$0x1]
        %v588 = vlaneseq
        %v589 = vshrl.u32 %v588, 7
        %v590 = vsub.s32 0, %v589
        %v591 = vrot.slane %v586, %v590
        %vm593 = vcmask 130048
        %v595 = vsel %vm593, %v582, 0
        %v598 = vsel %vm593, %v583, 0
        %600 = vmatprep.subr.mxu0 0.0
        %601 = vmatpush1.msra.mxu0 %v584
        %602 = vmatprep.subr.mxu0 0.0
        %603 = vmatpush1.msra.mxu0 %v585
        %604 = vmatprep.subr.mxu0 0.0
        %605 = vmatpush1.msra.mxu0 0.0
        %606 = vmatprep.subr.mxu0 0.0
        %607 = vmatpush1.msra.mxu0 0.0
        %608 = vmatprep.subr.mxu0 0.0
        %609 = vmatpush1.msra.mxu0 0.0
        %610 = vmatprep.subr.mxu0 0.0
        %611 = vmatpush1.msra.mxu0 0.0
        %612 = vmatprep.subr.mxu0 0.0
        %613 = vmatpush1.msra.mxu0 0.0
        %614 = vmatprep.subr.mxu0 0.0
        %615 = vmatpush1.msra.mxu0 0.0
        %616 = vmatprep.subr.mxu0 0.0
        %617 = vmatpush1.msra.mxu0 0.0
        %618 = vmatprep.subr.mxu0 0.0
        %619 = vmatpush1.msra.mxu0 0.0
        %620 = vmatprep.subr.mxu0 0.0
        %621 = vmatpush1.msra.mxu0 0.0
        %622 = vmatprep.subr.mxu0 0.0
        %623 = vmatpush1.msra.mxu0 0.0
        %624 = vmatprep.subr.mxu0 0.0
        %625 = vmatpush1.msra.mxu0 0.0
        %626 = vmatprep.subr.mxu0 0.0
        %627 = vmatpush1.msra.mxu0 0.0
        %628 = vmatprep.subr.mxu0 0.0
        %629 = vmatpush1.msra.mxu0 0.0
        %630 = vmatprep.subr.mxu0 0.0
        %631 = vmatpush1.msra.mxu0 0.0
        %632 = vmatprep.subr.mxu0 0.0
        %633 = vmatpush1.msra.mxu0 0.0
        %634 = vmatprep.subr.mxu0 0.0
        %635 = vmatpush1.msra.mxu0 0.0
        %636 = vmatprep.subr.mxu0 0.0
        %637 = vmatpush1.msra.mxu0 0.0
        %638 = vmatprep.subr.mxu0 0.0
        %639 = vmatpush1.msra.mxu0 0.0
        %640 = vmatprep.subr.mxu0 0.0
        %641 = vmatpush1.msra.mxu0 0.0
        %642 = vmatprep.subr.mxu0 0.0
        %643 = vmatpush1.msra.mxu0 0.0
        %644 = vmatprep.subr.mxu0 0.0
        %645 = vmatpush1.msra.mxu0 0.0
        %646 = vmatprep.subr.mxu0 0.0
        %647 = vmatpush1.msra.mxu0 0.0
        %648 = vmatprep.subr.mxu0 0.0
        %649 = vmatpush1.msra.mxu0 0.0
        %650 = vmatprep.subr.mxu0 0.0
        %651 = vmatpush1.msra.mxu0 0.0
        %652 = vmatprep.subr.mxu0 0.0
        %653 = vmatpush1.msra.mxu0 0.0
        %654 = vmatprep.subr.mxu0 0.0
        %655 = vmatpush1.msra.mxu0 0.0
        %656 = vmatprep.subr.mxu0 0.0
        %657 = vmatpush1.msra.mxu0 0.0
        %658 = vmatprep.subr.mxu0 0.0
        %659 = vmatpush1.msra.mxu0 0.0
        %660 = vmatprep.subr.mxu0 0.0
        %661 = vmatpush1.msra.mxu0 0.0
        %662 = vmatprep.subr.mxu0 0.0
        %663 = vmatpush1.msra.mxu0 0.0
        %664 = vmatprep.mubr.f32.mxu0 0.0
        %665 = vmatmul.mubr.f32.gmra.mrb[0].mxu0 %v595
        %v666 = vpop.f32.mrb[0].mxu0
        %v667 = vadd.f32 %v591, %v666
        %v668 = vpop.f32.mrb[0].mxu0
        %669 = vmatprep.mubr.f32.mxu0 0.0
        %670 = vmatmul.mubr.f32.gmra.mrb[0].mxu0 %v598
        %v671 = vpop.f32.mrb[0].mxu0
        %v672 = vadd.f32 %v591, %v671
        %v673 = vpop.f32.mrb[0].mxu0
        %674 = vdwg.mxu0
        %v675 = vsel %vm593, %v667, 0.0
        %676 = vadd.xlane.f32.xlu0 %v675
        %v677 = vpop.xlane.xlu0 %676
        %v678 = vsel %vm593, %v672, 0.0
        %679 = vadd.xlane.f32.xlu0 %v678
        %v680 = vpop.xlane.xlu0 %679
        %v681 = vrcp.pop 16.0
        %v682 = vmul.f32 %v677, %v681
        %v683 = vmul.f32 %v680, %v681
        %v684 = vsub.f32 %v667, %v682
        %v685 = vsub.f32 %v672, %v683
        %v686 = vmul.f32 %v684, %v684
        %v687 = vmul.f32 %v685, %v685
        %v688 = vsel %vm593, %v686, 0.0
        %689 = vadd.xlane.f32.xlu0 %v688
        %v690 = vpop.xlane.xlu0 %689
        %v691 = vsel %vm593, %v687, 0.0
        %692 = vadd.xlane.f32.xlu0 %v691
        %v693 = vpop.xlane.xlu0 %692
        %v694 = vmul.f32 %v690, %v681
        %v695 = vmul.f32 %v693, %v681
        %v696 = vadd.f32 %v694, 1e-05
        %v697 = vadd.f32 %v695, 1e-05
        %v698 = vrsqrt.pop %v696
        %v699 = vrsqrt.pop %v697
        %v700 = vmul.f32 %v684, %v698
        %v701 = vmul.f32 %v685, %v699
        %v702 = vld [vmem:[#allocation8] sm:$0x1]
        %v704 = vlaneseq
        %v705 = vshrl.u32 %v704, 7
        %v706 = vsub.s32 0, %v705
        %v707 = vrot.slane %v702, %v706
        %v709 = vmul.f32 %v700, %v707
        %v710 = vmul.f32 %v701, %v707
        %v711 = vld [vmem:[#allocation10] sm:$0x1]
        %v713 = vlaneseq
        %v714 = vshrl.u32 %v713, 7
        %v715 = vsub.s32 0, %v714
        %v716 = vrot.slane %v711, %v715
        %v718 = vadd.f32 %v709, %v716
        %v719 = vadd.f32 %v710, %v716
        %v720 = vld [vmem:[#allocation11] sm:$0xff]
        %v721 = vld [vmem:[#allocation11 + $0x8] sm:$0xff]
        %v722 = vld [vmem:[#allocation13] sm:$0x1]
        %v724 = vlaneseq
        %v725 = vshrl.u32 %v724, 7
        %v726 = vsub.s32 0, %v725
        %v727 = vrot.slane %v722, %v726
        %v730 = vsel %vm593, %v718, 0
        %v733 = vsel %vm593, %v719, 0
        %735 = vmatprep.subr.mxu0 0.0
        %736 = vmatpush1.msra.mxu0 %v720
        %737 = vmatprep.subr.mxu0 0.0
        %738 = vmatpush1.msra.mxu0 %v721
        %739 = vmatprep.subr.mxu0 0.0
        %740 = vmatpush1.msra.mxu0 0.0
        %741 = vmatprep.subr.mxu0 0.0
        %742 = vmatpush1.msra.mxu0 0.0
        %743 = vmatprep.subr.mxu0 0.0
        %744 = vmatpush1.msra.mxu0 0.0
        %745 = vmatprep.subr.mxu0 0.0
        %746 = vmatpush1.msra.mxu0 0.0
        %747 = vmatprep.subr.mxu0 0.0
        %748 = vmatpush1.msra.mxu0 0.0
        %749 = vmatprep.subr.mxu0 0.0
        %750 = vmatpush1.msra.mxu0 0.0
        %751 = vmatprep.subr.mxu0 0.0
        %752 = vmatpush1.msra.mxu0 0.0
        %753 = vmatprep.subr.mxu0 0.0
        %754 = vmatpush1.msra.mxu0 0.0
        %755 = vmatprep.subr.mxu0 0.0
        %756 = vmatpush1.msra.mxu0 0.0
        %757 = vmatprep.subr.mxu0 0.0
        %758 = vmatpush1.msra.mxu0 0.0
        %759 = vmatprep.subr.mxu0 0.0
        %760 = vmatpush1.msra.mxu0 0.0
        %761 = vmatprep.subr.mxu0 0.0
        %762 = vmatpush1.msra.mxu0 0.0
        %763 = vmatprep.subr.mxu0 0.0
        %764 = vmatpush1.msra.mxu0 0.0
        %765 = vmatprep.subr.mxu0 0.0
        %766 = vmatpush1.msra.mxu0 0.0
        %767 = vmatprep.subr.mxu0 0.0
        %768 = vmatpush1.msra.mxu0 0.0
        %769 = vmatprep.subr.mxu0 0.0
        %770 = vmatpush1.msra.mxu0 0.0
        %771 = vmatprep.subr.mxu0 0.0
        %772 = vmatpush1.msra.mxu0 0.0
        %773 = vmatprep.subr.mxu0 0.0
        %774 = vmatpush1.msra.mxu0 0.0
        %775 = vmatprep.subr.mxu0 0.0
        %776 = vmatpush1.msra.mxu0 0.0
        %777 = vmatprep.subr.mxu0 0.0
        %778 = vmatpush1.msra.mxu0 0.0
        %779 = vmatprep.subr.mxu0 0.0
        %780 = vmatpush1.msra.mxu0 0.0
        %781 = vmatprep.subr.mxu0 0.0
        %782 = vmatpush1.msra.mxu0 0.0
        %783 = vmatprep.subr.mxu0 0.0
        %784 = vmatpush1.msra.mxu0 0.0
        %785 = vmatprep.subr.mxu0 0.0
        %786 = vmatpush1.msra.mxu0 0.0
        %787 = vmatprep.subr.mxu0 0.0
        %788 = vmatpush1.msra.mxu0 0.0
        %789 = vmatprep.subr.mxu0 0.0
        %790 = vmatpush1.msra.mxu0 0.0
        %791 = vmatprep.subr.mxu0 0.0
        %792 = vmatpush1.msra.mxu0 0.0
        %793 = vmatprep.subr.mxu0 0.0
        %794 = vmatpush1.msra.mxu0 0.0
        %795 = vmatprep.subr.mxu0 0.0
        %796 = vmatpush1.msra.mxu0 0.0
        %797 = vmatprep.subr.mxu0 0.0
        %798 = vmatpush1.msra.mxu0 0.0
        %799 = vmatprep.mubr.f32.mxu0 0.0
        %800 = vmatmul.mubr.f32.gmra.mrb[0].mxu0 %v730
        %v801 = vpop.f32.mrb[0].mxu0
        %v802 = vadd.f32 %v727, %v801
        %v803 = vpop.f32.mrb[0].mxu0
        %804 = vmatprep.mubr.f32.mxu0 0.0
        %805 = vmatmul.mubr.f32.gmra.mrb[0].mxu0 %v733
        %v806 = vpop.f32.mrb[0].mxu0
        %v807 = vadd.f32 %v727, %v806
        %v808 = vpop.f32.mrb[0].mxu0
        %809 = vdwg.mxu0
        %vm810 = vcmask 261120
        %v811 = vsel %vm810, %v802, -inf
        %812 = vmax.xlane.f32.xlu0 %v811
        %v813 = vpop.xlane.xlu0 %812
        %v814 = vsel %vm810, %v807, -inf
        %815 = vmax.xlane.f32.xlu0 %v814
        %v816 = vpop.xlane.xlu0 %815
        %v817 = vsub.f32 %v802, %v813
        %v818 = vsub.f32 %v807, %v816
        %v819 = vmul.f32 %v817, 1.442695
        %v820 = vpow.pop %v819
        %v821 = vmul.f32 %v818, 1.442695
        %v822 = vpow.pop %v821
        %v823 = vsel %vm810, %v820, 0.0
        %824 = vadd.xlane.f32.xlu0 %v823
        %v825 = vpop.xlane.xlu0 %824
        %v826 = vsel %vm810, %v822, 0.0
        %827 = vadd.xlane.f32.xlu0 %v826
        %v828 = vpop.xlane.xlu0 %827
        %v829 = vrcp.pop %v825
        %v830 = vrcp.pop %v828
        %v831 = vmul.f32 %v820, %v829
        %v832 = vmul.f32 %v822, %v830
        %v833 = vmul.f32 %v802, %v831
        %v834 = vmul.f32 %v807, %v832
        %v835 = vmul.f32 %v833, %v833
        %v836 = vmul.f32 %v834, %v834
        %v837 = vsel %vm810, %v835, 0.0
        %838 = vadd.xlane.f32.xlu0 %v837
        %v839 = vpop.xlane.xlu0 %838
        %v840 = vsel %vm810, %v836, 0.0
        %841 = vadd.xlane.f32.xlu0 %v840
        %v842 = vpop.xlane.xlu0 %841
        %v843 = vmax.f32 %v839, 1e-24
        %v844 = vmax.f32 %v842, 1e-24
        %v845 = vrsqrt.pop %v843
        %v846 = vrsqrt.pop %v844
        %v847 = vmul.f32 %v833, %v845
        %v848 = vmul.f32 %v834, %v846
        %v849 = vld [vmem:[#allocation14] sm:$0x1]
        %v851 = vlaneseq
        %v852 = vshrl.u32 %v851, 7
        %v853 = vsub.s32 0, %v852
        %v854 = vrot.slane %v849, %v853
        %v856 = vmul.f32 %v847, %v854
        %v857 = vmul.f32 %v848, %v854
        %v858 = vsel %vm810, %v856, 0.0
        %859 = vadd.xlane.f32.xlu0 %v858
        %v860 = vpop.xlane.xlu0 %859
        %v861 = vsel %vm810, %v857, 0.0
        %862 = vadd.xlane.f32.xlu0 %v861
        %v863 = vpop.xlane.xlu0 %862
        %v864 = vmax.f32 %v860, 0.0
        %v865 = vmax.f32 %v863, 0.0
        %v866 = vmin.f32 %v864, 1.0
        %v867 = vmin.f32 %v865, 1.0
        %v868 = vmul.f32 %v833, %v866
        %v869 = vmul.f32 %v834, %v867
        %v870 = vld [vmem:[#allocation16] sm:$0xff]
        %v871 = vld [vmem:[#allocation16 + $0x8] sm:$0xff]
        %v872 = vld [vmem:[#allocation16 + $0x10] sm:$0xff]
        %v873 = vld [vmem:[#allocation16 + $0x18] sm:$0xff]
        %v875 = vsel %vm810, %v868, 0
        %v878 = vsel %vm810, %v869, 0
        %880 = vmatprep.subr.mxu0 0.0
        %881 = vmatpush1.msra.mxu0 %v870
        %882 = vmatprep.subr.mxu0 0.0
        %883 = vmatpush1.msra.mxu0 %v871
        %884 = vmatprep.subr.mxu0 0.0
        %885 = vmatpush1.msra.mxu0 %v872
        %886 = vmatprep.subr.mxu0 0.0
        %887 = vmatpush1.msra.mxu0 %v873
        %888 = vmatprep.subr.mxu0 0.0
        %889 = vmatpush1.msra.mxu0 0.0
        %890 = vmatprep.subr.mxu0 0.0
        %891 = vmatpush1.msra.mxu0 0.0
        %892 = vmatprep.subr.mxu0 0.0
        %893 = vmatpush1.msra.mxu0 0.0
        %894 = vmatprep.subr.mxu0 0.0
        %895 = vmatpush1.msra.mxu0 0.0
        %896 = vmatprep.subr.mxu0 0.0
        %897 = vmatpush1.msra.mxu0 0.0
        %898 = vmatprep.subr.mxu0 0.0
        %899 = vmatpush1.msra.mxu0 0.0
        %900 = vmatprep.subr.mxu0 0.0
        %901 = vmatpush1.msra.mxu0 0.0
        %902 = vmatprep.subr.mxu0 0.0
        %903 = vmatpush1.msra.mxu0 0.0
        %904 = vmatprep.subr.mxu0 0.0
        %905 = vmatpush1.msra.mxu0 0.0
        %906 = vmatprep.subr.mxu0 0.0
        %907 = vmatpush1.msra.mxu0 0.0
        %908 = vmatprep.subr.mxu0 0.0
        %909 = vmatpush1.msra.mxu0 0.0
        %910 = vmatprep.subr.mxu0 0.0
        %911 = vmatpush1.msra.mxu0 0.0
        %912 = vmatprep.subr.mxu0 0.0
        %913 = vmatpush1.msra.mxu0 0.0
        %914 = vmatprep.subr.mxu0 0.0
        %915 = vmatpush1.msra.mxu0 0.0
        %916 = vmatprep.subr.mxu0 0.0
        %917 = vmatpush1.msra.mxu0 0.0
        %918 = vmatprep.subr.mxu0 0.0
        %919 = vmatpush1.msra.mxu0 0.0
        %920 = vmatprep.subr.mxu0 0.0
        %921 = vmatpush1.msra.mxu0 0.0
        %922 = vmatprep.subr.mxu0 0.0
        %923 = vmatpush1.msra.mxu0 0.0
        %924 = vmatprep.subr.mxu0 0.0
        %925 = vmatpush1.msra.mxu0 0.0
        %926 = vmatprep.subr.mxu0 0.0
        %927 = vmatpush1.msra.mxu0 0.0
        %928 = vmatprep.subr.mxu0 0.0
        %929 = vmatpush1.msra.mxu0 0.0
        %930 = vmatprep.subr.mxu0 0.0
        %931 = vmatpush1.msra.mxu0 0.0
        %932 = vmatprep.subr.mxu0 0.0
        %933 = vmatpush1.msra.mxu0 0.0
        %934 = vmatprep.subr.mxu0 0.0
        %935 = vmatpush1.msra.mxu0 0.0
        %936 = vmatprep.subr.mxu0 0.0
        %937 = vmatpush1.msra.mxu0 0.0
        %938 = vmatprep.subr.mxu0 0.0
        %939 = vmatpush1.msra.mxu0 0.0
        %940 = vmatprep.subr.mxu0 0.0
        %941 = vmatpush1.msra.mxu0 0.0
        %942 = vmatprep.subr.mxu0 0.0
        %943 = vmatpush1.msra.mxu0 0.0
        %944 = vmatprep.mubr.f32.mxu0 0.0
        %945 = vmatmul.mubr.f32.gmra.mrb[0].mxu0 %v875
        %v946 = vpop.f32.mrb[0].mxu0
        %v947 = vadd.f32 0.0, %v946
        %v948 = vpop.f32.mrb[0].mxu0
        %949 = vmatprep.mubr.f32.mxu0 0.0
        %950 = vmatmul.mubr.f32.gmra.mrb[0].mxu0 %v878
        %v951 = vpop.f32.mrb[0].mxu0
        %v952 = vadd.f32 0.0, %v951
        %v953 = vpop.f32.mrb[0].mxu0
        %954 = vdwg.mxu0
        %v955 = vld [vmem:[#allocation17] sm:$0xff]
        %v956 = vld [vmem:[#allocation17 + $0x8] sm:$0xff]
        %v957 = vld [vmem:[#allocation20] sm:$0x1]
        %v958 = vld [vmem:[#allocation20 + $0x1] sm:$0x1]
        %v959 = vld [vmem:[#allocation20 + $0x2] sm:$0x1]
        %v960 = vld [vmem:[#allocation20 + $0x3] sm:$0x1]
        %v961 = vld [vmem:[#allocation20 + $0x4] sm:$0x1]
        %v962 = vld [vmem:[#allocation20 + $0x5] sm:$0x1]
        %v963 = vld [vmem:[#allocation20 + $0x6] sm:$0x1]
        %v964 = vld [vmem:[#allocation20 + $0x7] sm:$0x1]
        %v965 = vld [vmem:[#allocation20 + $0x8] sm:$0x1]
        %v966 = vld [vmem:[#allocation20 + $0x9] sm:$0x1]
        %v967 = vld [vmem:[#allocation20 + $0xa] sm:$0x1]
        %v968 = vld [vmem:[#allocation20 + $0xb] sm:$0x1]
        %v969 = vld [vmem:[#allocation20 + $0xc] sm:$0x1]
        %v970 = vld [vmem:[#allocation20 + $0xd] sm:$0x1]
        %v971 = vld [vmem:[#allocation20 + $0xe] sm:$0x1]
        %v972 = vld [vmem:[#allocation20 + $0xf] sm:$0x1]
        %v973 = vld [vmem:[#allocation20 + $0x10] sm:$0x1]
        %v974 = vld [vmem:[#allocation20 + $0x11] sm:$0x1]
        %v975 = vld [vmem:[#allocation20 + $0x12] sm:$0x1]
        %v976 = vld [vmem:[#allocation20 + $0x13] sm:$0x1]
        %v977 = vld [vmem:[#allocation20 + $0x14] sm:$0x1]
        %v978 = vld [vmem:[#allocation20 + $0x15] sm:$0x1]
        %v979 = vld [vmem:[#allocation20 + $0x16] sm:$0x1]
        %v980 = vld [vmem:[#allocation20 + $0x17] sm:$0x1]
        %v981 = vld [vmem:[#allocation20 + $0x18] sm:$0x1]
        %v982 = vld [vmem:[#allocation20 + $0x19] sm:$0x1]
        %v983 = vld [vmem:[#allocation20 + $0x1a] sm:$0x1]
        %v984 = vld [vmem:[#allocation20 + $0x1b] sm:$0x1]
        %v985 = vld [vmem:[#allocation20 + $0x1c] sm:$0x1]
        %v986 = vld [vmem:[#allocation20 + $0x1d] sm:$0x1]
        %v987 = vld [vmem:[#allocation20 + $0x1e] sm:$0x1]
        %v988 = vld [vmem:[#allocation20 + $0x1f] sm:$0x1]
        %v1021 = vlaneseq
        %v1022 = vshrl.u32 %v1021, 7
        %v1023 = vsub.s32 0, %v1022
        %v1024 = vrot.slane %v957, %v1023
        %v1025 = vlaneseq
        %v1026 = vshrl.u32 %v1025, 7
        %v1027 = vsub.s32 0, %v1026
        %v1028 = vrot.slane %v958, %v1027
        %v1029 = vlaneseq
        %v1030 = vshrl.u32 %v1029, 7
        %v1031 = vsub.s32 0, %v1030
        %v1032 = vrot.slane %v959, %v1031
        %v1033 = vlaneseq
        %v1034 = vshrl.u32 %v1033, 7
        %v1035 = vsub.s32 0, %v1034
        %v1036 = vrot.slane %v960, %v1035
        %v1037 = vlaneseq
        %v1038 = vshrl.u32 %v1037, 7
        %v1039 = vsub.s32 0, %v1038
        %v1040 = vrot.slane %v961, %v1039
        %v1041 = vlaneseq
        %v1042 = vshrl.u32 %v1041, 7
        %v1043 = vsub.s32 0, %v1042
        %v1044 = vrot.slane %v962, %v1043
        %v1045 = vlaneseq
        %v1046 = vshrl.u32 %v1045, 7
        %v1047 = vsub.s32 0, %v1046
        %v1048 = vrot.slane %v963, %v1047
        %v1049 = vlaneseq
        %v1050 = vshrl.u32 %v1049, 7
        %v1051 = vsub.s32 0, %v1050
        %v1052 = vrot.slane %v964, %v1051
        %v1053 = vlaneseq
        %v1054 = vshrl.u32 %v1053, 7
        %v1055 = vsub.s32 0, %v1054
        %v1056 = vrot.slane %v965, %v1055
        %v1057 = vlaneseq
        %v1058 = vshrl.u32 %v1057, 7
        %v1059 = vsub.s32 0, %v1058
        %v1060 = vrot.slane %v966, %v1059
        %v1061 = vlaneseq
        %v1062 = vshrl.u32 %v1061, 7
        %v1063 = vsub.s32 0, %v1062
        %v1064 = vrot.slane %v967, %v1063
        %v1065 = vlaneseq
        %v1066 = vshrl.u32 %v1065, 7
        %v1067 = vsub.s32 0, %v1066
        %v1068 = vrot.slane %v968, %v1067
        %v1069 = vlaneseq
        %v1070 = vshrl.u32 %v1069, 7
        %v1071 = vsub.s32 0, %v1070
        %v1072 = vrot.slane %v969, %v1071
        %v1073 = vlaneseq
        %v1074 = vshrl.u32 %v1073, 7
        %v1075 = vsub.s32 0, %v1074
        %v1076 = vrot.slane %v970, %v1075
        %v1077 = vlaneseq
        %v1078 = vshrl.u32 %v1077, 7
        %v1079 = vsub.s32 0, %v1078
        %v1080 = vrot.slane %v971, %v1079
        %v1081 = vlaneseq
        %v1082 = vshrl.u32 %v1081, 7
        %v1083 = vsub.s32 0, %v1082
        %v1084 = vrot.slane %v972, %v1083
        %v1085 = vlaneseq
        %v1086 = vshrl.u32 %v1085, 7
        %v1087 = vsub.s32 0, %v1086
        %v1088 = vrot.slane %v973, %v1087
        %v1089 = vlaneseq
        %v1090 = vshrl.u32 %v1089, 7
        %v1091 = vsub.s32 0, %v1090
        %v1092 = vrot.slane %v974, %v1091
        %v1093 = vlaneseq
        %v1094 = vshrl.u32 %v1093, 7
        %v1095 = vsub.s32 0, %v1094
        %v1096 = vrot.slane %v975, %v1095
        %v1097 = vlaneseq
        %v1098 = vshrl.u32 %v1097, 7
        %v1099 = vsub.s32 0, %v1098
        %v1100 = vrot.slane %v976, %v1099
        %v1101 = vlaneseq
        %v1102 = vshrl.u32 %v1101, 7
        %v1103 = vsub.s32 0, %v1102
        %v1104 = vrot.slane %v977, %v1103
        %v1105 = vlaneseq
        %v1106 = vshrl.u32 %v1105, 7
        %v1107 = vsub.s32 0, %v1106
        %v1108 = vrot.slane %v978, %v1107
        %v1109 = vlaneseq
        %v1110 = vshrl.u32 %v1109, 7
        %v1111 = vsub.s32 0, %v1110
        %v1112 = vrot.slane %v979, %v1111
        %v1113 = vlaneseq
        %v1114 = vshrl.u32 %v1113, 7
        %v1115 = vsub.s32 0, %v1114
        %v1116 = vrot.slane %v980, %v1115
        %v1117 = vlaneseq
        %v1118 = vshrl.u32 %v1117, 7
        %v1119 = vsub.s32 0, %v1118
        %v1120 = vrot.slane %v981, %v1119
        %v1121 = vlaneseq
        %v1122 = vshrl.u32 %v1121, 7
        %v1123 = vsub.s32 0, %v1122
        %v1124 = vrot.slane %v982, %v1123
        %v1125 = vlaneseq
        %v1126 = vshrl.u32 %v1125, 7
        %v1127 = vsub.s32 0, %v1126
        %v1128 = vrot.slane %v983, %v1127
        %v1129 = vlaneseq
        %v1130 = vshrl.u32 %v1129, 7
        %v1131 = vsub.s32 0, %v1130
        %v1132 = vrot.slane %v984, %v1131
        %v1133 = vlaneseq
        %v1134 = vshrl.u32 %v1133, 7
        %v1135 = vsub.s32 0, %v1134
        %v1136 = vrot.slane %v985, %v1135
        %v1137 = vlaneseq
        %v1138 = vshrl.u32 %v1137, 7
        %v1139 = vsub.s32 0, %v1138
        %v1140 = vrot.slane %v986, %v1139
        %v1141 = vlaneseq
        %v1142 = vshrl.u32 %v1141, 7
        %v1143 = vsub.s32 0, %v1142
        %v1144 = vrot.slane %v987, %v1143
        %v1145 = vlaneseq
        %v1146 = vshrl.u32 %v1145, 7
        %v1147 = vsub.s32 0, %v1146
        %v1148 = vrot.slane %v988, %v1147
        %1149 = vset.pattern.permute.xlu0 0
        %1150 = vperm.xlu0 %1149, %v1024
        %v1151 = vpop.permute.xlu0 %1150
        %1153 = vset.pattern.permute.xlu0 0
        %1154 = vperm.xlu0 %1153, %v1028
        %v1155 = vpop.permute.xlu0 %1154
        %1157 = vset.pattern.permute.xlu0 0
        %1158 = vperm.xlu0 %1157, %v1032
        %v1159 = vpop.permute.xlu0 %1158
        %1161 = vset.pattern.permute.xlu0 0
        %1162 = vperm.xlu0 %1161, %v1036
        %v1163 = vpop.permute.xlu0 %1162
        %1165 = vset.pattern.permute.xlu0 0
        %1166 = vperm.xlu0 %1165, %v1040
        %v1167 = vpop.permute.xlu0 %1166
        %1169 = vset.pattern.permute.xlu0 0
        %1170 = vperm.xlu0 %1169, %v1044
        %v1171 = vpop.permute.xlu0 %1170
        %1173 = vset.pattern.permute.xlu0 0
        %1174 = vperm.xlu0 %1173, %v1048
        %v1175 = vpop.permute.xlu0 %1174
        %1177 = vset.pattern.permute.xlu0 0
        %1178 = vperm.xlu0 %1177, %v1052
        %v1179 = vpop.permute.xlu0 %1178
        %1181 = vset.pattern.permute.xlu0 0
        %1182 = vperm.xlu0 %1181, %v1056
        %v1183 = vpop.permute.xlu0 %1182
        %1185 = vset.pattern.permute.xlu0 0
        %1186 = vperm.xlu0 %1185, %v1060
        %v1187 = vpop.permute.xlu0 %1186
        %1189 = vset.pattern.permute.xlu0 0
        %1190 = vperm.xlu0 %1189, %v1064
        %v1191 = vpop.permute.xlu0 %1190
        %1193 = vset.pattern.permute.xlu0 0
        %1194 = vperm.xlu0 %1193, %v1068
        %v1195 = vpop.permute.xlu0 %1194
        %1197 = vset.pattern.permute.xlu0 0
        %1198 = vperm.xlu0 %1197, %v1072
        %v1199 = vpop.permute.xlu0 %1198
        %1201 = vset.pattern.permute.xlu0 0
        %1202 = vperm.xlu0 %1201, %v1076
        %v1203 = vpop.permute.xlu0 %1202
        %1205 = vset.pattern.permute.xlu0 0
        %1206 = vperm.xlu0 %1205, %v1080
        %v1207 = vpop.permute.xlu0 %1206
        %1209 = vset.pattern.permute.xlu0 0
        %1210 = vperm.xlu0 %1209, %v1084
        %v1211 = vpop.permute.xlu0 %1210
        %1213 = vset.pattern.permute.xlu0 0
        %1214 = vperm.xlu0 %1213, %v1088
        %v1215 = vpop.permute.xlu0 %1214
        %1217 = vset.pattern.permute.xlu0 0
        %1218 = vperm.xlu0 %1217, %v1092
        %v1219 = vpop.permute.xlu0 %1218
        %1221 = vset.pattern.permute.xlu0 0
        %1222 = vperm.xlu0 %1221, %v1096
        %v1223 = vpop.permute.xlu0 %1222
        %1225 = vset.pattern.permute.xlu0 0
        %1226 = vperm.xlu0 %1225, %v1100
        %v1227 = vpop.permute.xlu0 %1226
        %1229 = vset.pattern.permute.xlu0 0
        %1230 = vperm.xlu0 %1229, %v1104
        %v1231 = vpop.permute.xlu0 %1230
        %1233 = vset.pattern.permute.xlu0 0
        %1234 = vperm.xlu0 %1233, %v1108
        %v1235 = vpop.permute.xlu0 %1234
        %1237 = vset.pattern.permute.xlu0 0
        %1238 = vperm.xlu0 %1237, %v1112
        %v1239 = vpop.permute.xlu0 %1238
        %1241 = vset.pattern.permute.xlu0 0
        %1242 = vperm.xlu0 %1241, %v1116
        %v1243 = vpop.permute.xlu0 %1242
        %1245 = vset.pattern.permute.xlu0 0
        %1246 = vperm.xlu0 %1245, %v1120
        %v1247 = vpop.permute.xlu0 %1246
        %1249 = vset.pattern.permute.xlu0 0
        %1250 = vperm.xlu0 %1249, %v1124
        %v1251 = vpop.permute.xlu0 %1250
        %1253 = vset.pattern.permute.xlu0 0
        %1254 = vperm.xlu0 %1253, %v1128
        %v1255 = vpop.permute.xlu0 %1254
        %1257 = vset.pattern.permute.xlu0 0
        %1258 = vperm.xlu0 %1257, %v1132
        %v1259 = vpop.permute.xlu0 %1258
        %1261 = vset.pattern.permute.xlu0 0
        %1262 = vperm.xlu0 %1261, %v1136
        %v1263 = vpop.permute.xlu0 %1262
        %1265 = vset.pattern.permute.xlu0 0
        %1266 = vperm.xlu0 %1265, %v1140
        %v1267 = vpop.permute.xlu0 %1266
        %1269 = vset.pattern.permute.xlu0 0
        %1270 = vperm.xlu0 %1269, %v1144
        %v1271 = vpop.permute.xlu0 %1270
        %1273 = vset.pattern.permute.xlu0 0
        %1274 = vperm.xlu0 %1273, %v1148
        %v1275 = vpop.permute.xlu0 %1274
        %1277 = vst.msk [vmem:[%s581] sm:$0xff] %vm593, %v1151
        %1278 = vst.msk [vmem:[%s581 + $0x8] sm:$0xff] %vm593, %v1151
        %1279 = vst.msk [vmem:[%s581 + $0x10] sm:$0xff] %vm593, %v1155
        %1280 = vst.msk [vmem:[%s581 + $0x18] sm:$0xff] %vm593, %v1155
        %1281 = vst.msk [vmem:[%s581 + $0x20] sm:$0xff] %vm593, %v1159
        %1282 = vst.msk [vmem:[%s581 + $0x28] sm:$0xff] %vm593, %v1159
        %1283 = vst.msk [vmem:[%s581 + $0x30] sm:$0xff] %vm593, %v1163
        %1284 = vst.msk [vmem:[%s581 + $0x38] sm:$0xff] %vm593, %v1163
        %1285 = vst.msk [vmem:[%s581 + $0x40] sm:$0xff] %vm593, %v1167
        %1286 = vst.msk [vmem:[%s581 + $0x48] sm:$0xff] %vm593, %v1167
        %1287 = vst.msk [vmem:[%s581 + $0x50] sm:$0xff] %vm593, %v1171
        %1288 = vst.msk [vmem:[%s581 + $0x58] sm:$0xff] %vm593, %v1171
        %1289 = vst.msk [vmem:[%s581 + $0x60] sm:$0xff] %vm593, %v1175
        %1290 = vst.msk [vmem:[%s581 + $0x68] sm:$0xff] %vm593, %v1175
        %1291 = vst.msk [vmem:[%s581 + $0x70] sm:$0xff] %vm593, %v1179
        %1292 = vst.msk [vmem:[%s581 + $0x78] sm:$0xff] %vm593, %v1179
        %1293 = vst.msk [vmem:[%s581 + $0x80] sm:$0xff] %vm593, %v1183
        %1294 = vst.msk [vmem:[%s581 + $0x88] sm:$0xff] %vm593, %v1183
        %1295 = vst.msk [vmem:[%s581 + $0x90] sm:$0xff] %vm593, %v1187
        %1296 = vst.msk [vmem:[%s581 + $0x98] sm:$0xff] %vm593, %v1187
        %1297 = vst.msk [vmem:[%s581 + $0xa0] sm:$0xff] %vm593, %v1191
        %1298 = vst.msk [vmem:[%s581 + $0xa8] sm:$0xff] %vm593, %v1191
        %1299 = vst.msk [vmem:[%s581 + $0xb0] sm:$0xff] %vm593, %v1195
        %1300 = vst.msk [vmem:[%s581 + $0xb8] sm:$0xff] %vm593, %v1195
        %1301 = vst.msk [vmem:[%s581 + $0xc0] sm:$0xff] %vm593, %v1199
        %1302 = vst.msk [vmem:[%s581 + $0xc8] sm:$0xff] %vm593, %v1199
        %1303 = vst.msk [vmem:[%s581 + $0xd0] sm:$0xff] %vm593, %v1203
        %1304 = vst.msk [vmem:[%s581 + $0xd8] sm:$0xff] %vm593, %v1203
        %1305 = vst.msk [vmem:[%s581 + $0xe0] sm:$0xff] %vm593, %v1207
        %1306 = vst.msk [vmem:[%s581 + $0xe8] sm:$0xff] %vm593, %v1207
        %1307 = vst.msk [vmem:[%s581 + $0xf0] sm:$0xff] %vm593, %v1211
        %1308 = vst.msk [vmem:[%s581 + $0xf8] sm:$0xff] %vm593, %v1211
        %1309 = vst.msk [vmem:[%s581 + $0x100] sm:$0xff] %vm593, %v1215
        %1310 = vst.msk [vmem:[%s581 + $0x108] sm:$0xff] %vm593, %v1215
        %1311 = vst.msk [vmem:[%s581 + $0x110] sm:$0xff] %vm593, %v1219
        %1312 = vst.msk [vmem:[%s581 + $0x118] sm:$0xff] %vm593, %v1219
        %1313 = vst.msk [vmem:[%s581 + $0x120] sm:$0xff] %vm593, %v1223
        %1314 = vst.msk [vmem:[%s581 + $0x128] sm:$0xff] %vm593, %v1223
        %1315 = vst.msk [vmem:[%s581 + $0x130] sm:$0xff] %vm593, %v1227
        %1316 = vst.msk [vmem:[%s581 + $0x138] sm:$0xff] %vm593, %v1227
        %1317 = vst.msk [vmem:[%s581 + $0x140] sm:$0xff] %vm593, %v1231
        %1318 = vst.msk [vmem:[%s581 + $0x148] sm:$0xff] %vm593, %v1231
        %1319 = vst.msk [vmem:[%s581 + $0x150] sm:$0xff] %vm593, %v1235
        %1320 = vst.msk [vmem:[%s581 + $0x158] sm:$0xff] %vm593, %v1235
        %1321 = vst.msk [vmem:[%s581 + $0x160] sm:$0xff] %vm593, %v1239
        %1322 = vst.msk [vmem:[%s581 + $0x168] sm:$0xff] %vm593, %v1239
        %1323 = vst.msk [vmem:[%s581 + $0x170] sm:$0xff] %vm593, %v1243
        %1324 = vst.msk [vmem:[%s581 + $0x178] sm:$0xff] %vm593, %v1243
        %1325 = vst.msk [vmem:[%s581 + $0x180] sm:$0xff] %vm593, %v1247
        %1326 = vst.msk [vmem:[%s581 + $0x188] sm:$0xff] %vm593, %v1247
        %1327 = vst.msk [vmem:[%s581 + $0x190] sm:$0xff] %vm593, %v1251
        %1328 = vst.msk [vmem:[%s581 + $0x198] sm:$0xff] %vm593, %v1251
        %1329 = vst.msk [vmem:[%s581 + $0x1a0] sm:$0xff] %vm593, %v1255
        %1330 = vst.msk [vmem:[%s581 + $0x1a8] sm:$0xff] %vm593, %v1255
        %1331 = vst.msk [vmem:[%s581 + $0x1b0] sm:$0xff] %vm593, %v1259
        %1332 = vst.msk [vmem:[%s581 + $0x1b8] sm:$0xff] %vm593, %v1259
        %1333 = vst.msk [vmem:[%s581 + $0x1c0] sm:$0xff] %vm593, %v1263
        %1334 = vst.msk [vmem:[%s581 + $0x1c8] sm:$0xff] %vm593, %v1263
        %1335 = vst.msk [vmem:[%s581 + $0x1d0] sm:$0xff] %vm593, %v1267
        %1336 = vst.msk [vmem:[%s581 + $0x1d8] sm:$0xff] %vm593, %v1267
        %1337 = vst.msk [vmem:[%s581 + $0x1e0] sm:$0xff] %vm593, %v1271
        %1338 = vst.msk [vmem:[%s581 + $0x1e8] sm:$0xff] %vm593, %v1271
        %1339 = vst.msk [vmem:[%s581 + $0x1f0] sm:$0xff] %vm593, %v1275
        %1340 = vst.msk [vmem:[%s581 + $0x1f8] sm:$0xff] %vm593, %v1275
        %vm1341 = vcmask 31744
        %v1343 = vsel %vm1341, %v955, 0
        %v1346 = vsel %vm1341, %v956, 0
        %vm1348 = vcmask 1043456
        %v1350 = vsel %vm1348, %v947, 0
        %1352 = vmatprep.subr.mxu0 0.0
        %1353 = vmatpush1.msra.mxu0 %v1350
        %1354 = vmatprep.subr.mxu0 0.0
        %1355 = vmatpush1.msra.mxu0 0.0
        %1356 = vmatprep.subr.mxu0 0.0
        %1357 = vmatpush1.msra.mxu0 0.0
        %1358 = vmatprep.subr.mxu0 0.0
        %1359 = vmatpush1.msra.mxu0 0.0
        %1360 = vmatprep.subr.mxu0 0.0
        %1361 = vmatpush1.msra.mxu0 0.0
        %1362 = vmatprep.subr.mxu0 0.0
        %1363 = vmatpush1.msra.mxu0 0.0
        %1364 = vmatprep.subr.mxu0 0.0
        %1365 = vmatpush1.msra.mxu0 0.0
        %1366 = vmatprep.subr.mxu0 0.0
        %1367 = vmatpush1.msra.mxu0 0.0
        %1368 = vmatprep.subr.mxu0 0.0
        %1369 = vmatpush1.msra.mxu0 0.0
        %1370 = vmatprep.subr.mxu0 0.0
        %1371 = vmatpush1.msra.mxu0 0.0
        %1372 = vmatprep.subr.mxu0 0.0
        %1373 = vmatpush1.msra.mxu0 0.0
        %1374 = vmatprep.subr.mxu0 0.0
        %1375 = vmatpush1.msra.mxu0 0.0
        %1376 = vmatprep.subr.mxu0 0.0
        %1377 = vmatpush1.msra.mxu0 0.0
        %1378 = vmatprep.subr.mxu0 0.0
        %1379 = vmatpush1.msra.mxu0 0.0
        %1380 = vmatprep.subr.mxu0 0.0
        %1381 = vmatpush1.msra.mxu0 0.0
        %1382 = vmatprep.subr.mxu0 0.0
        %1383 = vmatpush1.msra.mxu0 0.0
        %1384 = vmatprep.subr.mxu0 0.0
        %1385 = vmatpush1.msra.mxu0 0.0
        %1386 = vmatprep.subr.mxu0 0.0
        %1387 = vmatpush1.msra.mxu0 0.0
        %1388 = vmatprep.subr.mxu0 0.0
        %1389 = vmatpush1.msra.mxu0 0.0
        %1390 = vmatprep.subr.mxu0 0.0
        %1391 = vmatpush1.msra.mxu0 0.0
        %1392 = vmatprep.subr.mxu0 0.0
        %1393 = vmatpush1.msra.mxu0 0.0
        %1394 = vmatprep.subr.mxu0 0.0
        %1395 = vmatpush1.msra.mxu0 0.0
        %1396 = vmatprep.subr.mxu0 0.0
        %1397 = vmatpush1.msra.mxu0 0.0
        %1398 = vmatprep.subr.mxu0 0.0
        %1399 = vmatpush1.msra.mxu0 0.0
        %1400 = vmatprep.subr.mxu0 0.0
        %1401 = vmatpush1.msra.mxu0 0.0
        %1402 = vmatprep.subr.mxu0 0.0
        %1403 = vmatpush1.msra.mxu0 0.0
        %1404 = vmatprep.subr.mxu0 0.0
        %1405 = vmatpush1.msra.mxu0 0.0
        %1406 = vmatprep.subr.mxu0 0.0
        %1407 = vmatpush1.msra.mxu0 0.0
        %1408 = vmatprep.subr.mxu0 0.0
        %1409 = vmatpush1.msra.mxu0 0.0
        %1410 = vmatprep.subr.mxu0 0.0
        %1411 = vmatpush1.msra.mxu0 0.0
        %1412 = vmatprep.subr.mxu0 0.0
        %1413 = vmatpush1.msra.mxu0 0.0
        %1414 = vmatprep.subr.mxu0 0.0
        %1415 = vmatpush1.msra.mxu0 0.0
        %1416 = vmatprep.mubr.f32.mxu0 0.0
        %1417 = vmatmul.mubr.f32.gmra.mrb[0].mxu0 %v1343
        %v1418 = vpop.f32.mrb[0].mxu0
        %v1419 = vadd.f32 0.0, %v1418
        %v1420 = vpop.f32.mrb[0].mxu0
        %1421 = vmatprep.mubr.f32.mxu0 0.0
        %1422 = vmatmul.mubr.f32.gmra.mrb[0].mxu0 %v1346
        %v1423 = vpop.f32.mrb[0].mxu0
        %v1424 = vadd.f32 0.0, %v1423
        %v1425 = vpop.f32.mrb[0].mxu0
        %1426 = vdwg.mxu0
        %1427 = vxpose.xlu0.b32.start [1/16] %v1419, 128
        %1428 = vxpose.xlu0.b32.cont [2/16] %v1424, 128
        %1429 = vxpose.xlu0.b32.cont [3/16] 0.0, 128
        %1430 = vxpose.xlu0.b32.cont [4/16] 0.0, 128
        %1431 = vxpose.xlu0.b32.cont [5/16] 0.0, 128
        %1432 = vxpose.xlu0.b32.cont [6/16] 0.0, 128
        %1433 = vxpose.xlu0.b32.cont [7/16] 0.0, 128
        %1434 = vxpose.xlu0.b32.cont [8/16] 0.0, 128
        %1435 = vxpose.xlu0.b32.cont [9/16] 0.0, 128
        %1436 = vxpose.xlu0.b32.cont [10/16] 0.0, 128
        %1437 = vxpose.xlu0.b32.cont [11/16] 0.0, 128
        %1438 = vxpose.xlu0.b32.cont [12/16] 0.0, 128
        %1439 = vxpose.xlu0.b32.cont [13/16] 0.0, 128
        %1440 = vxpose.xlu0.b32.cont [14/16] 0.0, 128
        %1441 = vxpose.xlu0.b32.cont [15/16] 0.0, 128
        %1442 = vxpose.xlu0.b32.end [16/16] 0.0, 128
        %v1443 = vpop.trf.xlu0
        %v1444 = vpop.trf.xlu0
        %v1445 = vpop.trf.xlu0
        %v1446 = vpop.trf.xlu0
        %v1447 = vpop.trf.xlu0
        %v1448 = vpop.trf.xlu0
        %v1449 = vpop.trf.xlu0
        %v1450 = vpop.trf.xlu0
        %v1451 = vpop.trf.xlu0
        %v1452 = vpop.trf.xlu0
        %v1453 = vpop.trf.xlu0
        %v1454 = vpop.trf.xlu0
        %v1455 = vpop.trf.xlu0
        %v1456 = vpop.trf.xlu0
        %v1457 = vpop.trf.xlu0
        %v1458 = vpop.trf.xlu0
        %v1459 = vld [vmem:[#allocation19] sm:$0xff]
        %v1460 = vld [vmem:[#allocation19 + $0x8] sm:$0xff]
        %v1461 = vld [vmem:[%s581] sm:$0xff]
        %v1462 = vld [vmem:[%s581 + $0x8] sm:$0xff]
        %v1463 = vld [vmem:[%s581 + $0x10] sm:$0xff]
        %v1464 = vld [vmem:[%s581 + $0x18] sm:$0xff]
        %v1465 = vld [vmem:[%s581 + $0x20] sm:$0xff]
        %v1466 = vld [vmem:[%s581 + $0x28] sm:$0xff]
        %v1467 = vld [vmem:[%s581 + $0x30] sm:$0xff]
        %v1468 = vld [vmem:[%s581 + $0x38] sm:$0xff]
        %v1469 = vld [vmem:[%s581 + $0x40] sm:$0xff]
        %v1470 = vld [vmem:[%s581 + $0x48] sm:$0xff]
        %v1471 = vld [vmem:[%s581 + $0x50] sm:$0xff]
        %v1472 = vld [vmem:[%s581 + $0x58] sm:$0xff]
        %v1473 = vld [vmem:[%s581 + $0x60] sm:$0xff]
        %v1474 = vld [vmem:[%s581 + $0x68] sm:$0xff]
        %v1475 = vld [vmem:[%s581 + $0x70] sm:$0xff]
        %v1476 = vld [vmem:[%s581 + $0x78] sm:$0xff]
        %v1477 = vld [vmem:[%s581 + $0x80] sm:$0xff]
        %v1478 = vld [vmem:[%s581 + $0x88] sm:$0xff]
        %v1479 = vld [vmem:[%s581 + $0x90] sm:$0xff]
        %v1480 = vld [vmem:[%s581 + $0x98] sm:$0xff]
        %v1481 = vld [vmem:[%s581 + $0xa0] sm:$0xff]
        %v1482 = vld [vmem:[%s581 + $0xa8] sm:$0xff]
        %v1483 = vld [vmem:[%s581 + $0xb0] sm:$0xff]
        %v1484 = vld [vmem:[%s581 + $0xb8] sm:$0xff]
        %v1485 = vld [vmem:[%s581 + $0xc0] sm:$0xff]
        %v1486 = vld [vmem:[%s581 + $0xc8] sm:$0xff]
        %v1487 = vld [vmem:[%s581 + $0xd0] sm:$0xff]
        %v1488 = vld [vmem:[%s581 + $0xd8] sm:$0xff]
        %v1489 = vld [vmem:[%s581 + $0xe0] sm:$0xff]
        %v1490 = vld [vmem:[%s581 + $0xe8] sm:$0xff]
        %v1491 = vld [vmem:[%s581 + $0xf0] sm:$0xff]
        %v1492 = vld [vmem:[%s581 + $0xf8] sm:$0xff]
        %v1493 = vld [vmem:[%s581 + $0x100] sm:$0xff]
        %v1494 = vld [vmem:[%s581 + $0x108] sm:$0xff]
        %v1495 = vld [vmem:[%s581 + $0x110] sm:$0xff]
        %v1496 = vld [vmem:[%s581 + $0x118] sm:$0xff]
        %v1497 = vld [vmem:[%s581 + $0x120] sm:$0xff]
        %v1498 = vld [vmem:[%s581 + $0x128] sm:$0xff]
        %v1499 = vld [vmem:[%s581 + $0x130] sm:$0xff]
        %v1500 = vld [vmem:[%s581 + $0x138] sm:$0xff]
        %v1501 = vld [vmem:[%s581 + $0x140] sm:$0xff]
        %v1502 = vld [vmem:[%s581 + $0x148] sm:$0xff]
        %v1503 = vld [vmem:[%s581 + $0x150] sm:$0xff]
        %v1504 = vld [vmem:[%s581 + $0x158] sm:$0xff]
        %v1505 = vld [vmem:[%s581 + $0x160] sm:$0xff]
        %v1506 = vld [vmem:[%s581 + $0x168] sm:$0xff]
        %v1507 = vld [vmem:[%s581 + $0x170] sm:$0xff]
        %v1508 = vld [vmem:[%s581 + $0x178] sm:$0xff]
        %v1509 = vld [vmem:[%s581 + $0x180] sm:$0xff]
        %v1510 = vld [vmem:[%s581 + $0x188] sm:$0xff]
        %v1511 = vld [vmem:[%s581 + $0x190] sm:$0xff]
        %v1512 = vld [vmem:[%s581 + $0x198] sm:$0xff]
        %v1513 = vld [vmem:[%s581 + $0x1a0] sm:$0xff]
        %v1514 = vld [vmem:[%s581 + $0x1a8] sm:$0xff]
        %v1515 = vld [vmem:[%s581 + $0x1b0] sm:$0xff]
        %v1516 = vld [vmem:[%s581 + $0x1b8] sm:$0xff]
        %v1517 = vld [vmem:[%s581 + $0x1c0] sm:$0xff]
        %v1518 = vld [vmem:[%s581 + $0x1c8] sm:$0xff]
        %v1519 = vld [vmem:[%s581 + $0x1d0] sm:$0xff]
        %v1520 = vld [vmem:[%s581 + $0x1d8] sm:$0xff]
        %v1521 = vld [vmem:[%s581 + $0x1e0] sm:$0xff]
        %v1522 = vld [vmem:[%s581 + $0x1e8] sm:$0xff]
        %v1523 = vld [vmem:[%s581 + $0x1f0] sm:$0xff]
        %v1524 = vld [vmem:[%s581 + $0x1f8] sm:$0xff]
        %v1529 = vcombine.high %v1443, %v1443
        %v1531 = vunpack.c.l.s4 1966171168
        %v1532 = vunpack.c.0.s8 %v1531
        %v1533 = vlaneseq
        %v1534 = vshrl.u32 %v1533, 7
        %v1535 = vsub.s32 %v1532, %v1534
        %v1536 = vrot.slane %v1443, %v1535
        %v1538 = vunpack.c.l.s4 1966171168
        %v1539 = vunpack.c.0.s8 %v1538
        %v1540 = vlaneseq
        %v1541 = vshrl.u32 %v1540, 7
        %v1542 = vsub.s32 %v1539, %v1541
        %v1543 = vrot.slane %v1529, %v1542
        %v1544 = vcombine.high %v1536, %v1536
        %v1545 = vcombine.high %v1543, %v1543
        %v1547 = vunpack.c.l.s4 1966171168
        %v1548 = vunpack.c.0.s8 %v1547
        %v1549 = vlaneseq
        %v1550 = vshrl.u32 %v1549, 7
        %v1551 = vsub.s32 %v1548, %v1550
        %v1552 = vrot.slane %v1536, %v1551
        %v1554 = vunpack.c.l.s4 1966171168
        %v1555 = vunpack.c.0.s8 %v1554
        %v1556 = vlaneseq
        %v1557 = vshrl.u32 %v1556, 7
        %v1558 = vsub.s32 %v1555, %v1557
        %v1559 = vrot.slane %v1543, %v1558
        %v1561 = vunpack.c.l.s4 1966171168
        %v1562 = vunpack.c.0.s8 %v1561
        %v1563 = vlaneseq
        %v1564 = vshrl.u32 %v1563, 7
        %v1565 = vsub.s32 %v1562, %v1564
        %v1566 = vrot.slane %v1544, %v1565
        %v1568 = vunpack.c.l.s4 1966171168
        %v1569 = vunpack.c.0.s8 %v1568
        %v1570 = vlaneseq
        %v1571 = vshrl.u32 %v1570, 7
        %v1572 = vsub.s32 %v1569, %v1571
        %v1573 = vrot.slane %v1545, %v1572
        %v1574 = vcombine.high %v1552, %v1552
        %v1575 = vcombine.high %v1559, %v1559
        %v1576 = vcombine.high %v1566, %v1566
        %v1577 = vcombine.high %v1573, %v1573
        %v1578 = vcombine.high %v1444, %v1444
        %v1580 = vunpack.c.l.s4 1966171168
        %v1581 = vunpack.c.0.s8 %v1580
        %v1582 = vlaneseq
        %v1583 = vshrl.u32 %v1582, 7
        %v1584 = vsub.s32 %v1581, %v1583
        %v1585 = vrot.slane %v1444, %v1584
        %v1587 = vunpack.c.l.s4 1966171168
        %v1588 = vunpack.c.0.s8 %v1587
        %v1589 = vlaneseq
        %v1590 = vshrl.u32 %v1589, 7
        %v1591 = vsub.s32 %v1588, %v1590
        %v1592 = vrot.slane %v1578, %v1591
        %v1593 = vcombine.high %v1585, %v1585
        %v1594 = vcombine.high %v1592, %v1592
        %v1596 = vunpack.c.l.s4 1966171168
        %v1597 = vunpack.c.0.s8 %v1596
        %v1598 = vlaneseq
        %v1599 = vshrl.u32 %v1598, 7
        %v1600 = vsub.s32 %v1597, %v1599
        %v1601 = vrot.slane %v1585, %v1600
        %v1603 = vunpack.c.l.s4 1966171168
        %v1604 = vunpack.c.0.s8 %v1603
        %v1605 = vlaneseq
        %v1606 = vshrl.u32 %v1605, 7
        %v1607 = vsub.s32 %v1604, %v1606
        %v1608 = vrot.slane %v1592, %v1607
        %v1610 = vunpack.c.l.s4 1966171168
        %v1611 = vunpack.c.0.s8 %v1610
        %v1612 = vlaneseq
        %v1613 = vshrl.u32 %v1612, 7
        %v1614 = vsub.s32 %v1611, %v1613
        %v1615 = vrot.slane %v1593, %v1614
        %v1617 = vunpack.c.l.s4 1966171168
        %v1618 = vunpack.c.0.s8 %v1617
        %v1619 = vlaneseq
        %v1620 = vshrl.u32 %v1619, 7
        %v1621 = vsub.s32 %v1618, %v1620
        %v1622 = vrot.slane %v1594, %v1621
        %v1623 = vcombine.high %v1601, %v1601
        %v1624 = vcombine.high %v1608, %v1608
        %v1625 = vcombine.high %v1615, %v1615
        %v1626 = vcombine.high %v1622, %v1622
        %v1627 = vcombine.high %v1445, %v1445
        %v1629 = vunpack.c.l.s4 1966171168
        %v1630 = vunpack.c.0.s8 %v1629
        %v1631 = vlaneseq
        %v1632 = vshrl.u32 %v1631, 7
        %v1633 = vsub.s32 %v1630, %v1632
        %v1634 = vrot.slane %v1445, %v1633
        %v1636 = vunpack.c.l.s4 1966171168
        %v1637 = vunpack.c.0.s8 %v1636
        %v1638 = vlaneseq
        %v1639 = vshrl.u32 %v1638, 7
        %v1640 = vsub.s32 %v1637, %v1639
        %v1641 = vrot.slane %v1627, %v1640
        %v1642 = vcombine.high %v1634, %v1634
        %v1643 = vcombine.high %v1641, %v1641
        %v1645 = vunpack.c.l.s4 1966171168
        %v1646 = vunpack.c.0.s8 %v1645
        %v1647 = vlaneseq
        %v1648 = vshrl.u32 %v1647, 7
        %v1649 = vsub.s32 %v1646, %v1648
        %v1650 = vrot.slane %v1634, %v1649
        %v1652 = vunpack.c.l.s4 1966171168
        %v1653 = vunpack.c.0.s8 %v1652
        %v1654 = vlaneseq
        %v1655 = vshrl.u32 %v1654, 7
        %v1656 = vsub.s32 %v1653, %v1655
        %v1657 = vrot.slane %v1641, %v1656
        %v1659 = vunpack.c.l.s4 1966171168
        %v1660 = vunpack.c.0.s8 %v1659
        %v1661 = vlaneseq
        %v1662 = vshrl.u32 %v1661, 7
        %v1663 = vsub.s32 %v1660, %v1662
        %v1664 = vrot.slane %v1642, %v1663
        %v1666 = vunpack.c.l.s4 1966171168
        %v1667 = vunpack.c.0.s8 %v1666
        %v1668 = vlaneseq
        %v1669 = vshrl.u32 %v1668, 7
        %v1670 = vsub.s32 %v1667, %v1669
        %v1671 = vrot.slane %v1643, %v1670
        %v1672 = vcombine.high %v1650, %v1650
        %v1673 = vcombine.high %v1657, %v1657
        %v1674 = vcombine.high %v1664, %v1664
        %v1675 = vcombine.high %v1671, %v1671
        %v1676 = vcombine.high %v1446, %v1446
        %v1678 = vunpack.c.l.s4 1966171168
        %v1679 = vunpack.c.0.s8 %v1678
        %v1680 = vlaneseq
        %v1681 = vshrl.u32 %v1680, 7
        %v1682 = vsub.s32 %v1679, %v1681
        %v1683 = vrot.slane %v1446, %v1682
        %v1685 = vunpack.c.l.s4 1966171168
        %v1686 = vunpack.c.0.s8 %v1685
        %v1687 = vlaneseq
        %v1688 = vshrl.u32 %v1687, 7
        %v1689 = vsub.s32 %v1686, %v1688
        %v1690 = vrot.slane %v1676, %v1689
        %v1691 = vcombine.high %v1683, %v1683
        %v1692 = vcombine.high %v1690, %v1690
        %v1694 = vunpack.c.l.s4 1966171168
        %v1695 = vunpack.c.0.s8 %v1694
        %v1696 = vlaneseq
        %v1697 = vshrl.u32 %v1696, 7
        %v1698 = vsub.s32 %v1695, %v1697
        %v1699 = vrot.slane %v1683, %v1698
        %v1701 = vunpack.c.l.s4 1966171168
        %v1702 = vunpack.c.0.s8 %v1701
        %v1703 = vlaneseq
        %v1704 = vshrl.u32 %v1703, 7
        %v1705 = vsub.s32 %v1702, %v1704
        %v1706 = vrot.slane %v1690, %v1705
        %v1708 = vunpack.c.l.s4 1966171168
        %v1709 = vunpack.c.0.s8 %v1708
        %v1710 = vlaneseq
        %v1711 = vshrl.u32 %v1710, 7
        %v1712 = vsub.s32 %v1709, %v1711
        %v1713 = vrot.slane %v1691, %v1712
        %v1715 = vunpack.c.l.s4 1966171168
        %v1716 = vunpack.c.0.s8 %v1715
        %v1717 = vlaneseq
        %v1718 = vshrl.u32 %v1717, 7
        %v1719 = vsub.s32 %v1716, %v1718
        %v1720 = vrot.slane %v1692, %v1719
        %v1721 = vcombine.high %v1699, %v1699
        %v1722 = vcombine.high %v1706, %v1706
        %v1723 = vcombine.high %v1713, %v1713
        %v1724 = vcombine.high %v1720, %v1720
        %1726 = vset.pattern.permute.xlu0 0
        %1727 = vperm.xlu0 %1726, %v1459
        %v1728 = vpop.permute.xlu0 %1727
        %1731 = vset.pattern.permute.xlu0 0
        %1732 = vperm.xlu0 %1731, %v1460
        %v1733 = vpop.permute.xlu0 %1732
        %v1735 = vlaneseq
        %v1736 = vshrl.u32 %v1735, 7
        %v1737 = vsub.s32 0, %v1736
        %v1738 = vrot.slane %v1552, %v1737
        %v1739 = vlaneseq
        %v1740 = vshrl.u32 %v1739, 7
        %v1741 = vsub.s32 0, %v1740
        %v1742 = vrot.slane %v1566, %v1741
        %v1743 = vlaneseq
        %v1744 = vshrl.u32 %v1743, 7
        %v1745 = vsub.s32 0, %v1744
        %v1746 = vrot.slane %v1574, %v1745
        %v1747 = vlaneseq
        %v1748 = vshrl.u32 %v1747, 7
        %v1749 = vsub.s32 0, %v1748
        %v1750 = vrot.slane %v1576, %v1749
        %v1751 = vlaneseq
        %v1752 = vshrl.u32 %v1751, 7
        %v1753 = vsub.s32 0, %v1752
        %v1754 = vrot.slane %v1559, %v1753
        %v1755 = vlaneseq
        %v1756 = vshrl.u32 %v1755, 7
        %v1757 = vsub.s32 0, %v1756
        %v1758 = vrot.slane %v1573, %v1757
        %v1759 = vlaneseq
        %v1760 = vshrl.u32 %v1759, 7
        %v1761 = vsub.s32 0, %v1760
        %v1762 = vrot.slane %v1575, %v1761
        %v1763 = vlaneseq
        %v1764 = vshrl.u32 %v1763, 7
        %v1765 = vsub.s32 0, %v1764
        %v1766 = vrot.slane %v1577, %v1765
        %v1767 = vlaneseq
        %v1768 = vshrl.u32 %v1767, 7
        %v1769 = vsub.s32 0, %v1768
        %v1770 = vrot.slane %v1601, %v1769
        %v1771 = vlaneseq
        %v1772 = vshrl.u32 %v1771, 7
        %v1773 = vsub.s32 0, %v1772
        %v1774 = vrot.slane %v1615, %v1773
        %v1775 = vlaneseq
        %v1776 = vshrl.u32 %v1775, 7
        %v1777 = vsub.s32 0, %v1776
        %v1778 = vrot.slane %v1623, %v1777
        %v1779 = vlaneseq
        %v1780 = vshrl.u32 %v1779, 7
        %v1781 = vsub.s32 0, %v1780
        %v1782 = vrot.slane %v1625, %v1781
        %v1783 = vlaneseq
        %v1784 = vshrl.u32 %v1783, 7
        %v1785 = vsub.s32 0, %v1784
        %v1786 = vrot.slane %v1608, %v1785
        %v1787 = vlaneseq
        %v1788 = vshrl.u32 %v1787, 7
        %v1789 = vsub.s32 0, %v1788
        %v1790 = vrot.slane %v1622, %v1789
        %v1791 = vlaneseq
        %v1792 = vshrl.u32 %v1791, 7
        %v1793 = vsub.s32 0, %v1792
        %v1794 = vrot.slane %v1624, %v1793
        %v1795 = vlaneseq
        %v1796 = vshrl.u32 %v1795, 7
        %v1797 = vsub.s32 0, %v1796
        %v1798 = vrot.slane %v1626, %v1797
        %v1799 = vlaneseq
        %v1800 = vshrl.u32 %v1799, 7
        %v1801 = vsub.s32 0, %v1800
        %v1802 = vrot.slane %v1650, %v1801
        %v1803 = vlaneseq
        %v1804 = vshrl.u32 %v1803, 7
        %v1805 = vsub.s32 0, %v1804
        %v1806 = vrot.slane %v1664, %v1805
        %v1807 = vlaneseq
        %v1808 = vshrl.u32 %v1807, 7
        %v1809 = vsub.s32 0, %v1808
        %v1810 = vrot.slane %v1672, %v1809
        %v1811 = vlaneseq
        %v1812 = vshrl.u32 %v1811, 7
        %v1813 = vsub.s32 0, %v1812
        %v1814 = vrot.slane %v1674, %v1813
        %v1815 = vlaneseq
        %v1816 = vshrl.u32 %v1815, 7
        %v1817 = vsub.s32 0, %v1816
        %v1818 = vrot.slane %v1657, %v1817
        %v1819 = vlaneseq
        %v1820 = vshrl.u32 %v1819, 7
        %v1821 = vsub.s32 0, %v1820
        %v1822 = vrot.slane %v1671, %v1821
        %v1823 = vlaneseq
        %v1824 = vshrl.u32 %v1823, 7
        %v1825 = vsub.s32 0, %v1824
        %v1826 = vrot.slane %v1673, %v1825
        %v1827 = vlaneseq
        %v1828 = vshrl.u32 %v1827, 7
        %v1829 = vsub.s32 0, %v1828
        %v1830 = vrot.slane %v1675, %v1829
        %v1831 = vlaneseq
        %v1832 = vshrl.u32 %v1831, 7
        %v1833 = vsub.s32 0, %v1832
        %v1834 = vrot.slane %v1699, %v1833
        %v1835 = vlaneseq
        %v1836 = vshrl.u32 %v1835, 7
        %v1837 = vsub.s32 0, %v1836
        %v1838 = vrot.slane %v1713, %v1837
        %v1839 = vlaneseq
        %v1840 = vshrl.u32 %v1839, 7
        %v1841 = vsub.s32 0, %v1840
        %v1842 = vrot.slane %v1721, %v1841
        %v1843 = vlaneseq
        %v1844 = vshrl.u32 %v1843, 7
        %v1845 = vsub.s32 0, %v1844
        %v1846 = vrot.slane %v1723, %v1845
        %v1847 = vlaneseq
        %v1848 = vshrl.u32 %v1847, 7
        %v1849 = vsub.s32 0, %v1848
        %v1850 = vrot.slane %v1706, %v1849
        %v1851 = vlaneseq
        %v1852 = vshrl.u32 %v1851, 7
        %v1853 = vsub.s32 0, %v1852
        %v1854 = vrot.slane %v1720, %v1853
        %v1855 = vlaneseq
        %v1856 = vshrl.u32 %v1855, 7
        %v1857 = vsub.s32 0, %v1856
        %v1858 = vrot.slane %v1722, %v1857
        %v1859 = vlaneseq
        %v1860 = vshrl.u32 %v1859, 7
        %v1861 = vsub.s32 0, %v1860
        %v1862 = vrot.slane %v1724, %v1861
        %v1895 = vmul.f32 %v1728, %v1738
        %v1896 = vmul.f32 %v1733, %v1738
        %v1897 = vmul.f32 %v1728, %v1742
        %v1898 = vmul.f32 %v1733, %v1742
        %v1899 = vmul.f32 %v1728, %v1746
        %v1900 = vmul.f32 %v1733, %v1746
        %v1901 = vmul.f32 %v1728, %v1750
        %v1902 = vmul.f32 %v1733, %v1750
        %v1903 = vmul.f32 %v1728, %v1754
        %v1904 = vmul.f32 %v1733, %v1754
        %v1905 = vmul.f32 %v1728, %v1758
        %v1906 = vmul.f32 %v1733, %v1758
        %v1907 = vmul.f32 %v1728, %v1762
        %v1908 = vmul.f32 %v1733, %v1762
        %v1909 = vmul.f32 %v1728, %v1766
        %v1910 = vmul.f32 %v1733, %v1766
        %v1911 = vmul.f32 %v1728, %v1770
        %v1912 = vmul.f32 %v1733, %v1770
        %v1913 = vmul.f32 %v1728, %v1774
        %v1914 = vmul.f32 %v1733, %v1774
        %v1915 = vmul.f32 %v1728, %v1778
        %v1916 = vmul.f32 %v1733, %v1778
        %v1917 = vmul.f32 %v1728, %v1782
        %v1918 = vmul.f32 %v1733, %v1782
        %v1919 = vmul.f32 %v1728, %v1786
        %v1920 = vmul.f32 %v1733, %v1786
        %v1921 = vmul.f32 %v1728, %v1790
        %v1922 = vmul.f32 %v1733, %v1790
        %v1923 = vmul.f32 %v1728, %v1794
        %v1924 = vmul.f32 %v1733, %v1794
        %v1925 = vmul.f32 %v1728, %v1798
        %v1926 = vmul.f32 %v1733, %v1798
        %v1927 = vmul.f32 %v1728, %v1802
        %v1928 = vmul.f32 %v1733, %v1802
        %v1929 = vmul.f32 %v1728, %v1806
        %v1930 = vmul.f32 %v1733, %v1806
        %v1931 = vmul.f32 %v1728, %v1810
        %v1932 = vmul.f32 %v1733, %v1810
        %v1933 = vmul.f32 %v1728, %v1814
        %v1934 = vmul.f32 %v1733, %v1814
        %v1935 = vmul.f32 %v1728, %v1818
        %v1936 = vmul.f32 %v1733, %v1818
        %v1937 = vmul.f32 %v1728, %v1822
        %v1938 = vmul.f32 %v1733, %v1822
        %v1939 = vmul.f32 %v1728, %v1826
        %v1940 = vmul.f32 %v1733, %v1826
        %v1941 = vmul.f32 %v1728, %v1830
        %v1942 = vmul.f32 %v1733, %v1830
        %v1943 = vmul.f32 %v1728, %v1834
        %v1944 = vmul.f32 %v1733, %v1834
        %v1945 = vmul.f32 %v1728, %v1838
        %v1946 = vmul.f32 %v1733, %v1838
        %v1947 = vmul.f32 %v1728, %v1842
        %v1948 = vmul.f32 %v1733, %v1842
        %v1949 = vmul.f32 %v1728, %v1846
        %v1950 = vmul.f32 %v1733, %v1846
        %v1951 = vmul.f32 %v1728, %v1850
        %v1952 = vmul.f32 %v1733, %v1850
        %v1953 = vmul.f32 %v1728, %v1854
        %v1954 = vmul.f32 %v1733, %v1854
        %v1955 = vmul.f32 %v1728, %v1858
        %v1956 = vmul.f32 %v1733, %v1858
        %v1957 = vmul.f32 %v1728, %v1862
        %v1958 = vmul.f32 %v1733, %v1862
        %v1959 = vadd.f32 %v1461, %v1895
        %v1960 = vadd.f32 %v1462, %v1896
        %v1961 = vadd.f32 %v1463, %v1897
        %v1962 = vadd.f32 %v1464, %v1898
        %v1963 = vadd.f32 %v1465, %v1899
        %v1964 = vadd.f32 %v1466, %v1900
        %v1965 = vadd.f32 %v1467, %v1901
        %v1966 = vadd.f32 %v1468, %v1902
        %v1967 = vadd.f32 %v1469, %v1903
        %v1968 = vadd.f32 %v1470, %v1904
        %v1969 = vadd.f32 %v1471, %v1905
        %v1970 = vadd.f32 %v1472, %v1906
        %v1971 = vadd.f32 %v1473, %v1907
        %v1972 = vadd.f32 %v1474, %v1908
        %v1973 = vadd.f32 %v1475, %v1909
        %v1974 = vadd.f32 %v1476, %v1910
        %v1975 = vadd.f32 %v1477, %v1911
        %v1976 = vadd.f32 %v1478, %v1912
        %v1977 = vadd.f32 %v1479, %v1913
        %v1978 = vadd.f32 %v1480, %v1914
        %v1979 = vadd.f32 %v1481, %v1915
        %v1980 = vadd.f32 %v1482, %v1916
        %v1981 = vadd.f32 %v1483, %v1917
        %v1982 = vadd.f32 %v1484, %v1918
        %v1983 = vadd.f32 %v1485, %v1919
        %v1984 = vadd.f32 %v1486, %v1920
        %v1985 = vadd.f32 %v1487, %v1921
        %v1986 = vadd.f32 %v1488, %v1922
        %v1987 = vadd.f32 %v1489, %v1923
        %v1988 = vadd.f32 %v1490, %v1924
        %v1989 = vadd.f32 %v1491, %v1925
        %v1990 = vadd.f32 %v1492, %v1926
        %v1991 = vadd.f32 %v1493, %v1927
        %v1992 = vadd.f32 %v1494, %v1928
        %v1993 = vadd.f32 %v1495, %v1929
        %v1994 = vadd.f32 %v1496, %v1930
        %v1995 = vadd.f32 %v1497, %v1931
        %v1996 = vadd.f32 %v1498, %v1932
        %v1997 = vadd.f32 %v1499, %v1933
        %v1998 = vadd.f32 %v1500, %v1934
        %v1999 = vadd.f32 %v1501, %v1935
        %v2000 = vadd.f32 %v1502, %v1936
        %v2001 = vadd.f32 %v1503, %v1937
        %v2002 = vadd.f32 %v1504, %v1938
        %v2003 = vadd.f32 %v1505, %v1939
        %v2004 = vadd.f32 %v1506, %v1940
        %v2005 = vadd.f32 %v1507, %v1941
        %v2006 = vadd.f32 %v1508, %v1942
        %v2007 = vadd.f32 %v1509, %v1943
        %v2008 = vadd.f32 %v1510, %v1944
        %v2009 = vadd.f32 %v1511, %v1945
        %v2010 = vadd.f32 %v1512, %v1946
        %v2011 = vadd.f32 %v1513, %v1947
        %v2012 = vadd.f32 %v1514, %v1948
        %v2013 = vadd.f32 %v1515, %v1949
        %v2014 = vadd.f32 %v1516, %v1950
        %v2015 = vadd.f32 %v1517, %v1951
        %v2016 = vadd.f32 %v1518, %v1952
        %v2017 = vadd.f32 %v1519, %v1953
        %v2018 = vadd.f32 %v1520, %v1954
        %v2019 = vadd.f32 %v1521, %v1955
        %v2020 = vadd.f32 %v1522, %v1956
        %v2021 = vadd.f32 %v1523, %v1957
        %v2022 = vadd.f32 %v1524, %v1958
        %2023 = vst.msk [vmem:[%s581] sm:$0xff] %vm593, %v1959
        %2024 = vst.msk [vmem:[%s581 + $0x8] sm:$0xff] %vm593, %v1960
        %2025 = vst.msk [vmem:[%s581 + $0x10] sm:$0xff] %vm593, %v1961
        %2026 = vst.msk [vmem:[%s581 + $0x18] sm:$0xff] %vm593, %v1962
        %2027 = vst.msk [vmem:[%s581 + $0x20] sm:$0xff] %vm593, %v1963
        %2028 = vst.msk [vmem:[%s581 + $0x28] sm:$0xff] %vm593, %v1964
        %2029 = vst.msk [vmem:[%s581 + $0x30] sm:$0xff] %vm593, %v1965
        %2030 = vst.msk [vmem:[%s581 + $0x38] sm:$0xff] %vm593, %v1966
        %2031 = vst.msk [vmem:[%s581 + $0x40] sm:$0xff] %vm593, %v1967
        %2032 = vst.msk [vmem:[%s581 + $0x48] sm:$0xff] %vm593, %v1968
        %2033 = vst.msk [vmem:[%s581 + $0x50] sm:$0xff] %vm593, %v1969
        %2034 = vst.msk [vmem:[%s581 + $0x58] sm:$0xff] %vm593, %v1970
        %2035 = vst.msk [vmem:[%s581 + $0x60] sm:$0xff] %vm593, %v1971
        %2036 = vst.msk [vmem:[%s581 + $0x68] sm:$0xff] %vm593, %v1972
        %2037 = vst.msk [vmem:[%s581 + $0x70] sm:$0xff] %vm593, %v1973
        %2038 = vst.msk [vmem:[%s581 + $0x78] sm:$0xff] %vm593, %v1974
        %2039 = vst.msk [vmem:[%s581 + $0x80] sm:$0xff] %vm593, %v1975
        %2040 = vst.msk [vmem:[%s581 + $0x88] sm:$0xff] %vm593, %v1976
        %2041 = vst.msk [vmem:[%s581 + $0x90] sm:$0xff] %vm593, %v1977
        %2042 = vst.msk [vmem:[%s581 + $0x98] sm:$0xff] %vm593, %v1978
        %2043 = vst.msk [vmem:[%s581 + $0xa0] sm:$0xff] %vm593, %v1979
        %2044 = vst.msk [vmem:[%s581 + $0xa8] sm:$0xff] %vm593, %v1980
        %2045 = vst.msk [vmem:[%s581 + $0xb0] sm:$0xff] %vm593, %v1981
        %2046 = vst.msk [vmem:[%s581 + $0xb8] sm:$0xff] %vm593, %v1982
        %2047 = vst.msk [vmem:[%s581 + $0xc0] sm:$0xff] %vm593, %v1983
        %2048 = vst.msk [vmem:[%s581 + $0xc8] sm:$0xff] %vm593, %v1984
        %2049 = vst.msk [vmem:[%s581 + $0xd0] sm:$0xff] %vm593, %v1985
        %2050 = vst.msk [vmem:[%s581 + $0xd8] sm:$0xff] %vm593, %v1986
        %2051 = vst.msk [vmem:[%s581 + $0xe0] sm:$0xff] %vm593, %v1987
        %2052 = vst.msk [vmem:[%s581 + $0xe8] sm:$0xff] %vm593, %v1988
        %2053 = vst.msk [vmem:[%s581 + $0xf0] sm:$0xff] %vm593, %v1989
        %2054 = vst.msk [vmem:[%s581 + $0xf8] sm:$0xff] %vm593, %v1990
        %2055 = vst.msk [vmem:[%s581 + $0x100] sm:$0xff] %vm593, %v1991
        %2056 = vst.msk [vmem:[%s581 + $0x108] sm:$0xff] %vm593, %v1992
        %2057 = vst.msk [vmem:[%s581 + $0x110] sm:$0xff] %vm593, %v1993
        %2058 = vst.msk [vmem:[%s581 + $0x118] sm:$0xff] %vm593, %v1994
        %2059 = vst.msk [vmem:[%s581 + $0x120] sm:$0xff] %vm593, %v1995
        %2060 = vst.msk [vmem:[%s581 + $0x128] sm:$0xff] %vm593, %v1996
        %2061 = vst.msk [vmem:[%s581 + $0x130] sm:$0xff] %vm593, %v1997
        %2062 = vst.msk [vmem:[%s581 + $0x138] sm:$0xff] %vm593, %v1998
        %2063 = vst.msk [vmem:[%s581 + $0x140] sm:$0xff] %vm593, %v1999
        %2064 = vst.msk [vmem:[%s581 + $0x148] sm:$0xff] %vm593, %v2000
        %2065 = vst.msk [vmem:[%s581 + $0x150] sm:$0xff] %vm593, %v2001
        %2066 = vst.msk [vmem:[%s581 + $0x158] sm:$0xff] %vm593, %v2002
        %2067 = vst.msk [vmem:[%s581 + $0x160] sm:$0xff] %vm593, %v2003
        %2068 = vst.msk [vmem:[%s581 + $0x168] sm:$0xff] %vm593, %v2004
        %2069 = vst.msk [vmem:[%s581 + $0x170] sm:$0xff] %vm593, %v2005
        %2070 = vst.msk [vmem:[%s581 + $0x178] sm:$0xff] %vm593, %v2006
        %2071 = vst.msk [vmem:[%s581 + $0x180] sm:$0xff] %vm593, %v2007
        %2072 = vst.msk [vmem:[%s581 + $0x188] sm:$0xff] %vm593, %v2008
        %2073 = vst.msk [vmem:[%s581 + $0x190] sm:$0xff] %vm593, %v2009
        %2074 = vst.msk [vmem:[%s581 + $0x198] sm:$0xff] %vm593, %v2010
        %2075 = vst.msk [vmem:[%s581 + $0x1a0] sm:$0xff] %vm593, %v2011
        %2076 = vst.msk [vmem:[%s581 + $0x1a8] sm:$0xff] %vm593, %v2012
        %2077 = vst.msk [vmem:[%s581 + $0x1b0] sm:$0xff] %vm593, %v2013
        %2078 = vst.msk [vmem:[%s581 + $0x1b8] sm:$0xff] %vm593, %v2014
        %2079 = vst.msk [vmem:[%s581 + $0x1c0] sm:$0xff] %vm593, %v2015
        %2080 = vst.msk [vmem:[%s581 + $0x1c8] sm:$0xff] %vm593, %v2016
        %2081 = vst.msk [vmem:[%s581 + $0x1d0] sm:$0xff] %vm593, %v2017
        %2082 = vst.msk [vmem:[%s581 + $0x1d8] sm:$0xff] %vm593, %v2018
        %2083 = vst.msk [vmem:[%s581 + $0x1e0] sm:$0xff] %vm593, %v2019
        %2084 = vst.msk [vmem:[%s581 + $0x1e8] sm:$0xff] %vm593, %v2020
        %2085 = vst.msk [vmem:[%s581 + $0x1f0] sm:$0xff] %vm593, %v2021
        %2086 = vst.msk [vmem:[%s581 + $0x1f8] sm:$0xff] %vm593, %v2022
        %v2087 = vrot.slane %v947, 4
        %v2088 = vsel %vm1348, %v2087, 0
        %2090 = vmatprep.subr.mxu0 0.0
        %2091 = vmatpush1.msra.mxu0 %v2088
        %2092 = vmatprep.subr.mxu0 0.0
        %2093 = vmatpush1.msra.mxu0 0.0
        %2094 = vmatprep.subr.mxu0 0.0
        %2095 = vmatpush1.msra.mxu0 0.0
        %2096 = vmatprep.subr.mxu0 0.0
        %2097 = vmatpush1.msra.mxu0 0.0
        %2098 = vmatprep.subr.mxu0 0.0
        %2099 = vmatpush1.msra.mxu0 0.0
        %2100 = vmatprep.subr.mxu0 0.0
        %2101 = vmatpush1.msra.mxu0 0.0
        %2102 = vmatprep.subr.mxu0 0.0
        %2103 = vmatpush1.msra.mxu0 0.0
        %2104 = vmatprep.subr.mxu0 0.0
        %2105 = vmatpush1.msra.mxu0 0.0
        %2106 = vmatprep.subr.mxu0 0.0
        %2107 = vmatpush1.msra.mxu0 0.0
        %2108 = vmatprep.subr.mxu0 0.0
        %2109 = vmatpush1.msra.mxu0 0.0
        %2110 = vmatprep.subr.mxu0 0.0
        %2111 = vmatpush1.msra.mxu0 0.0
        %2112 = vmatprep.subr.mxu0 0.0
        %2113 = vmatpush1.msra.mxu0 0.0
        %2114 = vmatprep.subr.mxu0 0.0
        %2115 = vmatpush1.msra.mxu0 0.0
        %2116 = vmatprep.subr.mxu0 0.0
        %2117 = vmatpush1.msra.mxu0 0.0
        %2118 = vmatprep.subr.mxu0 0.0
        %2119 = vmatpush1.msra.mxu0 0.0
        %2120 = vmatprep.subr.mxu0 0.0
        %2121 = vmatpush1.msra.mxu0 0.0
        %2122 = vmatprep.subr.mxu0 0.0
        %2123 = vmatpush1.msra.mxu0 0.0
        %2124 = vmatprep.subr.mxu0 0.0
        %2125 = vmatpush1.msra.mxu0 0.0
        %2126 = vmatprep.subr.mxu0 0.0
        %2127 = vmatpush1.msra.mxu0 0.0
        %2128 = vmatprep.subr.mxu0 0.0
        %2129 = vmatpush1.msra.mxu0 0.0
        %2130 = vmatprep.subr.mxu0 0.0
        %2131 = vmatpush1.msra.mxu0 0.0
        %2132 = vmatprep.subr.mxu0 0.0
        %2133 = vmatpush1.msra.mxu0 0.0
        %2134 = vmatprep.subr.mxu0 0.0
        %2135 = vmatpush1.msra.mxu0 0.0
        %2136 = vmatprep.subr.mxu0 0.0
        %2137 = vmatpush1.msra.mxu0 0.0
        %2138 = vmatprep.subr.mxu0 0.0
        %2139 = vmatpush1.msra.mxu0 0.0
        %2140 = vmatprep.subr.mxu0 0.0
        %2141 = vmatpush1.msra.mxu0 0.0
        %2142 = vmatprep.subr.mxu0 0.0
        %2143 = vmatpush1.msra.mxu0 0.0
        %2144 = vmatprep.subr.mxu0 0.0
        %2145 = vmatpush1.msra.mxu0 0.0
        %2146 = vmatprep.subr.mxu0 0.0
        %2147 = vmatpush1.msra.mxu0 0.0
        %2148 = vmatprep.subr.mxu0 0.0
        %2149 = vmatpush1.msra.mxu0 0.0
        %2150 = vmatprep.subr.mxu0 0.0
        %2151 = vmatpush1.msra.mxu0 0.0
        %2152 = vmatprep.subr.mxu0 0.0
        %2153 = vmatpush1.msra.mxu0 0.0
        %2154 = vmatprep.mubr.f32.mxu0 0.0
        %2155 = vmatmul.mubr.f32.gmra.mrb[0].mxu0 %v1343
        %v2156 = vpop.f32.mrb[0].mxu0
        %v2157 = vadd.f32 0.0, %v2156
        %v2158 = vpop.f32.mrb[0].mxu0
        %2159 = vmatprep.mubr.f32.mxu0 0.0
        %2160 = vmatmul.mubr.f32.gmra.mrb[0].mxu0 %v1346
        %v2161 = vpop.f32.mrb[0].mxu0
        %v2162 = vadd.f32 0.0, %v2161
        %v2163 = vpop.f32.mrb[0].mxu0
        %2164 = vdwg.mxu0
        %2165 = vxpose.xlu0.b32.start [1/16] %v2157, 128
        %2166 = vxpose.xlu0.b32.cont [2/16] %v2162, 128
        %2167 = vxpose.xlu0.b32.cont [3/16] 0.0, 128
        %2168 = vxpose.xlu0.b32.cont [4/16] 0.0, 128
        %2169 = vxpose.xlu0.b32.cont [5/16] 0.0, 128
        %2170 = vxpose.xlu0.b32.cont [6/16] 0.0, 128
        %2171 = vxpose.xlu0.b32.cont [7/16] 0.0, 128
        %2172 = vxpose.xlu0.b32.cont [8/16] 0.0, 128
        %2173 = vxpose.xlu0.b32.cont [9/16] 0.0, 128
        %2174 = vxpose.xlu0.b32.cont [10/16] 0.0, 128
        %2175 = vxpose.xlu0.b32.cont [11/16] 0.0, 128
        %2176 = vxpose.xlu0.b32.cont [12/16] 0.0, 128
        %2177 = vxpose.xlu0.b32.cont [13/16] 0.0, 128
        %2178 = vxpose.xlu0.b32.cont [14/16] 0.0, 128
        %2179 = vxpose.xlu0.b32.cont [15/16] 0.0, 128
        %2180 = vxpose.xlu0.b32.end [16/16] 0.0, 128
        %v2181 = vpop.trf.xlu0
        %v2182 = vpop.trf.xlu0
        %v2183 = vpop.trf.xlu0
        %v2184 = vpop.trf.xlu0
        %v2185 = vpop.trf.xlu0
        %v2186 = vpop.trf.xlu0
        %v2187 = vpop.trf.xlu0
        %v2188 = vpop.trf.xlu0
        %v2189 = vpop.trf.xlu0
        %v2190 = vpop.trf.xlu0
        %v2191 = vpop.trf.xlu0
        %v2192 = vpop.trf.xlu0
        %v2193 = vpop.trf.xlu0
        %v2194 = vpop.trf.xlu0
        %v2195 = vpop.trf.xlu0
        %v2196 = vpop.trf.xlu0
        %s2197 = scalar_lea.vmem [#allocation19], 16
        %v2198 = vld [vmem:[%s2197] sm:$0xff]
        %v2199 = vld [vmem:[%s2197 + $0x8] sm:$0xff]
        %v2200 = vld [vmem:[%s581] sm:$0xff]
        %v2201 = vld [vmem:[%s581 + $0x8] sm:$0xff]
        %v2202 = vld [vmem:[%s581 + $0x10] sm:$0xff]
        %v2203 = vld [vmem:[%s581 + $0x18] sm:$0xff]
        %v2204 = vld [vmem:[%s581 + $0x20] sm:$0xff]
        %v2205 = vld [vmem:[%s581 + $0x28] sm:$0xff]
        %v2206 = vld [vmem:[%s581 + $0x30] sm:$0xff]
        %v2207 = vld [vmem:[%s581 + $0x38] sm:$0xff]
        %v2208 = vld [vmem:[%s581 + $0x40] sm:$0xff]
        %v2209 = vld [vmem:[%s581 + $0x48] sm:$0xff]
        %v2210 = vld [vmem:[%s581 + $0x50] sm:$0xff]
        %v2211 = vld [vmem:[%s581 + $0x58] sm:$0xff]
        %v2212 = vld [vmem:[%s581 + $0x60] sm:$0xff]
        %v2213 = vld [vmem:[%s581 + $0x68] sm:$0xff]
        %v2214 = vld [vmem:[%s581 + $0x70] sm:$0xff]
        %v2215 = vld [vmem:[%s581 + $0x78] sm:$0xff]
        %v2216 = vld [vmem:[%s581 + $0x80] sm:$0xff]
        %v2217 = vld [vmem:[%s581 + $0x88] sm:$0xff]
        %v2218 = vld [vmem:[%s581 + $0x90] sm:$0xff]
        %v2219 = vld [vmem:[%s581 + $0x98] sm:$0xff]
        %v2220 = vld [vmem:[%s581 + $0xa0] sm:$0xff]
        %v2221 = vld [vmem:[%s581 + $0xa8] sm:$0xff]
        %v2222 = vld [vmem:[%s581 + $0xb0] sm:$0xff]
        %v2223 = vld [vmem:[%s581 + $0xb8] sm:$0xff]
        %v2224 = vld [vmem:[%s581 + $0xc0] sm:$0xff]
        %v2225 = vld [vmem:[%s581 + $0xc8] sm:$0xff]
        %v2226 = vld [vmem:[%s581 + $0xd0] sm:$0xff]
        %v2227 = vld [vmem:[%s581 + $0xd8] sm:$0xff]
        %v2228 = vld [vmem:[%s581 + $0xe0] sm:$0xff]
        %v2229 = vld [vmem:[%s581 + $0xe8] sm:$0xff]
        %v2230 = vld [vmem:[%s581 + $0xf0] sm:$0xff]
        %v2231 = vld [vmem:[%s581 + $0xf8] sm:$0xff]
        %v2232 = vld [vmem:[%s581 + $0x100] sm:$0xff]
        %v2233 = vld [vmem:[%s581 + $0x108] sm:$0xff]
        %v2234 = vld [vmem:[%s581 + $0x110] sm:$0xff]
        %v2235 = vld [vmem:[%s581 + $0x118] sm:$0xff]
        %v2236 = vld [vmem:[%s581 + $0x120] sm:$0xff]
        %v2237 = vld [vmem:[%s581 + $0x128] sm:$0xff]
        %v2238 = vld [vmem:[%s581 + $0x130] sm:$0xff]
        %v2239 = vld [vmem:[%s581 + $0x138] sm:$0xff]
        %v2240 = vld [vmem:[%s581 + $0x140] sm:$0xff]
        %v2241 = vld [vmem:[%s581 + $0x148] sm:$0xff]
        %v2242 = vld [vmem:[%s581 + $0x150] sm:$0xff]
        %v2243 = vld [vmem:[%s581 + $0x158] sm:$0xff]
        %v2244 = vld [vmem:[%s581 + $0x160] sm:$0xff]
        %v2245 = vld [vmem:[%s581 + $0x168] sm:$0xff]
        %v2246 = vld [vmem:[%s581 + $0x170] sm:$0xff]
        %v2247 = vld [vmem:[%s581 + $0x178] sm:$0xff]
        %v2248 = vld [vmem:[%s581 + $0x180] sm:$0xff]
        %v2249 = vld [vmem:[%s581 + $0x188] sm:$0xff]
        %v2250 = vld [vmem:[%s581 + $0x190] sm:$0xff]
        %v2251 = vld [vmem:[%s581 + $0x198] sm:$0xff]
        %v2252 = vld [vmem:[%s581 + $0x1a0] sm:$0xff]
        %v2253 = vld [vmem:[%s581 + $0x1a8] sm:$0xff]
        %v2254 = vld [vmem:[%s581 + $0x1b0] sm:$0xff]
        %v2255 = vld [vmem:[%s581 + $0x1b8] sm:$0xff]
        %v2256 = vld [vmem:[%s581 + $0x1c0] sm:$0xff]
        %v2257 = vld [vmem:[%s581 + $0x1c8] sm:$0xff]
        %v2258 = vld [vmem:[%s581 + $0x1d0] sm:$0xff]
        %v2259 = vld [vmem:[%s581 + $0x1d8] sm:$0xff]
        %v2260 = vld [vmem:[%s581 + $0x1e0] sm:$0xff]
        %v2261 = vld [vmem:[%s581 + $0x1e8] sm:$0xff]
        %v2262 = vld [vmem:[%s581 + $0x1f0] sm:$0xff]
        %v2263 = vld [vmem:[%s581 + $0x1f8] sm:$0xff]
        %v2268 = vcombine.high %v2181, %v2181
        %v2270 = vunpack.c.l.s4 1966171168
        %v2271 = vunpack.c.0.s8 %v2270
        %v2272 = vlaneseq
        %v2273 = vshrl.u32 %v2272, 7
        %v2274 = vsub.s32 %v2271, %v2273
        %v2275 = vrot.slane %v2181, %v2274
        %v2277 = vunpack.c.l.s4 1966171168
        %v2278 = vunpack.c.0.s8 %v2277
        %v2279 = vlaneseq
        %v2280 = vshrl.u32 %v2279, 7
        %v2281 = vsub.s32 %v2278, %v2280
        %v2282 = vrot.slane %v2268, %v2281
        %v2283 = vcombine.high %v2275, %v2275
        %v2284 = vcombine.high %v2282, %v2282
        %v2286 = vunpack.c.l.s4 1966171168
        %v2287 = vunpack.c.0.s8 %v2286
        %v2288 = vlaneseq
        %v2289 = vshrl.u32 %v2288, 7
        %v2290 = vsub.s32 %v2287, %v2289
        %v2291 = vrot.slane %v2275, %v2290
        %v2293 = vunpack.c.l.s4 1966171168
        %v2294 = vunpack.c.0.s8 %v2293
        %v2295 = vlaneseq
        %v2296 = vshrl.u32 %v2295, 7
        %v2297 = vsub.s32 %v2294, %v2296
        %v2298 = vrot.slane %v2282, %v2297
        %v2300 = vunpack.c.l.s4 1966171168
        %v2301 = vunpack.c.0.s8 %v2300
        %v2302 = vlaneseq
        %v2303 = vshrl.u32 %v2302, 7
        %v2304 = vsub.s32 %v2301, %v2303
        %v2305 = vrot.slane %v2283, %v2304
        %v2307 = vunpack.c.l.s4 1966171168
        %v2308 = vunpack.c.0.s8 %v2307
        %v2309 = vlaneseq
        %v2310 = vshrl.u32 %v2309, 7
        %v2311 = vsub.s32 %v2308, %v2310
        %v2312 = vrot.slane %v2284, %v2311
        %v2313 = vcombine.high %v2291, %v2291
        %v2314 = vcombine.high %v2298, %v2298
        %v2315 = vcombine.high %v2305, %v2305
        %v2316 = vcombine.high %v2312, %v2312
        %v2317 = vcombine.high %v2182, %v2182
        %v2319 = vunpack.c.l.s4 1966171168
        %v2320 = vunpack.c.0.s8 %v2319
        %v2321 = vlaneseq
        %v2322 = vshrl.u32 %v2321, 7
        %v2323 = vsub.s32 %v2320, %v2322
        %v2324 = vrot.slane %v2182, %v2323
        %v2326 = vunpack.c.l.s4 1966171168
        %v2327 = vunpack.c.0.s8 %v2326
        %v2328 = vlaneseq
        %v2329 = vshrl.u32 %v2328, 7
        %v2330 = vsub.s32 %v2327, %v2329
        %v2331 = vrot.slane %v2317, %v2330
        %v2332 = vcombine.high %v2324, %v2324
        %v2333 = vcombine.high %v2331, %v2331
        %v2335 = vunpack.c.l.s4 1966171168
        %v2336 = vunpack.c.0.s8 %v2335
        %v2337 = vlaneseq
        %v2338 = vshrl.u32 %v2337, 7
        %v2339 = vsub.s32 %v2336, %v2338
        %v2340 = vrot.slane %v2324, %v2339
        %v2342 = vunpack.c.l.s4 1966171168
        %v2343 = vunpack.c.0.s8 %v2342
        %v2344 = vlaneseq
        %v2345 = vshrl.u32 %v2344, 7
        %v2346 = vsub.s32 %v2343, %v2345
        %v2347 = vrot.slane %v2331, %v2346
        %v2349 = vunpack.c.l.s4 1966171168
        %v2350 = vunpack.c.0.s8 %v2349
        %v2351 = vlaneseq
        %v2352 = vshrl.u32 %v2351, 7
        %v2353 = vsub.s32 %v2350, %v2352
        %v2354 = vrot.slane %v2332, %v2353
        %v2356 = vunpack.c.l.s4 1966171168
        %v2357 = vunpack.c.0.s8 %v2356
        %v2358 = vlaneseq
        %v2359 = vshrl.u32 %v2358, 7
        %v2360 = vsub.s32 %v2357, %v2359
        %v2361 = vrot.slane %v2333, %v2360
        %v2362 = vcombine.high %v2340, %v2340
        %v2363 = vcombine.high %v2347, %v2347
        %v2364 = vcombine.high %v2354, %v2354
        %v2365 = vcombine.high %v2361, %v2361
        %v2366 = vcombine.high %v2183, %v2183
        %v2368 = vunpack.c.l.s4 1966171168
        %v2369 = vunpack.c.0.s8 %v2368
        %v2370 = vlaneseq
        %v2371 = vshrl.u32 %v2370, 7
        %v2372 = vsub.s32 %v2369, %v2371
        %v2373 = vrot.slane %v2183, %v2372
        %v2375 = vunpack.c.l.s4 1966171168
        %v2376 = vunpack.c.0.s8 %v2375
        %v2377 = vlaneseq
        %v2378 = vshrl.u32 %v2377, 7
        %v2379 = vsub.s32 %v2376, %v2378
        %v2380 = vrot.slane %v2366, %v2379
        %v2381 = vcombine.high %v2373, %v2373
        %v2382 = vcombine.high %v2380, %v2380
        %v2384 = vunpack.c.l.s4 1966171168
        %v2385 = vunpack.c.0.s8 %v2384
        %v2386 = vlaneseq
        %v2387 = vshrl.u32 %v2386, 7
        %v2388 = vsub.s32 %v2385, %v2387
        %v2389 = vrot.slane %v2373, %v2388
        %v2391 = vunpack.c.l.s4 1966171168
        %v2392 = vunpack.c.0.s8 %v2391
        %v2393 = vlaneseq
        %v2394 = vshrl.u32 %v2393, 7
        %v2395 = vsub.s32 %v2392, %v2394
        %v2396 = vrot.slane %v2380, %v2395
        %v2398 = vunpack.c.l.s4 1966171168
        %v2399 = vunpack.c.0.s8 %v2398
        %v2400 = vlaneseq
        %v2401 = vshrl.u32 %v2400, 7
        %v2402 = vsub.s32 %v2399, %v2401
        %v2403 = vrot.slane %v2381, %v2402
        %v2405 = vunpack.c.l.s4 1966171168
        %v2406 = vunpack.c.0.s8 %v2405
        %v2407 = vlaneseq
        %v2408 = vshrl.u32 %v2407, 7
        %v2409 = vsub.s32 %v2406, %v2408
        %v2410 = vrot.slane %v2382, %v2409
        %v2411 = vcombine.high %v2389, %v2389
        %v2412 = vcombine.high %v2396, %v2396
        %v2413 = vcombine.high %v2403, %v2403
        %v2414 = vcombine.high %v2410, %v2410
        %v2415 = vcombine.high %v2184, %v2184
        %v2417 = vunpack.c.l.s4 1966171168
        %v2418 = vunpack.c.0.s8 %v2417
        %v2419 = vlaneseq
        %v2420 = vshrl.u32 %v2419, 7
        %v2421 = vsub.s32 %v2418, %v2420
        %v2422 = vrot.slane %v2184, %v2421
        %v2424 = vunpack.c.l.s4 1966171168
        %v2425 = vunpack.c.0.s8 %v2424
        %v2426 = vlaneseq
        %v2427 = vshrl.u32 %v2426, 7
        %v2428 = vsub.s32 %v2425, %v2427
        %v2429 = vrot.slane %v2415, %v2428
        %v2430 = vcombine.high %v2422, %v2422
        %v2431 = vcombine.high %v2429, %v2429
        %v2433 = vunpack.c.l.s4 1966171168
        %v2434 = vunpack.c.0.s8 %v2433
        %v2435 = vlaneseq
        %v2436 = vshrl.u32 %v2435, 7
        %v2437 = vsub.s32 %v2434, %v2436
        %v2438 = vrot.slane %v2422, %v2437
        %v2440 = vunpack.c.l.s4 1966171168
        %v2441 = vunpack.c.0.s8 %v2440
        %v2442 = vlaneseq
        %v2443 = vshrl.u32 %v2442, 7
        %v2444 = vsub.s32 %v2441, %v2443
        %v2445 = vrot.slane %v2429, %v2444
        %v2447 = vunpack.c.l.s4 1966171168
        %v2448 = vunpack.c.0.s8 %v2447
        %v2449 = vlaneseq
        %v2450 = vshrl.u32 %v2449, 7
        %v2451 = vsub.s32 %v2448, %v2450
        %v2452 = vrot.slane %v2430, %v2451
        %v2454 = vunpack.c.l.s4 1966171168
        %v2455 = vunpack.c.0.s8 %v2454
        %v2456 = vlaneseq
        %v2457 = vshrl.u32 %v2456, 7
        %v2458 = vsub.s32 %v2455, %v2457
        %v2459 = vrot.slane %v2431, %v2458
        %v2460 = vcombine.high %v2438, %v2438
        %v2461 = vcombine.high %v2445, %v2445
        %v2462 = vcombine.high %v2452, %v2452
        %v2463 = vcombine.high %v2459, %v2459
        %2465 = vset.pattern.permute.xlu0 0
        %2466 = vperm.xlu0 %2465, %v2198
        %v2467 = vpop.permute.xlu0 %2466
        %2470 = vset.pattern.permute.xlu0 0
        %2471 = vperm.xlu0 %2470, %v2199
        %v2472 = vpop.permute.xlu0 %2471
        %v2474 = vlaneseq
        %v2475 = vshrl.u32 %v2474, 7
        %v2476 = vsub.s32 0, %v2475
        %v2477 = vrot.slane %v2291, %v2476
        %v2478 = vlaneseq
        %v2479 = vshrl.u32 %v2478, 7
        %v2480 = vsub.s32 0, %v2479
        %v2481 = vrot.slane %v2305, %v2480
        %v2482 = vlaneseq
        %v2483 = vshrl.u32 %v2482, 7
        %v2484 = vsub.s32 0, %v2483
        %v2485 = vrot.slane %v2313, %v2484
        %v2486 = vlaneseq
        %v2487 = vshrl.u32 %v2486, 7
        %v2488 = vsub.s32 0, %v2487
        %v2489 = vrot.slane %v2315, %v2488
        %v2490 = vlaneseq
        %v2491 = vshrl.u32 %v2490, 7
        %v2492 = vsub.s32 0, %v2491
        %v2493 = vrot.slane %v2298, %v2492
        %v2494 = vlaneseq
        %v2495 = vshrl.u32 %v2494, 7
        %v2496 = vsub.s32 0, %v2495
        %v2497 = vrot.slane %v2312, %v2496
        %v2498 = vlaneseq
        %v2499 = vshrl.u32 %v2498, 7
        %v2500 = vsub.s32 0, %v2499
        %v2501 = vrot.slane %v2314, %v2500
        %v2502 = vlaneseq
        %v2503 = vshrl.u32 %v2502, 7
        %v2504 = vsub.s32 0, %v2503
        %v2505 = vrot.slane %v2316, %v2504
        %v2506 = vlaneseq
        %v2507 = vshrl.u32 %v2506, 7
        %v2508 = vsub.s32 0, %v2507
        %v2509 = vrot.slane %v2340, %v2508
        %v2510 = vlaneseq
        %v2511 = vshrl.u32 %v2510, 7
        %v2512 = vsub.s32 0, %v2511
        %v2513 = vrot.slane %v2354, %v2512
        %v2514 = vlaneseq
        %v2515 = vshrl.u32 %v2514, 7
        %v2516 = vsub.s32 0, %v2515
        %v2517 = vrot.slane %v2362, %v2516
        %v2518 = vlaneseq
        %v2519 = vshrl.u32 %v2518, 7
        %v2520 = vsub.s32 0, %v2519
        %v2521 = vrot.slane %v2364, %v2520
        %v2522 = vlaneseq
        %v2523 = vshrl.u32 %v2522, 7
        %v2524 = vsub.s32 0, %v2523
        %v2525 = vrot.slane %v2347, %v2524
        %v2526 = vlaneseq
        %v2527 = vshrl.u32 %v2526, 7
        %v2528 = vsub.s32 0, %v2527
        %v2529 = vrot.slane %v2361, %v2528
        %v2530 = vlaneseq
        %v2531 = vshrl.u32 %v2530, 7
        %v2532 = vsub.s32 0, %v2531
        %v2533 = vrot.slane %v2363, %v2532
        %v2534 = vlaneseq
        %v2535 = vshrl.u32 %v2534, 7
        %v2536 = vsub.s32 0, %v2535
        %v2537 = vrot.slane %v2365, %v2536
        %v2538 = vlaneseq
        %v2539 = vshrl.u32 %v2538, 7
        %v2540 = vsub.s32 0, %v2539
        %v2541 = vrot.slane %v2389, %v2540
        %v2542 = vlaneseq
        %v2543 = vshrl.u32 %v2542, 7
        %v2544 = vsub.s32 0, %v2543
        %v2545 = vrot.slane %v2403, %v2544
        %v2546 = vlaneseq
        %v2547 = vshrl.u32 %v2546, 7
        %v2548 = vsub.s32 0, %v2547
        %v2549 = vrot.slane %v2411, %v2548
        %v2550 = vlaneseq
        %v2551 = vshrl.u32 %v2550, 7
        %v2552 = vsub.s32 0, %v2551
        %v2553 = vrot.slane %v2413, %v2552
        %v2554 = vlaneseq
        %v2555 = vshrl.u32 %v2554, 7
        %v2556 = vsub.s32 0, %v2555
        %v2557 = vrot.slane %v2396, %v2556
        %v2558 = vlaneseq
        %v2559 = vshrl.u32 %v2558, 7
        %v2560 = vsub.s32 0, %v2559
        %v2561 = vrot.slane %v2410, %v2560
        %v2562 = vlaneseq
        %v2563 = vshrl.u32 %v2562, 7
        %v2564 = vsub.s32 0, %v2563
        %v2565 = vrot.slane %v2412, %v2564
        %v2566 = vlaneseq
        %v2567 = vshrl.u32 %v2566, 7
        %v2568 = vsub.s32 0, %v2567
        %v2569 = vrot.slane %v2414, %v2568
        %v2570 = vlaneseq
        %v2571 = vshrl.u32 %v2570, 7
        %v2572 = vsub.s32 0, %v2571
        %v2573 = vrot.slane %v2438, %v2572
        %v2574 = vlaneseq
        %v2575 = vshrl.u32 %v2574, 7
        %v2576 = vsub.s32 0, %v2575
        %v2577 = vrot.slane %v2452, %v2576
        %v2578 = vlaneseq
        %v2579 = vshrl.u32 %v2578, 7
        %v2580 = vsub.s32 0, %v2579
        %v2581 = vrot.slane %v2460, %v2580
        %v2582 = vlaneseq
        %v2583 = vshrl.u32 %v2582, 7
        %v2584 = vsub.s32 0, %v2583
        %v2585 = vrot.slane %v2462, %v2584
        %v2586 = vlaneseq
        %v2587 = vshrl.u32 %v2586, 7
        %v2588 = vsub.s32 0, %v2587
        %v2589 = vrot.slane %v2445, %v2588
        %v2590 = vlaneseq
        %v2591 = vshrl.u32 %v2590, 7
        %v2592 = vsub.s32 0, %v2591
        %v2593 = vrot.slane %v2459, %v2592
        %v2594 = vlaneseq
        %v2595 = vshrl.u32 %v2594, 7
        %v2596 = vsub.s32 0, %v2595
        %v2597 = vrot.slane %v2461, %v2596
        %v2598 = vlaneseq
        %v2599 = vshrl.u32 %v2598, 7
        %v2600 = vsub.s32 0, %v2599
        %v2601 = vrot.slane %v2463, %v2600
        %v2634 = vmul.f32 %v2467, %v2477
        %v2635 = vmul.f32 %v2472, %v2477
        %v2636 = vmul.f32 %v2467, %v2481
        %v2637 = vmul.f32 %v2472, %v2481
        %v2638 = vmul.f32 %v2467, %v2485
        %v2639 = vmul.f32 %v2472, %v2485
        %v2640 = vmul.f32 %v2467, %v2489
        %v2641 = vmul.f32 %v2472, %v2489
        %v2642 = vmul.f32 %v2467, %v2493
        %v2643 = vmul.f32 %v2472, %v2493
        %v2644 = vmul.f32 %v2467, %v2497
        %v2645 = vmul.f32 %v2472, %v2497
        %v2646 = vmul.f32 %v2467, %v2501
        %v2647 = vmul.f32 %v2472, %v2501
        %v2648 = vmul.f32 %v2467, %v2505
        %v2649 = vmul.f32 %v2472, %v2505
        %v2650 = vmul.f32 %v2467, %v2509
        %v2651 = vmul.f32 %v2472, %v2509
        %v2652 = vmul.f32 %v2467, %v2513
        %v2653 = vmul.f32 %v2472, %v2513
        %v2654 = vmul.f32 %v2467, %v2517
        %v2655 = vmul.f32 %v2472, %v2517
        %v2656 = vmul.f32 %v2467, %v2521
        %v2657 = vmul.f32 %v2472, %v2521
        %v2658 = vmul.f32 %v2467, %v2525
        %v2659 = vmul.f32 %v2472, %v2525
        %v2660 = vmul.f32 %v2467, %v2529
        %v2661 = vmul.f32 %v2472, %v2529
        %v2662 = vmul.f32 %v2467, %v2533
        %v2663 = vmul.f32 %v2472, %v2533
        %v2664 = vmul.f32 %v2467, %v2537
        %v2665 = vmul.f32 %v2472, %v2537
        %v2666 = vmul.f32 %v2467, %v2541
        %v2667 = vmul.f32 %v2472, %v2541
        %v2668 = vmul.f32 %v2467, %v2545
        %v2669 = vmul.f32 %v2472, %v2545
        %v2670 = vmul.f32 %v2467, %v2549
        %v2671 = vmul.f32 %v2472, %v2549
        %v2672 = vmul.f32 %v2467, %v2553
        %v2673 = vmul.f32 %v2472, %v2553
        %v2674 = vmul.f32 %v2467, %v2557
        %v2675 = vmul.f32 %v2472, %v2557
        %v2676 = vmul.f32 %v2467, %v2561
        %v2677 = vmul.f32 %v2472, %v2561
        %v2678 = vmul.f32 %v2467, %v2565
        %v2679 = vmul.f32 %v2472, %v2565
        %v2680 = vmul.f32 %v2467, %v2569
        %v2681 = vmul.f32 %v2472, %v2569
        %v2682 = vmul.f32 %v2467, %v2573
        %v2683 = vmul.f32 %v2472, %v2573
        %v2684 = vmul.f32 %v2467, %v2577
        %v2685 = vmul.f32 %v2472, %v2577
        %v2686 = vmul.f32 %v2467, %v2581
        %v2687 = vmul.f32 %v2472, %v2581
        %v2688 = vmul.f32 %v2467, %v2585
        %v2689 = vmul.f32 %v2472, %v2585
        %v2690 = vmul.f32 %v2467, %v2589
        %v2691 = vmul.f32 %v2472, %v2589
        %v2692 = vmul.f32 %v2467, %v2593
        %v2693 = vmul.f32 %v2472, %v2593
        %v2694 = vmul.f32 %v2467, %v2597
        %v2695 = vmul.f32 %v2472, %v2597
        %v2696 = vmul.f32 %v2467, %v2601
        %v2697 = vmul.f32 %v2472, %v2601
        %v2698 = vadd.f32 %v2200, %v2634
        %v2699 = vadd.f32 %v2201, %v2635
        %v2700 = vadd.f32 %v2202, %v2636
        %v2701 = vadd.f32 %v2203, %v2637
        %v2702 = vadd.f32 %v2204, %v2638
        %v2703 = vadd.f32 %v2205, %v2639
        %v2704 = vadd.f32 %v2206, %v2640
        %v2705 = vadd.f32 %v2207, %v2641
        %v2706 = vadd.f32 %v2208, %v2642
        %v2707 = vadd.f32 %v2209, %v2643
        %v2708 = vadd.f32 %v2210, %v2644
        %v2709 = vadd.f32 %v2211, %v2645
        %v2710 = vadd.f32 %v2212, %v2646
        %v2711 = vadd.f32 %v2213, %v2647
        %v2712 = vadd.f32 %v2214, %v2648
        %v2713 = vadd.f32 %v2215, %v2649
        %v2714 = vadd.f32 %v2216, %v2650
        %v2715 = vadd.f32 %v2217, %v2651
        %v2716 = vadd.f32 %v2218, %v2652
        %v2717 = vadd.f32 %v2219, %v2653
        %v2718 = vadd.f32 %v2220, %v2654
        %v2719 = vadd.f32 %v2221, %v2655
        %v2720 = vadd.f32 %v2222, %v2656
        %v2721 = vadd.f32 %v2223, %v2657
        %v2722 = vadd.f32 %v2224, %v2658
        %v2723 = vadd.f32 %v2225, %v2659
        %v2724 = vadd.f32 %v2226, %v2660
        %v2725 = vadd.f32 %v2227, %v2661
        %v2726 = vadd.f32 %v2228, %v2662
        %v2727 = vadd.f32 %v2229, %v2663
        %v2728 = vadd.f32 %v2230, %v2664
        %v2729 = vadd.f32 %v2231, %v2665
        %v2730 = vadd.f32 %v2232, %v2666
        %v2731 = vadd.f32 %v2233, %v2667
        %v2732 = vadd.f32 %v2234, %v2668
        %v2733 = vadd.f32 %v2235, %v2669
        %v2734 = vadd.f32 %v2236, %v2670
        %v2735 = vadd.f32 %v2237, %v2671
        %v2736 = vadd.f32 %v2238, %v2672
        %v2737 = vadd.f32 %v2239, %v2673
        %v2738 = vadd.f32 %v2240, %v2674
        %v2739 = vadd.f32 %v2241, %v2675
        %v2740 = vadd.f32 %v2242, %v2676
        %v2741 = vadd.f32 %v2243, %v2677
        %v2742 = vadd.f32 %v2244, %v2678
        %v2743 = vadd.f32 %v2245, %v2679
        %v2744 = vadd.f32 %v2246, %v2680
        %v2745 = vadd.f32 %v2247, %v2681
        %v2746 = vadd.f32 %v2248, %v2682
        %v2747 = vadd.f32 %v2249, %v2683
        %v2748 = vadd.f32 %v2250, %v2684
        %v2749 = vadd.f32 %v2251, %v2685
        %v2750 = vadd.f32 %v2252, %v2686
        %v2751 = vadd.f32 %v2253, %v2687
        %v2752 = vadd.f32 %v2254, %v2688
        %v2753 = vadd.f32 %v2255, %v2689
        %v2754 = vadd.f32 %v2256, %v2690
        %v2755 = vadd.f32 %v2257, %v2691
        %v2756 = vadd.f32 %v2258, %v2692
        %v2757 = vadd.f32 %v2259, %v2693
        %v2758 = vadd.f32 %v2260, %v2694
        %v2759 = vadd.f32 %v2261, %v2695
        %v2760 = vadd.f32 %v2262, %v2696
        %v2761 = vadd.f32 %v2263, %v2697
        %2762 = vst.msk [vmem:[%s581] sm:$0xff] %vm593, %v2698
        %2763 = vst.msk [vmem:[%s581 + $0x8] sm:$0xff] %vm593, %v2699
        %2764 = vst.msk [vmem:[%s581 + $0x10] sm:$0xff] %vm593, %v2700
        %2765 = vst.msk [vmem:[%s581 + $0x18] sm:$0xff] %vm593, %v2701
        %2766 = vst.msk [vmem:[%s581 + $0x20] sm:$0xff] %vm593, %v2702
        %2767 = vst.msk [vmem:[%s581 + $0x28] sm:$0xff] %vm593, %v2703
        %2768 = vst.msk [vmem:[%s581 + $0x30] sm:$0xff] %vm593, %v2704
        %2769 = vst.msk [vmem:[%s581 + $0x38] sm:$0xff] %vm593, %v2705
        %2770 = vst.msk [vmem:[%s581 + $0x40] sm:$0xff] %vm593, %v2706
        %2771 = vst.msk [vmem:[%s581 + $0x48] sm:$0xff] %vm593, %v2707
        %2772 = vst.msk [vmem:[%s581 + $0x50] sm:$0xff] %vm593, %v2708
        %2773 = vst.msk [vmem:[%s581 + $0x58] sm:$0xff] %vm593, %v2709
        %2774 = vst.msk [vmem:[%s581 + $0x60] sm:$0xff] %vm593, %v2710
        %2775 = vst.msk [vmem:[%s581 + $0x68] sm:$0xff] %vm593, %v2711
        %2776 = vst.msk [vmem:[%s581 + $0x70] sm:$0xff] %vm593, %v2712
        %2777 = vst.msk [vmem:[%s581 + $0x78] sm:$0xff] %vm593, %v2713
        %2778 = vst.msk [vmem:[%s581 + $0x80] sm:$0xff] %vm593, %v2714
        %2779 = vst.msk [vmem:[%s581 + $0x88] sm:$0xff] %vm593, %v2715
        %2780 = vst.msk [vmem:[%s581 + $0x90] sm:$0xff] %vm593, %v2716
        %2781 = vst.msk [vmem:[%s581 + $0x98] sm:$0xff] %vm593, %v2717
        %2782 = vst.msk [vmem:[%s581 + $0xa0] sm:$0xff] %vm593, %v2718
        %2783 = vst.msk [vmem:[%s581 + $0xa8] sm:$0xff] %vm593, %v2719
        %2784 = vst.msk [vmem:[%s581 + $0xb0] sm:$0xff] %vm593, %v2720
        %2785 = vst.msk [vmem:[%s581 + $0xb8] sm:$0xff] %vm593, %v2721
        %2786 = vst.msk [vmem:[%s581 + $0xc0] sm:$0xff] %vm593, %v2722
        %2787 = vst.msk [vmem:[%s581 + $0xc8] sm:$0xff] %vm593, %v2723
        %2788 = vst.msk [vmem:[%s581 + $0xd0] sm:$0xff] %vm593, %v2724
        %2789 = vst.msk [vmem:[%s581 + $0xd8] sm:$0xff] %vm593, %v2725
        %2790 = vst.msk [vmem:[%s581 + $0xe0] sm:$0xff] %vm593, %v2726
        %2791 = vst.msk [vmem:[%s581 + $0xe8] sm:$0xff] %vm593, %v2727
        %2792 = vst.msk [vmem:[%s581 + $0xf0] sm:$0xff] %vm593, %v2728
        %2793 = vst.msk [vmem:[%s581 + $0xf8] sm:$0xff] %vm593, %v2729
        %2794 = vst.msk [vmem:[%s581 + $0x100] sm:$0xff] %vm593, %v2730
        %2795 = vst.msk [vmem:[%s581 + $0x108] sm:$0xff] %vm593, %v2731
        %2796 = vst.msk [vmem:[%s581 + $0x110] sm:$0xff] %vm593, %v2732
        %2797 = vst.msk [vmem:[%s581 + $0x118] sm:$0xff] %vm593, %v2733
        %2798 = vst.msk [vmem:[%s581 + $0x120] sm:$0xff] %vm593, %v2734
        %2799 = vst.msk [vmem:[%s581 + $0x128] sm:$0xff] %vm593, %v2735
        %2800 = vst.msk [vmem:[%s581 + $0x130] sm:$0xff] %vm593, %v2736
        %2801 = vst.msk [vmem:[%s581 + $0x138] sm:$0xff] %vm593, %v2737
        %2802 = vst.msk [vmem:[%s581 + $0x140] sm:$0xff] %vm593, %v2738
        %2803 = vst.msk [vmem:[%s581 + $0x148] sm:$0xff] %vm593, %v2739
        %2804 = vst.msk [vmem:[%s581 + $0x150] sm:$0xff] %vm593, %v2740
        %2805 = vst.msk [vmem:[%s581 + $0x158] sm:$0xff] %vm593, %v2741
        %2806 = vst.msk [vmem:[%s581 + $0x160] sm:$0xff] %vm593, %v2742
        %2807 = vst.msk [vmem:[%s581 + $0x168] sm:$0xff] %vm593, %v2743
        %2808 = vst.msk [vmem:[%s581 + $0x170] sm:$0xff] %vm593, %v2744
        %2809 = vst.msk [vmem:[%s581 + $0x178] sm:$0xff] %vm593, %v2745
        %2810 = vst.msk [vmem:[%s581 + $0x180] sm:$0xff] %vm593, %v2746
        %2811 = vst.msk [vmem:[%s581 + $0x188] sm:$0xff] %vm593, %v2747
        %2812 = vst.msk [vmem:[%s581 + $0x190] sm:$0xff] %vm593, %v2748
        %2813 = vst.msk [vmem:[%s581 + $0x198] sm:$0xff] %vm593, %v2749
        %2814 = vst.msk [vmem:[%s581 + $0x1a0] sm:$0xff] %vm593, %v2750
        %2815 = vst.msk [vmem:[%s581 + $0x1a8] sm:$0xff] %vm593, %v2751
        %2816 = vst.msk [vmem:[%s581 + $0x1b0] sm:$0xff] %vm593, %v2752
        %2817 = vst.msk [vmem:[%s581 + $0x1b8] sm:$0xff] %vm593, %v2753
        %2818 = vst.msk [vmem:[%s581 + $0x1c0] sm:$0xff] %vm593, %v2754
        %2819 = vst.msk [vmem:[%s581 + $0x1c8] sm:$0xff] %vm593, %v2755
        %2820 = vst.msk [vmem:[%s581 + $0x1d0] sm:$0xff] %vm593, %v2756
        %2821 = vst.msk [vmem:[%s581 + $0x1d8] sm:$0xff] %vm593, %v2757
        %2822 = vst.msk [vmem:[%s581 + $0x1e0] sm:$0xff] %vm593, %v2758
        %2823 = vst.msk [vmem:[%s581 + $0x1e8] sm:$0xff] %vm593, %v2759
        %2824 = vst.msk [vmem:[%s581 + $0x1f0] sm:$0xff] %vm593, %v2760
        %2825 = vst.msk [vmem:[%s581 + $0x1f8] sm:$0xff] %vm593, %v2761
        %v2827 = vsel %vm1348, %v952, 0
        %2829 = vmatprep.subr.mxu0 0.0
        %2830 = vmatpush1.msra.mxu0 %v2827
        %2831 = vmatprep.subr.mxu0 0.0
        %2832 = vmatpush1.msra.mxu0 0.0
        %2833 = vmatprep.subr.mxu0 0.0
        %2834 = vmatpush1.msra.mxu0 0.0
        %2835 = vmatprep.subr.mxu0 0.0
        %2836 = vmatpush1.msra.mxu0 0.0
        %2837 = vmatprep.subr.mxu0 0.0
        %2838 = vmatpush1.msra.mxu0 0.0
        %2839 = vmatprep.subr.mxu0 0.0
        %2840 = vmatpush1.msra.mxu0 0.0
        %2841 = vmatprep.subr.mxu0 0.0
        %2842 = vmatpush1.msra.mxu0 0.0
        %2843 = vmatprep.subr.mxu0 0.0
        %2844 = vmatpush1.msra.mxu0 0.0
        %2845 = vmatprep.subr.mxu0 0.0
        %2846 = vmatpush1.msra.mxu0 0.0
        %2847 = vmatprep.subr.mxu0 0.0
        %2848 = vmatpush1.msra.mxu0 0.0
        %2849 = vmatprep.subr.mxu0 0.0
        %2850 = vmatpush1.msra.mxu0 0.0
        %2851 = vmatprep.subr.mxu0 0.0
        %2852 = vmatpush1.msra.mxu0 0.0
        %2853 = vmatprep.subr.mxu0 0.0
        %2854 = vmatpush1.msra.mxu0 0.0
        %2855 = vmatprep.subr.mxu0 0.0
        %2856 = vmatpush1.msra.mxu0 0.0
        %2857 = vmatprep.subr.mxu0 0.0
        %2858 = vmatpush1.msra.mxu0 0.0
        %2859 = vmatprep.subr.mxu0 0.0
        %2860 = vmatpush1.msra.mxu0 0.0
        %2861 = vmatprep.subr.mxu0 0.0
        %2862 = vmatpush1.msra.mxu0 0.0
        %2863 = vmatprep.subr.mxu0 0.0
        %2864 = vmatpush1.msra.mxu0 0.0
        %2865 = vmatprep.subr.mxu0 0.0
        %2866 = vmatpush1.msra.mxu0 0.0
        %2867 = vmatprep.subr.mxu0 0.0
        %2868 = vmatpush1.msra.mxu0 0.0
        %2869 = vmatprep.subr.mxu0 0.0
        %2870 = vmatpush1.msra.mxu0 0.0
        %2871 = vmatprep.subr.mxu0 0.0
        %2872 = vmatpush1.msra.mxu0 0.0
        %2873 = vmatprep.subr.mxu0 0.0
        %2874 = vmatpush1.msra.mxu0 0.0
        %2875 = vmatprep.subr.mxu0 0.0
        %2876 = vmatpush1.msra.mxu0 0.0
        %2877 = vmatprep.subr.mxu0 0.0
        %2878 = vmatpush1.msra.mxu0 0.0
        %2879 = vmatprep.subr.mxu0 0.0
        %2880 = vmatpush1.msra.mxu0 0.0
        %2881 = vmatprep.subr.mxu0 0.0
        %2882 = vmatpush1.msra.mxu0 0.0
        %2883 = vmatprep.subr.mxu0 0.0
        %2884 = vmatpush1.msra.mxu0 0.0
        %2885 = vmatprep.subr.mxu0 0.0
        %2886 = vmatpush1.msra.mxu0 0.0
        %2887 = vmatprep.subr.mxu0 0.0
        %2888 = vmatpush1.msra.mxu0 0.0
        %2889 = vmatprep.subr.mxu0 0.0
        %2890 = vmatpush1.msra.mxu0 0.0
        %2891 = vmatprep.subr.mxu0 0.0
        %2892 = vmatpush1.msra.mxu0 0.0
        %2893 = vmatprep.mubr.f32.mxu0 0.0
        %2894 = vmatmul.mubr.f32.gmra.mrb[0].mxu0 %v1343
        %v2895 = vpop.f32.mrb[0].mxu0
        %v2896 = vadd.f32 0.0, %v2895
        %v2897 = vpop.f32.mrb[0].mxu0
        %2898 = vmatprep.mubr.f32.mxu0 0.0
        %2899 = vmatmul.mubr.f32.gmra.mrb[0].mxu0 %v1346
        %v2900 = vpop.f32.mrb[0].mxu0
        %v2901 = vadd.f32 0.0, %v2900
        %v2902 = vpop.f32.mrb[0].mxu0
        %2903 = vdwg.mxu0
        %2904 = vxpose.xlu0.b32.start [1/16] %v2896, 128
        %2905 = vxpose.xlu0.b32.cont [2/16] %v2901, 128
        %2906 = vxpose.xlu0.b32.cont [3/16] 0.0, 128
        %2907 = vxpose.xlu0.b32.cont [4/16] 0.0, 128
        %2908 = vxpose.xlu0.b32.cont [5/16] 0.0, 128
        %2909 = vxpose.xlu0.b32.cont [6/16] 0.0, 128
        %2910 = vxpose.xlu0.b32.cont [7/16] 0.0, 128
        %2911 = vxpose.xlu0.b32.cont [8/16] 0.0, 128
        %2912 = vxpose.xlu0.b32.cont [9/16] 0.0, 128
        %2913 = vxpose.xlu0.b32.cont [10/16] 0.0, 128
        %2914 = vxpose.xlu0.b32.cont [11/16] 0.0, 128
        %2915 = vxpose.xlu0.b32.cont [12/16] 0.0, 128
        %2916 = vxpose.xlu0.b32.cont [13/16] 0.0, 128
        %2917 = vxpose.xlu0.b32.cont [14/16] 0.0, 128
        %2918 = vxpose.xlu0.b32.cont [15/16] 0.0, 128
        %2919 = vxpose.xlu0.b32.end [16/16] 0.0, 128
        %v2920 = vpop.trf.xlu0
        %v2921 = vpop.trf.xlu0
        %v2922 = vpop.trf.xlu0
        %v2923 = vpop.trf.xlu0
        %v2924 = vpop.trf.xlu0
        %v2925 = vpop.trf.xlu0
        %v2926 = vpop.trf.xlu0
        %v2927 = vpop.trf.xlu0
        %v2928 = vpop.trf.xlu0
        %v2929 = vpop.trf.xlu0
        %v2930 = vpop.trf.xlu0
        %v2931 = vpop.trf.xlu0
        %v2932 = vpop.trf.xlu0
        %v2933 = vpop.trf.xlu0
        %v2934 = vpop.trf.xlu0
        %v2935 = vpop.trf.xlu0
        %s2936 = scalar_lea.vmem [#allocation19], 32
        %v2937 = vld [vmem:[%s2936] sm:$0xff]
        %v2938 = vld [vmem:[%s2936 + $0x8] sm:$0xff]
        %v2939 = vld [vmem:[%s581] sm:$0xff]
        %v2940 = vld [vmem:[%s581 + $0x8] sm:$0xff]
        %v2941 = vld [vmem:[%s581 + $0x10] sm:$0xff]
        %v2942 = vld [vmem:[%s581 + $0x18] sm:$0xff]
        %v2943 = vld [vmem:[%s581 + $0x20] sm:$0xff]
        %v2944 = vld [vmem:[%s581 + $0x28] sm:$0xff]
        %v2945 = vld [vmem:[%s581 + $0x30] sm:$0xff]
        %v2946 = vld [vmem:[%s581 + $0x38] sm:$0xff]
        %v2947 = vld [vmem:[%s581 + $0x40] sm:$0xff]
        %v2948 = vld [vmem:[%s581 + $0x48] sm:$0xff]
        %v2949 = vld [vmem:[%s581 + $0x50] sm:$0xff]
        %v2950 = vld [vmem:[%s581 + $0x58] sm:$0xff]
        %v2951 = vld [vmem:[%s581 + $0x60] sm:$0xff]
        %v2952 = vld [vmem:[%s581 + $0x68] sm:$0xff]
        %v2953 = vld [vmem:[%s581 + $0x70] sm:$0xff]
        %v2954 = vld [vmem:[%s581 + $0x78] sm:$0xff]
        %v2955 = vld [vmem:[%s581 + $0x80] sm:$0xff]
        %v2956 = vld [vmem:[%s581 + $0x88] sm:$0xff]
        %v2957 = vld [vmem:[%s581 + $0x90] sm:$0xff]
        %v2958 = vld [vmem:[%s581 + $0x98] sm:$0xff]
        %v2959 = vld [vmem:[%s581 + $0xa0] sm:$0xff]
        %v2960 = vld [vmem:[%s581 + $0xa8] sm:$0xff]
        %v2961 = vld [vmem:[%s581 + $0xb0] sm:$0xff]
        %v2962 = vld [vmem:[%s581 + $0xb8] sm:$0xff]
        %v2963 = vld [vmem:[%s581 + $0xc0] sm:$0xff]
        %v2964 = vld [vmem:[%s581 + $0xc8] sm:$0xff]
        %v2965 = vld [vmem:[%s581 + $0xd0] sm:$0xff]
        %v2966 = vld [vmem:[%s581 + $0xd8] sm:$0xff]
        %v2967 = vld [vmem:[%s581 + $0xe0] sm:$0xff]
        %v2968 = vld [vmem:[%s581 + $0xe8] sm:$0xff]
        %v2969 = vld [vmem:[%s581 + $0xf0] sm:$0xff]
        %v2970 = vld [vmem:[%s581 + $0xf8] sm:$0xff]
        %v2971 = vld [vmem:[%s581 + $0x100] sm:$0xff]
        %v2972 = vld [vmem:[%s581 + $0x108] sm:$0xff]
        %v2973 = vld [vmem:[%s581 + $0x110] sm:$0xff]
        %v2974 = vld [vmem:[%s581 + $0x118] sm:$0xff]
        %v2975 = vld [vmem:[%s581 + $0x120] sm:$0xff]
        %v2976 = vld [vmem:[%s581 + $0x128] sm:$0xff]
        %v2977 = vld [vmem:[%s581 + $0x130] sm:$0xff]
        %v2978 = vld [vmem:[%s581 + $0x138] sm:$0xff]
        %v2979 = vld [vmem:[%s581 + $0x140] sm:$0xff]
        %v2980 = vld [vmem:[%s581 + $0x148] sm:$0xff]
        %v2981 = vld [vmem:[%s581 + $0x150] sm:$0xff]
        %v2982 = vld [vmem:[%s581 + $0x158] sm:$0xff]
        %v2983 = vld [vmem:[%s581 + $0x160] sm:$0xff]
        %v2984 = vld [vmem:[%s581 + $0x168] sm:$0xff]
        %v2985 = vld [vmem:[%s581 + $0x170] sm:$0xff]
        %v2986 = vld [vmem:[%s581 + $0x178] sm:$0xff]
        %v2987 = vld [vmem:[%s581 + $0x180] sm:$0xff]
        %v2988 = vld [vmem:[%s581 + $0x188] sm:$0xff]
        %v2989 = vld [vmem:[%s581 + $0x190] sm:$0xff]
        %v2990 = vld [vmem:[%s581 + $0x198] sm:$0xff]
        %v2991 = vld [vmem:[%s581 + $0x1a0] sm:$0xff]
        %v2992 = vld [vmem:[%s581 + $0x1a8] sm:$0xff]
        %v2993 = vld [vmem:[%s581 + $0x1b0] sm:$0xff]
        %v2994 = vld [vmem:[%s581 + $0x1b8] sm:$0xff]
        %v2995 = vld [vmem:[%s581 + $0x1c0] sm:$0xff]
        %v2996 = vld [vmem:[%s581 + $0x1c8] sm:$0xff]
        %v2997 = vld [vmem:[%s581 + $0x1d0] sm:$0xff]
        %v2998 = vld [vmem:[%s581 + $0x1d8] sm:$0xff]
        %v2999 = vld [vmem:[%s581 + $0x1e0] sm:$0xff]
        %v3000 = vld [vmem:[%s581 + $0x1e8] sm:$0xff]
        %v3001 = vld [vmem:[%s581 + $0x1f0] sm:$0xff]
        %v3002 = vld [vmem:[%s581 + $0x1f8] sm:$0xff]
        %v3007 = vcombine.high %v2920, %v2920
        %v3009 = vunpack.c.l.s4 1966171168
        %v3010 = vunpack.c.0.s8 %v3009
        %v3011 = vlaneseq
        %v3012 = vshrl.u32 %v3011, 7
        %v3013 = vsub.s32 %v3010, %v3012
        %v3014 = vrot.slane %v2920, %v3013
        %v3016 = vunpack.c.l.s4 1966171168
        %v3017 = vunpack.c.0.s8 %v3016
        %v3018 = vlaneseq
        %v3019 = vshrl.u32 %v3018, 7
        %v3020 = vsub.s32 %v3017, %v3019
        %v3021 = vrot.slane %v3007, %v3020
        %v3022 = vcombine.high %v3014, %v3014
        %v3023 = vcombine.high %v3021, %v3021
        %v3025 = vunpack.c.l.s4 1966171168
        %v3026 = vunpack.c.0.s8 %v3025
        %v3027 = vlaneseq
        %v3028 = vshrl.u32 %v3027, 7
        %v3029 = vsub.s32 %v3026, %v3028
        %v3030 = vrot.slane %v3014, %v3029
        %v3032 = vunpack.c.l.s4 1966171168
        %v3033 = vunpack.c.0.s8 %v3032
        %v3034 = vlaneseq
        %v3035 = vshrl.u32 %v3034, 7
        %v3036 = vsub.s32 %v3033, %v3035
        %v3037 = vrot.slane %v3021, %v3036
        %v3039 = vunpack.c.l.s4 1966171168
        %v3040 = vunpack.c.0.s8 %v3039
        %v3041 = vlaneseq
        %v3042 = vshrl.u32 %v3041, 7
        %v3043 = vsub.s32 %v3040, %v3042
        %v3044 = vrot.slane %v3022, %v3043
        %v3046 = vunpack.c.l.s4 1966171168
        %v3047 = vunpack.c.0.s8 %v3046
        %v3048 = vlaneseq
        %v3049 = vshrl.u32 %v3048, 7
        %v3050 = vsub.s32 %v3047, %v3049
        %v3051 = vrot.slane %v3023, %v3050
        %v3052 = vcombine.high %v3030, %v3030
        %v3053 = vcombine.high %v3037, %v3037
        %v3054 = vcombine.high %v3044, %v3044
        %v3055 = vcombine.high %v3051, %v3051
        %v3056 = vcombine.high %v2921, %v2921
        %v3058 = vunpack.c.l.s4 1966171168
        %v3059 = vunpack.c.0.s8 %v3058
        %v3060 = vlaneseq
        %v3061 = vshrl.u32 %v3060, 7
        %v3062 = vsub.s32 %v3059, %v3061
        %v3063 = vrot.slane %v2921, %v3062
        %v3065 = vunpack.c.l.s4 1966171168
        %v3066 = vunpack.c.0.s8 %v3065
        %v3067 = vlaneseq
        %v3068 = vshrl.u32 %v3067, 7
        %v3069 = vsub.s32 %v3066, %v3068
        %v3070 = vrot.slane %v3056, %v3069
        %v3071 = vcombine.high %v3063, %v3063
        %v3072 = vcombine.high %v3070, %v3070
        %v3074 = vunpack.c.l.s4 1966171168
        %v3075 = vunpack.c.0.s8 %v3074
        %v3076 = vlaneseq
        %v3077 = vshrl.u32 %v3076, 7
        %v3078 = vsub.s32 %v3075, %v3077
        %v3079 = vrot.slane %v3063, %v3078
        %v3081 = vunpack.c.l.s4 1966171168
        %v3082 = vunpack.c.0.s8 %v3081
        %v3083 = vlaneseq
        %v3084 = vshrl.u32 %v3083, 7
        %v3085 = vsub.s32 %v3082, %v3084
        %v3086 = vrot.slane %v3070, %v3085
        %v3088 = vunpack.c.l.s4 1966171168
        %v3089 = vunpack.c.0.s8 %v3088
        %v3090 = vlaneseq
        %v3091 = vshrl.u32 %v3090, 7
        %v3092 = vsub.s32 %v3089, %v3091
        %v3093 = vrot.slane %v3071, %v3092
        %v3095 = vunpack.c.l.s4 1966171168
        %v3096 = vunpack.c.0.s8 %v3095
        %v3097 = vlaneseq
        %v3098 = vshrl.u32 %v3097, 7
        %v3099 = vsub.s32 %v3096, %v3098
        %v3100 = vrot.slane %v3072, %v3099
        %v3101 = vcombine.high %v3079, %v3079
        %v3102 = vcombine.high %v3086, %v3086
        %v3103 = vcombine.high %v3093, %v3093
        %v3104 = vcombine.high %v3100, %v3100
        %v3105 = vcombine.high %v2922, %v2922
        %v3107 = vunpack.c.l.s4 1966171168
        %v3108 = vunpack.c.0.s8 %v3107
        %v3109 = vlaneseq
        %v3110 = vshrl.u32 %v3109, 7
        %v3111 = vsub.s32 %v3108, %v3110
        %v3112 = vrot.slane %v2922, %v3111
        %v3114 = vunpack.c.l.s4 1966171168
        %v3115 = vunpack.c.0.s8 %v3114
        %v3116 = vlaneseq
        %v3117 = vshrl.u32 %v3116, 7
        %v3118 = vsub.s32 %v3115, %v3117
        %v3119 = vrot.slane %v3105, %v3118
        %v3120 = vcombine.high %v3112, %v3112
        %v3121 = vcombine.high %v3119, %v3119
        %v3123 = vunpack.c.l.s4 1966171168
        %v3124 = vunpack.c.0.s8 %v3123
        %v3125 = vlaneseq
        %v3126 = vshrl.u32 %v3125, 7
        %v3127 = vsub.s32 %v3124, %v3126
        %v3128 = vrot.slane %v3112, %v3127
        %v3130 = vunpack.c.l.s4 1966171168
        %v3131 = vunpack.c.0.s8 %v3130
        %v3132 = vlaneseq
        %v3133 = vshrl.u32 %v3132, 7
        %v3134 = vsub.s32 %v3131, %v3133
        %v3135 = vrot.slane %v3119, %v3134
        %v3137 = vunpack.c.l.s4 1966171168
        %v3138 = vunpack.c.0.s8 %v3137
        %v3139 = vlaneseq
        %v3140 = vshrl.u32 %v3139, 7
        %v3141 = vsub.s32 %v3138, %v3140
        %v3142 = vrot.slane %v3120, %v3141
        %v3144 = vunpack.c.l.s4 1966171168
        %v3145 = vunpack.c.0.s8 %v3144
        %v3146 = vlaneseq
        %v3147 = vshrl.u32 %v3146, 7
        %v3148 = vsub.s32 %v3145, %v3147
        %v3149 = vrot.slane %v3121, %v3148
        %v3150 = vcombine.high %v3128, %v3128
        %v3151 = vcombine.high %v3135, %v3135
        %v3152 = vcombine.high %v3142, %v3142
        %v3153 = vcombine.high %v3149, %v3149
        %v3154 = vcombine.high %v2923, %v2923
        %v3156 = vunpack.c.l.s4 1966171168
        %v3157 = vunpack.c.0.s8 %v3156
        %v3158 = vlaneseq
        %v3159 = vshrl.u32 %v3158, 7
        %v3160 = vsub.s32 %v3157, %v3159
        %v3161 = vrot.slane %v2923, %v3160
        %v3163 = vunpack.c.l.s4 1966171168
        %v3164 = vunpack.c.0.s8 %v3163
        %v3165 = vlaneseq
        %v3166 = vshrl.u32 %v3165, 7
        %v3167 = vsub.s32 %v3164, %v3166
        %v3168 = vrot.slane %v3154, %v3167
        %v3169 = vcombine.high %v3161, %v3161
        %v3170 = vcombine.high %v3168, %v3168
        %v3172 = vunpack.c.l.s4 1966171168
        %v3173 = vunpack.c.0.s8 %v3172
        %v3174 = vlaneseq
        %v3175 = vshrl.u32 %v3174, 7
        %v3176 = vsub.s32 %v3173, %v3175
        %v3177 = vrot.slane %v3161, %v3176
        %v3179 = vunpack.c.l.s4 1966171168
        %v3180 = vunpack.c.0.s8 %v3179
        %v3181 = vlaneseq
        %v3182 = vshrl.u32 %v3181, 7
        %v3183 = vsub.s32 %v3180, %v3182
        %v3184 = vrot.slane %v3168, %v3183
        %v3186 = vunpack.c.l.s4 1966171168
        %v3187 = vunpack.c.0.s8 %v3186
        %v3188 = vlaneseq
        %v3189 = vshrl.u32 %v3188, 7
        %v3190 = vsub.s32 %v3187, %v3189
        %v3191 = vrot.slane %v3169, %v3190
        %v3193 = vunpack.c.l.s4 1966171168
        %v3194 = vunpack.c.0.s8 %v3193
        %v3195 = vlaneseq
        %v3196 = vshrl.u32 %v3195, 7
        %v3197 = vsub.s32 %v3194, %v3196
        %v3198 = vrot.slane %v3170, %v3197
        %v3199 = vcombine.high %v3177, %v3177
        %v3200 = vcombine.high %v3184, %v3184
        %v3201 = vcombine.high %v3191, %v3191
        %v3202 = vcombine.high %v3198, %v3198
        %3204 = vset.pattern.permute.xlu0 0
        %3205 = vperm.xlu0 %3204, %v2937
        %v3206 = vpop.permute.xlu0 %3205
        %3209 = vset.pattern.permute.xlu0 0
        %3210 = vperm.xlu0 %3209, %v2938
        %v3211 = vpop.permute.xlu0 %3210
        %v3213 = vlaneseq
        %v3214 = vshrl.u32 %v3213, 7
        %v3215 = vsub.s32 0, %v3214
        %v3216 = vrot.slane %v3030, %v3215
        %v3217 = vlaneseq
        %v3218 = vshrl.u32 %v3217, 7
        %v3219 = vsub.s32 0, %v3218
        %v3220 = vrot.slane %v3044, %v3219
        %v3221 = vlaneseq
        %v3222 = vshrl.u32 %v3221, 7
        %v3223 = vsub.s32 0, %v3222
        %v3224 = vrot.slane %v3052, %v3223
        %v3225 = vlaneseq
        %v3226 = vshrl.u32 %v3225, 7
        %v3227 = vsub.s32 0, %v3226
        %v3228 = vrot.slane %v3054, %v3227
        %v3229 = vlaneseq
        %v3230 = vshrl.u32 %v3229, 7
        %v3231 = vsub.s32 0, %v3230
        %v3232 = vrot.slane %v3037, %v3231
        %v3233 = vlaneseq
        %v3234 = vshrl.u32 %v3233, 7
        %v3235 = vsub.s32 0, %v3234
        %v3236 = vrot.slane %v3051, %v3235
        %v3237 = vlaneseq
        %v3238 = vshrl.u32 %v3237, 7
        %v3239 = vsub.s32 0, %v3238
        %v3240 = vrot.slane %v3053, %v3239
        %v3241 = vlaneseq
        %v3242 = vshrl.u32 %v3241, 7
        %v3243 = vsub.s32 0, %v3242
        %v3244 = vrot.slane %v3055, %v3243
        %v3245 = vlaneseq
        %v3246 = vshrl.u32 %v3245, 7
        %v3247 = vsub.s32 0, %v3246
        %v3248 = vrot.slane %v3079, %v3247
        %v3249 = vlaneseq
        %v3250 = vshrl.u32 %v3249, 7
        %v3251 = vsub.s32 0, %v3250
        %v3252 = vrot.slane %v3093, %v3251
        %v3253 = vlaneseq
        %v3254 = vshrl.u32 %v3253, 7
        %v3255 = vsub.s32 0, %v3254
        %v3256 = vrot.slane %v3101, %v3255
        %v3257 = vlaneseq
        %v3258 = vshrl.u32 %v3257, 7
        %v3259 = vsub.s32 0, %v3258
        %v3260 = vrot.slane %v3103, %v3259
        %v3261 = vlaneseq
        %v3262 = vshrl.u32 %v3261, 7
        %v3263 = vsub.s32 0, %v3262
        %v3264 = vrot.slane %v3086, %v3263
        %v3265 = vlaneseq
        %v3266 = vshrl.u32 %v3265, 7
        %v3267 = vsub.s32 0, %v3266
        %v3268 = vrot.slane %v3100, %v3267
        %v3269 = vlaneseq
        %v3270 = vshrl.u32 %v3269, 7
        %v3271 = vsub.s32 0, %v3270
        %v3272 = vrot.slane %v3102, %v3271
        %v3273 = vlaneseq
        %v3274 = vshrl.u32 %v3273, 7
        %v3275 = vsub.s32 0, %v3274
        %v3276 = vrot.slane %v3104, %v3275
        %v3277 = vlaneseq
        %v3278 = vshrl.u32 %v3277, 7
        %v3279 = vsub.s32 0, %v3278
        %v3280 = vrot.slane %v3128, %v3279
        %v3281 = vlaneseq
        %v3282 = vshrl.u32 %v3281, 7
        %v3283 = vsub.s32 0, %v3282
        %v3284 = vrot.slane %v3142, %v3283
        %v3285 = vlaneseq
        %v3286 = vshrl.u32 %v3285, 7
        %v3287 = vsub.s32 0, %v3286
        %v3288 = vrot.slane %v3150, %v3287
        %v3289 = vlaneseq
        %v3290 = vshrl.u32 %v3289, 7
        %v3291 = vsub.s32 0, %v3290
        %v3292 = vrot.slane %v3152, %v3291
        %v3293 = vlaneseq
        %v3294 = vshrl.u32 %v3293, 7
        %v3295 = vsub.s32 0, %v3294
        %v3296 = vrot.slane %v3135, %v3295
        %v3297 = vlaneseq
        %v3298 = vshrl.u32 %v3297, 7
        %v3299 = vsub.s32 0, %v3298
        %v3300 = vrot.slane %v3149, %v3299
        %v3301 = vlaneseq
        %v3302 = vshrl.u32 %v3301, 7
        %v3303 = vsub.s32 0, %v3302
        %v3304 = vrot.slane %v3151, %v3303
        %v3305 = vlaneseq
        %v3306 = vshrl.u32 %v3305, 7
        %v3307 = vsub.s32 0, %v3306
        %v3308 = vrot.slane %v3153, %v3307
        %v3309 = vlaneseq
        %v3310 = vshrl.u32 %v3309, 7
        %v3311 = vsub.s32 0, %v3310
        %v3312 = vrot.slane %v3177, %v3311
        %v3313 = vlaneseq
        %v3314 = vshrl.u32 %v3313, 7
        %v3315 = vsub.s32 0, %v3314
        %v3316 = vrot.slane %v3191, %v3315
        %v3317 = vlaneseq
        %v3318 = vshrl.u32 %v3317, 7
        %v3319 = vsub.s32 0, %v3318
        %v3320 = vrot.slane %v3199, %v3319
        %v3321 = vlaneseq
        %v3322 = vshrl.u32 %v3321, 7
        %v3323 = vsub.s32 0, %v3322
        %v3324 = vrot.slane %v3201, %v3323
        %v3325 = vlaneseq
        %v3326 = vshrl.u32 %v3325, 7
        %v3327 = vsub.s32 0, %v3326
        %v3328 = vrot.slane %v3184, %v3327
        %v3329 = vlaneseq
        %v3330 = vshrl.u32 %v3329, 7
        %v3331 = vsub.s32 0, %v3330
        %v3332 = vrot.slane %v3198, %v3331
        %v3333 = vlaneseq
        %v3334 = vshrl.u32 %v3333, 7
        %v3335 = vsub.s32 0, %v3334
        %v3336 = vrot.slane %v3200, %v3335
        %v3337 = vlaneseq
        %v3338 = vshrl.u32 %v3337, 7
        %v3339 = vsub.s32 0, %v3338
        %v3340 = vrot.slane %v3202, %v3339
        %v3373 = vmul.f32 %v3206, %v3216
        %v3374 = vmul.f32 %v3211, %v3216
        %v3375 = vmul.f32 %v3206, %v3220
        %v3376 = vmul.f32 %v3211, %v3220
        %v3377 = vmul.f32 %v3206, %v3224
        %v3378 = vmul.f32 %v3211, %v3224
        %v3379 = vmul.f32 %v3206, %v3228
        %v3380 = vmul.f32 %v3211, %v3228
        %v3381 = vmul.f32 %v3206, %v3232
        %v3382 = vmul.f32 %v3211, %v3232
        %v3383 = vmul.f32 %v3206, %v3236
        %v3384 = vmul.f32 %v3211, %v3236
        %v3385 = vmul.f32 %v3206, %v3240
        %v3386 = vmul.f32 %v3211, %v3240
        %v3387 = vmul.f32 %v3206, %v3244
        %v3388 = vmul.f32 %v3211, %v3244
        %v3389 = vmul.f32 %v3206, %v3248
        %v3390 = vmul.f32 %v3211, %v3248
        %v3391 = vmul.f32 %v3206, %v3252
        %v3392 = vmul.f32 %v3211, %v3252
        %v3393 = vmul.f32 %v3206, %v3256
        %v3394 = vmul.f32 %v3211, %v3256
        %v3395 = vmul.f32 %v3206, %v3260
        %v3396 = vmul.f32 %v3211, %v3260
        %v3397 = vmul.f32 %v3206, %v3264
        %v3398 = vmul.f32 %v3211, %v3264
        %v3399 = vmul.f32 %v3206, %v3268
        %v3400 = vmul.f32 %v3211, %v3268
        %v3401 = vmul.f32 %v3206, %v3272
        %v3402 = vmul.f32 %v3211, %v3272
        %v3403 = vmul.f32 %v3206, %v3276
        %v3404 = vmul.f32 %v3211, %v3276
        %v3405 = vmul.f32 %v3206, %v3280
        %v3406 = vmul.f32 %v3211, %v3280
        %v3407 = vmul.f32 %v3206, %v3284
        %v3408 = vmul.f32 %v3211, %v3284
        %v3409 = vmul.f32 %v3206, %v3288
        %v3410 = vmul.f32 %v3211, %v3288
        %v3411 = vmul.f32 %v3206, %v3292
        %v3412 = vmul.f32 %v3211, %v3292
        %v3413 = vmul.f32 %v3206, %v3296
        %v3414 = vmul.f32 %v3211, %v3296
        %v3415 = vmul.f32 %v3206, %v3300
        %v3416 = vmul.f32 %v3211, %v3300
        %v3417 = vmul.f32 %v3206, %v3304
        %v3418 = vmul.f32 %v3211, %v3304
        %v3419 = vmul.f32 %v3206, %v3308
        %v3420 = vmul.f32 %v3211, %v3308
        %v3421 = vmul.f32 %v3206, %v3312
        %v3422 = vmul.f32 %v3211, %v3312
        %v3423 = vmul.f32 %v3206, %v3316
        %v3424 = vmul.f32 %v3211, %v3316
        %v3425 = vmul.f32 %v3206, %v3320
        %v3426 = vmul.f32 %v3211, %v3320
        %v3427 = vmul.f32 %v3206, %v3324
        %v3428 = vmul.f32 %v3211, %v3324
        %v3429 = vmul.f32 %v3206, %v3328
        %v3430 = vmul.f32 %v3211, %v3328
        %v3431 = vmul.f32 %v3206, %v3332
        %v3432 = vmul.f32 %v3211, %v3332
        %v3433 = vmul.f32 %v3206, %v3336
        %v3434 = vmul.f32 %v3211, %v3336
        %v3435 = vmul.f32 %v3206, %v3340
        %v3436 = vmul.f32 %v3211, %v3340
        %v3437 = vadd.f32 %v2939, %v3373
        %v3438 = vadd.f32 %v2940, %v3374
        %v3439 = vadd.f32 %v2941, %v3375
        %v3440 = vadd.f32 %v2942, %v3376
        %v3441 = vadd.f32 %v2943, %v3377
        %v3442 = vadd.f32 %v2944, %v3378
        %v3443 = vadd.f32 %v2945, %v3379
        %v3444 = vadd.f32 %v2946, %v3380
        %v3445 = vadd.f32 %v2947, %v3381
        %v3446 = vadd.f32 %v2948, %v3382
        %v3447 = vadd.f32 %v2949, %v3383
        %v3448 = vadd.f32 %v2950, %v3384
        %v3449 = vadd.f32 %v2951, %v3385
        %v3450 = vadd.f32 %v2952, %v3386
        %v3451 = vadd.f32 %v2953, %v3387
        %v3452 = vadd.f32 %v2954, %v3388
        %v3453 = vadd.f32 %v2955, %v3389
        %v3454 = vadd.f32 %v2956, %v3390
        %v3455 = vadd.f32 %v2957, %v3391
        %v3456 = vadd.f32 %v2958, %v3392
        %v3457 = vadd.f32 %v2959, %v3393
        %v3458 = vadd.f32 %v2960, %v3394
        %v3459 = vadd.f32 %v2961, %v3395
        %v3460 = vadd.f32 %v2962, %v3396
        %v3461 = vadd.f32 %v2963, %v3397
        %v3462 = vadd.f32 %v2964, %v3398
        %v3463 = vadd.f32 %v2965, %v3399
        %v3464 = vadd.f32 %v2966, %v3400
        %v3465 = vadd.f32 %v2967, %v3401
        %v3466 = vadd.f32 %v2968, %v3402
        %v3467 = vadd.f32 %v2969, %v3403
        %v3468 = vadd.f32 %v2970, %v3404
        %v3469 = vadd.f32 %v2971, %v3405
        %v3470 = vadd.f32 %v2972, %v3406
        %v3471 = vadd.f32 %v2973, %v3407
        %v3472 = vadd.f32 %v2974, %v3408
        %v3473 = vadd.f32 %v2975, %v3409
        %v3474 = vadd.f32 %v2976, %v3410
        %v3475 = vadd.f32 %v2977, %v3411
        %v3476 = vadd.f32 %v2978, %v3412
        %v3477 = vadd.f32 %v2979, %v3413
        %v3478 = vadd.f32 %v2980, %v3414
        %v3479 = vadd.f32 %v2981, %v3415
        %v3480 = vadd.f32 %v2982, %v3416
        %v3481 = vadd.f32 %v2983, %v3417
        %v3482 = vadd.f32 %v2984, %v3418
        %v3483 = vadd.f32 %v2985, %v3419
        %v3484 = vadd.f32 %v2986, %v3420
        %v3485 = vadd.f32 %v2987, %v3421
        %v3486 = vadd.f32 %v2988, %v3422
        %v3487 = vadd.f32 %v2989, %v3423
        %v3488 = vadd.f32 %v2990, %v3424
        %v3489 = vadd.f32 %v2991, %v3425
        %v3490 = vadd.f32 %v2992, %v3426
        %v3491 = vadd.f32 %v2993, %v3427
        %v3492 = vadd.f32 %v2994, %v3428
        %v3493 = vadd.f32 %v2995, %v3429
        %v3494 = vadd.f32 %v2996, %v3430
        %v3495 = vadd.f32 %v2997, %v3431
        %v3496 = vadd.f32 %v2998, %v3432
        %v3497 = vadd.f32 %v2999, %v3433
        %v3498 = vadd.f32 %v3000, %v3434
        %v3499 = vadd.f32 %v3001, %v3435
        %v3500 = vadd.f32 %v3002, %v3436
        %3501 = vst.msk [vmem:[%s581] sm:$0xff] %vm593, %v3437
        %3502 = vst.msk [vmem:[%s581 + $0x8] sm:$0xff] %vm593, %v3438
        %3503 = vst.msk [vmem:[%s581 + $0x10] sm:$0xff] %vm593, %v3439
        %3504 = vst.msk [vmem:[%s581 + $0x18] sm:$0xff] %vm593, %v3440
        %3505 = vst.msk [vmem:[%s581 + $0x20] sm:$0xff] %vm593, %v3441
        %3506 = vst.msk [vmem:[%s581 + $0x28] sm:$0xff] %vm593, %v3442
        %3507 = vst.msk [vmem:[%s581 + $0x30] sm:$0xff] %vm593, %v3443
        %3508 = vst.msk [vmem:[%s581 + $0x38] sm:$0xff] %vm593, %v3444
        %3509 = vst.msk [vmem:[%s581 + $0x40] sm:$0xff] %vm593, %v3445
        %3510 = vst.msk [vmem:[%s581 + $0x48] sm:$0xff] %vm593, %v3446
        %3511 = vst.msk [vmem:[%s581 + $0x50] sm:$0xff] %vm593, %v3447
        %3512 = vst.msk [vmem:[%s581 + $0x58] sm:$0xff] %vm593, %v3448
        %3513 = vst.msk [vmem:[%s581 + $0x60] sm:$0xff] %vm593, %v3449
        %3514 = vst.msk [vmem:[%s581 + $0x68] sm:$0xff] %vm593, %v3450
        %3515 = vst.msk [vmem:[%s581 + $0x70] sm:$0xff] %vm593, %v3451
        %3516 = vst.msk [vmem:[%s581 + $0x78] sm:$0xff] %vm593, %v3452
        %3517 = vst.msk [vmem:[%s581 + $0x80] sm:$0xff] %vm593, %v3453
        %3518 = vst.msk [vmem:[%s581 + $0x88] sm:$0xff] %vm593, %v3454
        %3519 = vst.msk [vmem:[%s581 + $0x90] sm:$0xff] %vm593, %v3455
        %3520 = vst.msk [vmem:[%s581 + $0x98] sm:$0xff] %vm593, %v3456
        %3521 = vst.msk [vmem:[%s581 + $0xa0] sm:$0xff] %vm593, %v3457
        %3522 = vst.msk [vmem:[%s581 + $0xa8] sm:$0xff] %vm593, %v3458
        %3523 = vst.msk [vmem:[%s581 + $0xb0] sm:$0xff] %vm593, %v3459
        %3524 = vst.msk [vmem:[%s581 + $0xb8] sm:$0xff] %vm593, %v3460
        %3525 = vst.msk [vmem:[%s581 + $0xc0] sm:$0xff] %vm593, %v3461
        %3526 = vst.msk [vmem:[%s581 + $0xc8] sm:$0xff] %vm593, %v3462
        %3527 = vst.msk [vmem:[%s581 + $0xd0] sm:$0xff] %vm593, %v3463
        %3528 = vst.msk [vmem:[%s581 + $0xd8] sm:$0xff] %vm593, %v3464
        %3529 = vst.msk [vmem:[%s581 + $0xe0] sm:$0xff] %vm593, %v3465
        %3530 = vst.msk [vmem:[%s581 + $0xe8] sm:$0xff] %vm593, %v3466
        %3531 = vst.msk [vmem:[%s581 + $0xf0] sm:$0xff] %vm593, %v3467
        %3532 = vst.msk [vmem:[%s581 + $0xf8] sm:$0xff] %vm593, %v3468
        %3533 = vst.msk [vmem:[%s581 + $0x100] sm:$0xff] %vm593, %v3469
        %3534 = vst.msk [vmem:[%s581 + $0x108] sm:$0xff] %vm593, %v3470
        %3535 = vst.msk [vmem:[%s581 + $0x110] sm:$0xff] %vm593, %v3471
        %3536 = vst.msk [vmem:[%s581 + $0x118] sm:$0xff] %vm593, %v3472
        %3537 = vst.msk [vmem:[%s581 + $0x120] sm:$0xff] %vm593, %v3473
        %3538 = vst.msk [vmem:[%s581 + $0x128] sm:$0xff] %vm593, %v3474
        %3539 = vst.msk [vmem:[%s581 + $0x130] sm:$0xff] %vm593, %v3475
        %3540 = vst.msk [vmem:[%s581 + $0x138] sm:$0xff] %vm593, %v3476
        %3541 = vst.msk [vmem:[%s581 + $0x140] sm:$0xff] %vm593, %v3477
        %3542 = vst.msk [vmem:[%s581 + $0x148] sm:$0xff] %vm593, %v3478
        %3543 = vst.msk [vmem:[%s581 + $0x150] sm:$0xff] %vm593, %v3479
        %3544 = vst.msk [vmem:[%s581 + $0x158] sm:$0xff] %vm593, %v3480
        %3545 = vst.msk [vmem:[%s581 + $0x160] sm:$0xff] %vm593, %v3481
        %3546 = vst.msk [vmem:[%s581 + $0x168] sm:$0xff] %vm593, %v3482
        %3547 = vst.msk [vmem:[%s581 + $0x170] sm:$0xff] %vm593, %v3483
        %3548 = vst.msk [vmem:[%s581 + $0x178] sm:$0xff] %vm593, %v3484
        %3549 = vst.msk [vmem:[%s581 + $0x180] sm:$0xff] %vm593, %v3485
        %3550 = vst.msk [vmem:[%s581 + $0x188] sm:$0xff] %vm593, %v3486
        %3551 = vst.msk [vmem:[%s581 + $0x190] sm:$0xff] %vm593, %v3487
        %3552 = vst.msk [vmem:[%s581 + $0x198] sm:$0xff] %vm593, %v3488
        %3553 = vst.msk [vmem:[%s581 + $0x1a0] sm:$0xff] %vm593, %v3489
        %3554 = vst.msk [vmem:[%s581 + $0x1a8] sm:$0xff] %vm593, %v3490
        %3555 = vst.msk [vmem:[%s581 + $0x1b0] sm:$0xff] %vm593, %v3491
        %3556 = vst.msk [vmem:[%s581 + $0x1b8] sm:$0xff] %vm593, %v3492
        %3557 = vst.msk [vmem:[%s581 + $0x1c0] sm:$0xff] %vm593, %v3493
        %3558 = vst.msk [vmem:[%s581 + $0x1c8] sm:$0xff] %vm593, %v3494
        %3559 = vst.msk [vmem:[%s581 + $0x1d0] sm:$0xff] %vm593, %v3495
        %3560 = vst.msk [vmem:[%s581 + $0x1d8] sm:$0xff] %vm593, %v3496
        %3561 = vst.msk [vmem:[%s581 + $0x1e0] sm:$0xff] %vm593, %v3497
        %3562 = vst.msk [vmem:[%s581 + $0x1e8] sm:$0xff] %vm593, %v3498
        %3563 = vst.msk [vmem:[%s581 + $0x1f0] sm:$0xff] %vm593, %v3499
        %3564 = vst.msk [vmem:[%s581 + $0x1f8] sm:$0xff] %vm593, %v3500
        %v3565 = vrot.slane %v952, 4
        %v3566 = vsel %vm1348, %v3565, 0
        %3568 = vmatprep.subr.mxu0 0.0
        %3569 = vmatpush1.msra.mxu0 %v3566
        %3570 = vmatprep.subr.mxu0 0.0
        %3571 = vmatpush1.msra.mxu0 0.0
        %3572 = vmatprep.subr.mxu0 0.0
        %3573 = vmatpush1.msra.mxu0 0.0
        %3574 = vmatprep.subr.mxu0 0.0
        %3575 = vmatpush1.msra.mxu0 0.0
        %3576 = vmatprep.subr.mxu0 0.0
        %3577 = vmatpush1.msra.mxu0 0.0
        %3578 = vmatprep.subr.mxu0 0.0
        %3579 = vmatpush1.msra.mxu0 0.0
        %3580 = vmatprep.subr.mxu0 0.0
        %3581 = vmatpush1.msra.mxu0 0.0
        %3582 = vmatprep.subr.mxu0 0.0
        %3583 = vmatpush1.msra.mxu0 0.0
        %3584 = vmatprep.subr.mxu0 0.0
        %3585 = vmatpush1.msra.mxu0 0.0
        %3586 = vmatprep.subr.mxu0 0.0
        %3587 = vmatpush1.msra.mxu0 0.0
        %3588 = vmatprep.subr.mxu0 0.0
        %3589 = vmatpush1.msra.mxu0 0.0
        %3590 = vmatprep.subr.mxu0 0.0
        %3591 = vmatpush1.msra.mxu0 0.0
        %3592 = vmatprep.subr.mxu0 0.0
        %3593 = vmatpush1.msra.mxu0 0.0
        %3594 = vmatprep.subr.mxu0 0.0
        %3595 = vmatpush1.msra.mxu0 0.0
        %3596 = vmatprep.subr.mxu0 0.0
        %3597 = vmatpush1.msra.mxu0 0.0
        %3598 = vmatprep.subr.mxu0 0.0
        %3599 = vmatpush1.msra.mxu0 0.0
        %3600 = vmatprep.subr.mxu0 0.0
        %3601 = vmatpush1.msra.mxu0 0.0
        %3602 = vmatprep.subr.mxu0 0.0
        %3603 = vmatpush1.msra.mxu0 0.0
        %3604 = vmatprep.subr.mxu0 0.0
        %3605 = vmatpush1.msra.mxu0 0.0
        %3606 = vmatprep.subr.mxu0 0.0
        %3607 = vmatpush1.msra.mxu0 0.0
        %3608 = vmatprep.subr.mxu0 0.0
        %3609 = vmatpush1.msra.mxu0 0.0
        %3610 = vmatprep.subr.mxu0 0.0
        %3611 = vmatpush1.msra.mxu0 0.0
        %3612 = vmatprep.subr.mxu0 0.0
        %3613 = vmatpush1.msra.mxu0 0.0
        %3614 = vmatprep.subr.mxu0 0.0
        %3615 = vmatpush1.msra.mxu0 0.0
        %3616 = vmatprep.subr.mxu0 0.0
        %3617 = vmatpush1.msra.mxu0 0.0
        %3618 = vmatprep.subr.mxu0 0.0
        %3619 = vmatpush1.msra.mxu0 0.0
        %3620 = vmatprep.subr.mxu0 0.0
        %3621 = vmatpush1.msra.mxu0 0.0
        %3622 = vmatprep.subr.mxu0 0.0
        %3623 = vmatpush1.msra.mxu0 0.0
        %3624 = vmatprep.subr.mxu0 0.0
        %3625 = vmatpush1.msra.mxu0 0.0
        %3626 = vmatprep.subr.mxu0 0.0
        %3627 = vmatpush1.msra.mxu0 0.0
        %3628 = vmatprep.subr.mxu0 0.0
        %3629 = vmatpush1.msra.mxu0 0.0
        %3630 = vmatprep.subr.mxu0 0.0
        %3631 = vmatpush1.msra.mxu0 0.0
        %3632 = vmatprep.mubr.f32.mxu0 0.0
        %3633 = vmatmul.mubr.f32.gmra.mrb[0].mxu0 %v1343
        %v3634 = vpop.f32.mrb[0].mxu0
        %v3635 = vadd.f32 0.0, %v3634
        %v3636 = vpop.f32.mrb[0].mxu0
        %3637 = vmatprep.mubr.f32.mxu0 0.0
        %3638 = vmatmul.mubr.f32.gmra.mrb[0].mxu0 %v1346
        %v3639 = vpop.f32.mrb[0].mxu0
        %v3640 = vadd.f32 0.0, %v3639
        %v3641 = vpop.f32.mrb[0].mxu0
        %3642 = vdwg.mxu0
        %3643 = vxpose.xlu0.b32.start [1/16] %v3635, 128
        %3644 = vxpose.xlu0.b32.cont [2/16] %v3640, 128
        %3645 = vxpose.xlu0.b32.cont [3/16] 0.0, 128
        %3646 = vxpose.xlu0.b32.cont [4/16] 0.0, 128
        %3647 = vxpose.xlu0.b32.cont [5/16] 0.0, 128
        %3648 = vxpose.xlu0.b32.cont [6/16] 0.0, 128
        %3649 = vxpose.xlu0.b32.cont [7/16] 0.0, 128
        %3650 = vxpose.xlu0.b32.cont [8/16] 0.0, 128
        %3651 = vxpose.xlu0.b32.cont [9/16] 0.0, 128
        %3652 = vxpose.xlu0.b32.cont [10/16] 0.0, 128
        %3653 = vxpose.xlu0.b32.cont [11/16] 0.0, 128
        %3654 = vxpose.xlu0.b32.cont [12/16] 0.0, 128
        %3655 = vxpose.xlu0.b32.cont [13/16] 0.0, 128
        %3656 = vxpose.xlu0.b32.cont [14/16] 0.0, 128
        %3657 = vxpose.xlu0.b32.cont [15/16] 0.0, 128
        %3658 = vxpose.xlu0.b32.end [16/16] 0.0, 128
        %v3659 = vpop.trf.xlu0
        %v3660 = vpop.trf.xlu0
        %v3661 = vpop.trf.xlu0
        %v3662 = vpop.trf.xlu0
        %v3663 = vpop.trf.xlu0
        %v3664 = vpop.trf.xlu0
        %v3665 = vpop.trf.xlu0
        %v3666 = vpop.trf.xlu0
        %v3667 = vpop.trf.xlu0
        %v3668 = vpop.trf.xlu0
        %v3669 = vpop.trf.xlu0
        %v3670 = vpop.trf.xlu0
        %v3671 = vpop.trf.xlu0
        %v3672 = vpop.trf.xlu0
        %v3673 = vpop.trf.xlu0
        %v3674 = vpop.trf.xlu0
        %s3675 = scalar_lea.vmem [#allocation19], 48
        %v3676 = vld [vmem:[%s3675] sm:$0xff]
        %v3677 = vld [vmem:[%s3675 + $0x8] sm:$0xff]
        %v3678 = vld [vmem:[%s581] sm:$0xff]
        %v3679 = vld [vmem:[%s581 + $0x8] sm:$0xff]
        %v3680 = vld [vmem:[%s581 + $0x10] sm:$0xff]
        %v3681 = vld [vmem:[%s581 + $0x18] sm:$0xff]
        %v3682 = vld [vmem:[%s581 + $0x20] sm:$0xff]
        %v3683 = vld [vmem:[%s581 + $0x28] sm:$0xff]
        %v3684 = vld [vmem:[%s581 + $0x30] sm:$0xff]
        %v3685 = vld [vmem:[%s581 + $0x38] sm:$0xff]
        %v3686 = vld [vmem:[%s581 + $0x40] sm:$0xff]
        %v3687 = vld [vmem:[%s581 + $0x48] sm:$0xff]
        %v3688 = vld [vmem:[%s581 + $0x50] sm:$0xff]
        %v3689 = vld [vmem:[%s581 + $0x58] sm:$0xff]
        %v3690 = vld [vmem:[%s581 + $0x60] sm:$0xff]
        %v3691 = vld [vmem:[%s581 + $0x68] sm:$0xff]
        %v3692 = vld [vmem:[%s581 + $0x70] sm:$0xff]
        %v3693 = vld [vmem:[%s581 + $0x78] sm:$0xff]
        %v3694 = vld [vmem:[%s581 + $0x80] sm:$0xff]
        %v3695 = vld [vmem:[%s581 + $0x88] sm:$0xff]
        %v3696 = vld [vmem:[%s581 + $0x90] sm:$0xff]
        %v3697 = vld [vmem:[%s581 + $0x98] sm:$0xff]
        %v3698 = vld [vmem:[%s581 + $0xa0] sm:$0xff]
        %v3699 = vld [vmem:[%s581 + $0xa8] sm:$0xff]
        %v3700 = vld [vmem:[%s581 + $0xb0] sm:$0xff]
        %v3701 = vld [vmem:[%s581 + $0xb8] sm:$0xff]
        %v3702 = vld [vmem:[%s581 + $0xc0] sm:$0xff]
        %v3703 = vld [vmem:[%s581 + $0xc8] sm:$0xff]
        %v3704 = vld [vmem:[%s581 + $0xd0] sm:$0xff]
        %v3705 = vld [vmem:[%s581 + $0xd8] sm:$0xff]
        %v3706 = vld [vmem:[%s581 + $0xe0] sm:$0xff]
        %v3707 = vld [vmem:[%s581 + $0xe8] sm:$0xff]
        %v3708 = vld [vmem:[%s581 + $0xf0] sm:$0xff]
        %v3709 = vld [vmem:[%s581 + $0xf8] sm:$0xff]
        %v3710 = vld [vmem:[%s581 + $0x100] sm:$0xff]
        %v3711 = vld [vmem:[%s581 + $0x108] sm:$0xff]
        %v3712 = vld [vmem:[%s581 + $0x110] sm:$0xff]
        %v3713 = vld [vmem:[%s581 + $0x118] sm:$0xff]
        %v3714 = vld [vmem:[%s581 + $0x120] sm:$0xff]
        %v3715 = vld [vmem:[%s581 + $0x128] sm:$0xff]
        %v3716 = vld [vmem:[%s581 + $0x130] sm:$0xff]
        %v3717 = vld [vmem:[%s581 + $0x138] sm:$0xff]
        %v3718 = vld [vmem:[%s581 + $0x140] sm:$0xff]
        %v3719 = vld [vmem:[%s581 + $0x148] sm:$0xff]
        %v3720 = vld [vmem:[%s581 + $0x150] sm:$0xff]
        %v3721 = vld [vmem:[%s581 + $0x158] sm:$0xff]
        %v3722 = vld [vmem:[%s581 + $0x160] sm:$0xff]
        %v3723 = vld [vmem:[%s581 + $0x168] sm:$0xff]
        %v3724 = vld [vmem:[%s581 + $0x170] sm:$0xff]
        %v3725 = vld [vmem:[%s581 + $0x178] sm:$0xff]
        %v3726 = vld [vmem:[%s581 + $0x180] sm:$0xff]
        %v3727 = vld [vmem:[%s581 + $0x188] sm:$0xff]
        %v3728 = vld [vmem:[%s581 + $0x190] sm:$0xff]
        %v3729 = vld [vmem:[%s581 + $0x198] sm:$0xff]
        %v3730 = vld [vmem:[%s581 + $0x1a0] sm:$0xff]
        %v3731 = vld [vmem:[%s581 + $0x1a8] sm:$0xff]
        %v3732 = vld [vmem:[%s581 + $0x1b0] sm:$0xff]
        %v3733 = vld [vmem:[%s581 + $0x1b8] sm:$0xff]
        %v3734 = vld [vmem:[%s581 + $0x1c0] sm:$0xff]
        %v3735 = vld [vmem:[%s581 + $0x1c8] sm:$0xff]
        %v3736 = vld [vmem:[%s581 + $0x1d0] sm:$0xff]
        %v3737 = vld [vmem:[%s581 + $0x1d8] sm:$0xff]
        %v3738 = vld [vmem:[%s581 + $0x1e0] sm:$0xff]
        %v3739 = vld [vmem:[%s581 + $0x1e8] sm:$0xff]
        %v3740 = vld [vmem:[%s581 + $0x1f0] sm:$0xff]
        %v3741 = vld [vmem:[%s581 + $0x1f8] sm:$0xff]
        %v3746 = vcombine.high %v3659, %v3659
        %v3748 = vunpack.c.l.s4 1966171168
        %v3749 = vunpack.c.0.s8 %v3748
        %v3750 = vlaneseq
        %v3751 = vshrl.u32 %v3750, 7
        %v3752 = vsub.s32 %v3749, %v3751
        %v3753 = vrot.slane %v3659, %v3752
        %v3755 = vunpack.c.l.s4 1966171168
        %v3756 = vunpack.c.0.s8 %v3755
        %v3757 = vlaneseq
        %v3758 = vshrl.u32 %v3757, 7
        %v3759 = vsub.s32 %v3756, %v3758
        %v3760 = vrot.slane %v3746, %v3759
        %v3761 = vcombine.high %v3753, %v3753
        %v3762 = vcombine.high %v3760, %v3760
        %v3764 = vunpack.c.l.s4 1966171168
        %v3765 = vunpack.c.0.s8 %v3764
        %v3766 = vlaneseq
        %v3767 = vshrl.u32 %v3766, 7
        %v3768 = vsub.s32 %v3765, %v3767
        %v3769 = vrot.slane %v3753, %v3768
        %v3771 = vunpack.c.l.s4 1966171168
        %v3772 = vunpack.c.0.s8 %v3771
        %v3773 = vlaneseq
        %v3774 = vshrl.u32 %v3773, 7
        %v3775 = vsub.s32 %v3772, %v3774
        %v3776 = vrot.slane %v3760, %v3775
        %v3778 = vunpack.c.l.s4 1966171168
        %v3779 = vunpack.c.0.s8 %v3778
        %v3780 = vlaneseq
        %v3781 = vshrl.u32 %v3780, 7
        %v3782 = vsub.s32 %v3779, %v3781
        %v3783 = vrot.slane %v3761, %v3782
        %v3785 = vunpack.c.l.s4 1966171168
        %v3786 = vunpack.c.0.s8 %v3785
        %v3787 = vlaneseq
        %v3788 = vshrl.u32 %v3787, 7
        %v3789 = vsub.s32 %v3786, %v3788
        %v3790 = vrot.slane %v3762, %v3789
        %v3791 = vcombine.high %v3769, %v3769
        %v3792 = vcombine.high %v3776, %v3776
        %v3793 = vcombine.high %v3783, %v3783
        %v3794 = vcombine.high %v3790, %v3790
        %v3795 = vcombine.high %v3660, %v3660
        %v3797 = vunpack.c.l.s4 1966171168
        %v3798 = vunpack.c.0.s8 %v3797
        %v3799 = vlaneseq
        %v3800 = vshrl.u32 %v3799, 7
        %v3801 = vsub.s32 %v3798, %v3800
        %v3802 = vrot.slane %v3660, %v3801
        %v3804 = vunpack.c.l.s4 1966171168
        %v3805 = vunpack.c.0.s8 %v3804
        %v3806 = vlaneseq
        %v3807 = vshrl.u32 %v3806, 7
        %v3808 = vsub.s32 %v3805, %v3807
        %v3809 = vrot.slane %v3795, %v3808
        %v3810 = vcombine.high %v3802, %v3802
        %v3811 = vcombine.high %v3809, %v3809
        %v3813 = vunpack.c.l.s4 1966171168
        %v3814 = vunpack.c.0.s8 %v3813
        %v3815 = vlaneseq
        %v3816 = vshrl.u32 %v3815, 7
        %v3817 = vsub.s32 %v3814, %v3816
        %v3818 = vrot.slane %v3802, %v3817
        %v3820 = vunpack.c.l.s4 1966171168
        %v3821 = vunpack.c.0.s8 %v3820
        %v3822 = vlaneseq
        %v3823 = vshrl.u32 %v3822, 7
        %v3824 = vsub.s32 %v3821, %v3823
        %v3825 = vrot.slane %v3809, %v3824
        %v3827 = vunpack.c.l.s4 1966171168
        %v3828 = vunpack.c.0.s8 %v3827
        %v3829 = vlaneseq
        %v3830 = vshrl.u32 %v3829, 7
        %v3831 = vsub.s32 %v3828, %v3830
        %v3832 = vrot.slane %v3810, %v3831
        %v3834 = vunpack.c.l.s4 1966171168
        %v3835 = vunpack.c.0.s8 %v3834
        %v3836 = vlaneseq
        %v3837 = vshrl.u32 %v3836, 7
        %v3838 = vsub.s32 %v3835, %v3837
        %v3839 = vrot.slane %v3811, %v3838
        %v3840 = vcombine.high %v3818, %v3818
        %v3841 = vcombine.high %v3825, %v3825
        %v3842 = vcombine.high %v3832, %v3832
        %v3843 = vcombine.high %v3839, %v3839
        %v3844 = vcombine.high %v3661, %v3661
        %v3846 = vunpack.c.l.s4 1966171168
        %v3847 = vunpack.c.0.s8 %v3846
        %v3848 = vlaneseq
        %v3849 = vshrl.u32 %v3848, 7
        %v3850 = vsub.s32 %v3847, %v3849
        %v3851 = vrot.slane %v3661, %v3850
        %v3853 = vunpack.c.l.s4 1966171168
        %v3854 = vunpack.c.0.s8 %v3853
        %v3855 = vlaneseq
        %v3856 = vshrl.u32 %v3855, 7
        %v3857 = vsub.s32 %v3854, %v3856
        %v3858 = vrot.slane %v3844, %v3857
        %v3859 = vcombine.high %v3851, %v3851
        %v3860 = vcombine.high %v3858, %v3858
        %v3862 = vunpack.c.l.s4 1966171168
        %v3863 = vunpack.c.0.s8 %v3862
        %v3864 = vlaneseq
        %v3865 = vshrl.u32 %v3864, 7
        %v3866 = vsub.s32 %v3863, %v3865
        %v3867 = vrot.slane %v3851, %v3866
        %v3869 = vunpack.c.l.s4 1966171168
        %v3870 = vunpack.c.0.s8 %v3869
        %v3871 = vlaneseq
        %v3872 = vshrl.u32 %v3871, 7
        %v3873 = vsub.s32 %v3870, %v3872
        %v3874 = vrot.slane %v3858, %v3873
        %v3876 = vunpack.c.l.s4 1966171168
        %v3877 = vunpack.c.0.s8 %v3876
        %v3878 = vlaneseq
        %v3879 = vshrl.u32 %v3878, 7
        %v3880 = vsub.s32 %v3877, %v3879
        %v3881 = vrot.slane %v3859, %v3880
        %v3883 = vunpack.c.l.s4 1966171168
        %v3884 = vunpack.c.0.s8 %v3883
        %v3885 = vlaneseq
        %v3886 = vshrl.u32 %v3885, 7
        %v3887 = vsub.s32 %v3884, %v3886
        %v3888 = vrot.slane %v3860, %v3887
        %v3889 = vcombine.high %v3867, %v3867
        %v3890 = vcombine.high %v3874, %v3874
        %v3891 = vcombine.high %v3881, %v3881
        %v3892 = vcombine.high %v3888, %v3888
        %v3893 = vcombine.high %v3662, %v3662
        %v3895 = vunpack.c.l.s4 1966171168
        %v3896 = vunpack.c.0.s8 %v3895
        %v3897 = vlaneseq
        %v3898 = vshrl.u32 %v3897, 7
        %v3899 = vsub.s32 %v3896, %v3898
        %v3900 = vrot.slane %v3662, %v3899
        %v3902 = vunpack.c.l.s4 1966171168
        %v3903 = vunpack.c.0.s8 %v3902
        %v3904 = vlaneseq
        %v3905 = vshrl.u32 %v3904, 7
        %v3906 = vsub.s32 %v3903, %v3905
        %v3907 = vrot.slane %v3893, %v3906
        %v3908 = vcombine.high %v3900, %v3900
        %v3909 = vcombine.high %v3907, %v3907
        %v3911 = vunpack.c.l.s4 1966171168
        %v3912 = vunpack.c.0.s8 %v3911
        %v3913 = vlaneseq
        %v3914 = vshrl.u32 %v3913, 7
        %v3915 = vsub.s32 %v3912, %v3914
        %v3916 = vrot.slane %v3900, %v3915
        %v3918 = vunpack.c.l.s4 1966171168
        %v3919 = vunpack.c.0.s8 %v3918
        %v3920 = vlaneseq
        %v3921 = vshrl.u32 %v3920, 7
        %v3922 = vsub.s32 %v3919, %v3921
        %v3923 = vrot.slane %v3907, %v3922
        %v3925 = vunpack.c.l.s4 1966171168
        %v3926 = vunpack.c.0.s8 %v3925
        %v3927 = vlaneseq
        %v3928 = vshrl.u32 %v3927, 7
        %v3929 = vsub.s32 %v3926, %v3928
        %v3930 = vrot.slane %v3908, %v3929
        %v3932 = vunpack.c.l.s4 1966171168
        %v3933 = vunpack.c.0.s8 %v3932
        %v3934 = vlaneseq
        %v3935 = vshrl.u32 %v3934, 7
        %v3936 = vsub.s32 %v3933, %v3935
        %v3937 = vrot.slane %v3909, %v3936
        %v3938 = vcombine.high %v3916, %v3916
        %v3939 = vcombine.high %v3923, %v3923
        %v3940 = vcombine.high %v3930, %v3930
        %v3941 = vcombine.high %v3937, %v3937
        %3943 = vset.pattern.permute.xlu0 0
        %3944 = vperm.xlu0 %3943, %v3676
        %v3945 = vpop.permute.xlu0 %3944
        %3948 = vset.pattern.permute.xlu0 0
        %3949 = vperm.xlu0 %3948, %v3677
        %v3950 = vpop.permute.xlu0 %3949
        %v3952 = vlaneseq
        %v3953 = vshrl.u32 %v3952, 7
        %v3954 = vsub.s32 0, %v3953
        %v3955 = vrot.slane %v3769, %v3954
        %v3956 = vlaneseq
        %v3957 = vshrl.u32 %v3956, 7
        %v3958 = vsub.s32 0, %v3957
        %v3959 = vrot.slane %v3783, %v3958
        %v3960 = vlaneseq
        %v3961 = vshrl.u32 %v3960, 7
        %v3962 = vsub.s32 0, %v3961
        %v3963 = vrot.slane %v3791, %v3962
        %v3964 = vlaneseq
        %v3965 = vshrl.u32 %v3964, 7
        %v3966 = vsub.s32 0, %v3965
        %v3967 = vrot.slane %v3793, %v3966
        %v3968 = vlaneseq
        %v3969 = vshrl.u32 %v3968, 7
        %v3970 = vsub.s32 0, %v3969
        %v3971 = vrot.slane %v3776, %v3970
        %v3972 = vlaneseq
        %v3973 = vshrl.u32 %v3972, 7
        %v3974 = vsub.s32 0, %v3973
        %v3975 = vrot.slane %v3790, %v3974
        %v3976 = vlaneseq
        %v3977 = vshrl.u32 %v3976, 7
        %v3978 = vsub.s32 0, %v3977
        %v3979 = vrot.slane %v3792, %v3978
        %v3980 = vlaneseq
        %v3981 = vshrl.u32 %v3980, 7
        %v3982 = vsub.s32 0, %v3981
        %v3983 = vrot.slane %v3794, %v3982
        %v3984 = vlaneseq
        %v3985 = vshrl.u32 %v3984, 7
        %v3986 = vsub.s32 0, %v3985
        %v3987 = vrot.slane %v3818, %v3986
        %v3988 = vlaneseq
        %v3989 = vshrl.u32 %v3988, 7
        %v3990 = vsub.s32 0, %v3989
        %v3991 = vrot.slane %v3832, %v3990
        %v3992 = vlaneseq
        %v3993 = vshrl.u32 %v3992, 7
        %v3994 = vsub.s32 0, %v3993
        %v3995 = vrot.slane %v3840, %v3994
        %v3996 = vlaneseq
        %v3997 = vshrl.u32 %v3996, 7
        %v3998 = vsub.s32 0, %v3997
        %v3999 = vrot.slane %v3842, %v3998
        %v4000 = vlaneseq
        %v4001 = vshrl.u32 %v4000, 7
        %v4002 = vsub.s32 0, %v4001
        %v4003 = vrot.slane %v3825, %v4002
        %v4004 = vlaneseq
        %v4005 = vshrl.u32 %v4004, 7
        %v4006 = vsub.s32 0, %v4005
        %v4007 = vrot.slane %v3839, %v4006
        %v4008 = vlaneseq
        %v4009 = vshrl.u32 %v4008, 7
        %v4010 = vsub.s32 0, %v4009
        %v4011 = vrot.slane %v3841, %v4010
        %v4012 = vlaneseq
        %v4013 = vshrl.u32 %v4012, 7
        %v4014 = vsub.s32 0, %v4013
        %v4015 = vrot.slane %v3843, %v4014
        %v4016 = vlaneseq
        %v4017 = vshrl.u32 %v4016, 7
        %v4018 = vsub.s32 0, %v4017
        %v4019 = vrot.slane %v3867, %v4018
        %v4020 = vlaneseq
        %v4021 = vshrl.u32 %v4020, 7
        %v4022 = vsub.s32 0, %v4021
        %v4023 = vrot.slane %v3881, %v4022
        %v4024 = vlaneseq
        %v4025 = vshrl.u32 %v4024, 7
        %v4026 = vsub.s32 0, %v4025
        %v4027 = vrot.slane %v3889, %v4026
        %v4028 = vlaneseq
        %v4029 = vshrl.u32 %v4028, 7
        %v4030 = vsub.s32 0, %v4029
        %v4031 = vrot.slane %v3891, %v4030
        %v4032 = vlaneseq
        %v4033 = vshrl.u32 %v4032, 7
        %v4034 = vsub.s32 0, %v4033
        %v4035 = vrot.slane %v3874, %v4034
        %v4036 = vlaneseq
        %v4037 = vshrl.u32 %v4036, 7
        %v4038 = vsub.s32 0, %v4037
        %v4039 = vrot.slane %v3888, %v4038
        %v4040 = vlaneseq
        %v4041 = vshrl.u32 %v4040, 7
        %v4042 = vsub.s32 0, %v4041
        %v4043 = vrot.slane %v3890, %v4042
        %v4044 = vlaneseq
        %v4045 = vshrl.u32 %v4044, 7
        %v4046 = vsub.s32 0, %v4045
        %v4047 = vrot.slane %v3892, %v4046
        %v4048 = vlaneseq
        %v4049 = vshrl.u32 %v4048, 7
        %v4050 = vsub.s32 0, %v4049
        %v4051 = vrot.slane %v3916, %v4050
        %v4052 = vlaneseq
        %v4053 = vshrl.u32 %v4052, 7
        %v4054 = vsub.s32 0, %v4053
        %v4055 = vrot.slane %v3930, %v4054
        %v4056 = vlaneseq
        %v4057 = vshrl.u32 %v4056, 7
        %v4058 = vsub.s32 0, %v4057
        %v4059 = vrot.slane %v3938, %v4058
        %v4060 = vlaneseq
        %v4061 = vshrl.u32 %v4060, 7
        %v4062 = vsub.s32 0, %v4061
        %v4063 = vrot.slane %v3940, %v4062
        %v4064 = vlaneseq
        %v4065 = vshrl.u32 %v4064, 7
        %v4066 = vsub.s32 0, %v4065
        %v4067 = vrot.slane %v3923, %v4066
        %v4068 = vlaneseq
        %v4069 = vshrl.u32 %v4068, 7
        %v4070 = vsub.s32 0, %v4069
        %v4071 = vrot.slane %v3937, %v4070
        %v4072 = vlaneseq
        %v4073 = vshrl.u32 %v4072, 7
        %v4074 = vsub.s32 0, %v4073
        %v4075 = vrot.slane %v3939, %v4074
        %v4076 = vlaneseq
        %v4077 = vshrl.u32 %v4076, 7
        %v4078 = vsub.s32 0, %v4077
        %v4079 = vrot.slane %v3941, %v4078
        %v4112 = vmul.f32 %v3945, %v3955
        %v4113 = vmul.f32 %v3950, %v3955
        %v4114 = vmul.f32 %v3945, %v3959
        %v4115 = vmul.f32 %v3950, %v3959
        %v4116 = vmul.f32 %v3945, %v3963
        %v4117 = vmul.f32 %v3950, %v3963
        %v4118 = vmul.f32 %v3945, %v3967
        %v4119 = vmul.f32 %v3950, %v3967
        %v4120 = vmul.f32 %v3945, %v3971
        %v4121 = vmul.f32 %v3950, %v3971
        %v4122 = vmul.f32 %v3945, %v3975
        %v4123 = vmul.f32 %v3950, %v3975
        %v4124 = vmul.f32 %v3945, %v3979
        %v4125 = vmul.f32 %v3950, %v3979
        %v4126 = vmul.f32 %v3945, %v3983
        %v4127 = vmul.f32 %v3950, %v3983
        %v4128 = vmul.f32 %v3945, %v3987
        %v4129 = vmul.f32 %v3950, %v3987
        %v4130 = vmul.f32 %v3945, %v3991
        %v4131 = vmul.f32 %v3950, %v3991
        %v4132 = vmul.f32 %v3945, %v3995
        %v4133 = vmul.f32 %v3950, %v3995
        %v4134 = vmul.f32 %v3945, %v3999
        %v4135 = vmul.f32 %v3950, %v3999
        %v4136 = vmul.f32 %v3945, %v4003
        %v4137 = vmul.f32 %v3950, %v4003
        %v4138 = vmul.f32 %v3945, %v4007
        %v4139 = vmul.f32 %v3950, %v4007
        %v4140 = vmul.f32 %v3945, %v4011
        %v4141 = vmul.f32 %v3950, %v4011
        %v4142 = vmul.f32 %v3945, %v4015
        %v4143 = vmul.f32 %v3950, %v4015
        %v4144 = vmul.f32 %v3945, %v4019
        %v4145 = vmul.f32 %v3950, %v4019
        %v4146 = vmul.f32 %v3945, %v4023
        %v4147 = vmul.f32 %v3950, %v4023
        %v4148 = vmul.f32 %v3945, %v4027
        %v4149 = vmul.f32 %v3950, %v4027
        %v4150 = vmul.f32 %v3945, %v4031
        %v4151 = vmul.f32 %v3950, %v4031
        %v4152 = vmul.f32 %v3945, %v4035
        %v4153 = vmul.f32 %v3950, %v4035
        %v4154 = vmul.f32 %v3945, %v4039
        %v4155 = vmul.f32 %v3950, %v4039
        %v4156 = vmul.f32 %v3945, %v4043
        %v4157 = vmul.f32 %v3950, %v4043
        %v4158 = vmul.f32 %v3945, %v4047
        %v4159 = vmul.f32 %v3950, %v4047
        %v4160 = vmul.f32 %v3945, %v4051
        %v4161 = vmul.f32 %v3950, %v4051
        %v4162 = vmul.f32 %v3945, %v4055
        %v4163 = vmul.f32 %v3950, %v4055
        %v4164 = vmul.f32 %v3945, %v4059
        %v4165 = vmul.f32 %v3950, %v4059
        %v4166 = vmul.f32 %v3945, %v4063
        %v4167 = vmul.f32 %v3950, %v4063
        %v4168 = vmul.f32 %v3945, %v4067
        %v4169 = vmul.f32 %v3950, %v4067
        %v4170 = vmul.f32 %v3945, %v4071
        %v4171 = vmul.f32 %v3950, %v4071
        %v4172 = vmul.f32 %v3945, %v4075
        %v4173 = vmul.f32 %v3950, %v4075
        %v4174 = vmul.f32 %v3945, %v4079
        %v4175 = vmul.f32 %v3950, %v4079
        %v4176 = vadd.f32 %v3678, %v4112
        %v4177 = vadd.f32 %v3679, %v4113
        %v4178 = vadd.f32 %v3680, %v4114
        %v4179 = vadd.f32 %v3681, %v4115
        %v4180 = vadd.f32 %v3682, %v4116
        %v4181 = vadd.f32 %v3683, %v4117
        %v4182 = vadd.f32 %v3684, %v4118
        %v4183 = vadd.f32 %v3685, %v4119
        %v4184 = vadd.f32 %v3686, %v4120
        %v4185 = vadd.f32 %v3687, %v4121
        %v4186 = vadd.f32 %v3688, %v4122
        %v4187 = vadd.f32 %v3689, %v4123
        %v4188 = vadd.f32 %v3690, %v4124
        %v4189 = vadd.f32 %v3691, %v4125
        %v4190 = vadd.f32 %v3692, %v4126
        %v4191 = vadd.f32 %v3693, %v4127
        %v4192 = vadd.f32 %v3694, %v4128
        %v4193 = vadd.f32 %v3695, %v4129
        %v4194 = vadd.f32 %v3696, %v4130
        %v4195 = vadd.f32 %v3697, %v4131
        %v4196 = vadd.f32 %v3698, %v4132
        %v4197 = vadd.f32 %v3699, %v4133
        %v4198 = vadd.f32 %v3700, %v4134
        %v4199 = vadd.f32 %v3701, %v4135
        %v4200 = vadd.f32 %v3702, %v4136
        %v4201 = vadd.f32 %v3703, %v4137
        %v4202 = vadd.f32 %v3704, %v4138
        %v4203 = vadd.f32 %v3705, %v4139
        %v4204 = vadd.f32 %v3706, %v4140
        %v4205 = vadd.f32 %v3707, %v4141
        %v4206 = vadd.f32 %v3708, %v4142
        %v4207 = vadd.f32 %v3709, %v4143
        %v4208 = vadd.f32 %v3710, %v4144
        %v4209 = vadd.f32 %v3711, %v4145
        %v4210 = vadd.f32 %v3712, %v4146
        %v4211 = vadd.f32 %v3713, %v4147
        %v4212 = vadd.f32 %v3714, %v4148
        %v4213 = vadd.f32 %v3715, %v4149
        %v4214 = vadd.f32 %v3716, %v4150
        %v4215 = vadd.f32 %v3717, %v4151
        %v4216 = vadd.f32 %v3718, %v4152
        %v4217 = vadd.f32 %v3719, %v4153
        %v4218 = vadd.f32 %v3720, %v4154
        %v4219 = vadd.f32 %v3721, %v4155
        %v4220 = vadd.f32 %v3722, %v4156
        %v4221 = vadd.f32 %v3723, %v4157
        %v4222 = vadd.f32 %v3724, %v4158
        %v4223 = vadd.f32 %v3725, %v4159
        %v4224 = vadd.f32 %v3726, %v4160
        %v4225 = vadd.f32 %v3727, %v4161
        %v4226 = vadd.f32 %v3728, %v4162
        %v4227 = vadd.f32 %v3729, %v4163
        %v4228 = vadd.f32 %v3730, %v4164
        %v4229 = vadd.f32 %v3731, %v4165
        %v4230 = vadd.f32 %v3732, %v4166
        %v4231 = vadd.f32 %v3733, %v4167
        %v4232 = vadd.f32 %v3734, %v4168
        %v4233 = vadd.f32 %v3735, %v4169
        %v4234 = vadd.f32 %v3736, %v4170
        %v4235 = vadd.f32 %v3737, %v4171
        %v4236 = vadd.f32 %v3738, %v4172
        %v4237 = vadd.f32 %v3739, %v4173
        %v4238 = vadd.f32 %v3740, %v4174
        %v4239 = vadd.f32 %v3741, %v4175
        %4240 = vst.msk [vmem:[%s581] sm:$0xff] %vm593, %v4176
        %4241 = vst.msk [vmem:[%s581 + $0x8] sm:$0xff] %vm593, %v4177
        %4242 = vst.msk [vmem:[%s581 + $0x10] sm:$0xff] %vm593, %v4178
        %4243 = vst.msk [vmem:[%s581 + $0x18] sm:$0xff] %vm593, %v4179
        %4244 = vst.msk [vmem:[%s581 + $0x20] sm:$0xff] %vm593, %v4180
        %4245 = vst.msk [vmem:[%s581 + $0x28] sm:$0xff] %vm593, %v4181
        %4246 = vst.msk [vmem:[%s581 + $0x30] sm:$0xff] %vm593, %v4182
        %4247 = vst.msk [vmem:[%s581 + $0x38] sm:$0xff] %vm593, %v4183
        %4248 = vst.msk [vmem:[%s581 + $0x40] sm:$0xff] %vm593, %v4184
        %4249 = vst.msk [vmem:[%s581 + $0x48] sm:$0xff] %vm593, %v4185
        %4250 = vst.msk [vmem:[%s581 + $0x50] sm:$0xff] %vm593, %v4186
        %4251 = vst.msk [vmem:[%s581 + $0x58] sm:$0xff] %vm593, %v4187
        %4252 = vst.msk [vmem:[%s581 + $0x60] sm:$0xff] %vm593, %v4188
        %4253 = vst.msk [vmem:[%s581 + $0x68] sm:$0xff] %vm593, %v4189
        %4254 = vst.msk [vmem:[%s581 + $0x70] sm:$0xff] %vm593, %v4190
        %4255 = vst.msk [vmem:[%s581 + $0x78] sm:$0xff] %vm593, %v4191
        %4256 = vst.msk [vmem:[%s581 + $0x80] sm:$0xff] %vm593, %v4192
        %4257 = vst.msk [vmem:[%s581 + $0x88] sm:$0xff] %vm593, %v4193
        %4258 = vst.msk [vmem:[%s581 + $0x90] sm:$0xff] %vm593, %v4194
        %4259 = vst.msk [vmem:[%s581 + $0x98] sm:$0xff] %vm593, %v4195
        %4260 = vst.msk [vmem:[%s581 + $0xa0] sm:$0xff] %vm593, %v4196
        %4261 = vst.msk [vmem:[%s581 + $0xa8] sm:$0xff] %vm593, %v4197
        %4262 = vst.msk [vmem:[%s581 + $0xb0] sm:$0xff] %vm593, %v4198
        %4263 = vst.msk [vmem:[%s581 + $0xb8] sm:$0xff] %vm593, %v4199
        %4264 = vst.msk [vmem:[%s581 + $0xc0] sm:$0xff] %vm593, %v4200
        %4265 = vst.msk [vmem:[%s581 + $0xc8] sm:$0xff] %vm593, %v4201
        %4266 = vst.msk [vmem:[%s581 + $0xd0] sm:$0xff] %vm593, %v4202
        %4267 = vst.msk [vmem:[%s581 + $0xd8] sm:$0xff] %vm593, %v4203
        %4268 = vst.msk [vmem:[%s581 + $0xe0] sm:$0xff] %vm593, %v4204
        %4269 = vst.msk [vmem:[%s581 + $0xe8] sm:$0xff] %vm593, %v4205
        %4270 = vst.msk [vmem:[%s581 + $0xf0] sm:$0xff] %vm593, %v4206
        %4271 = vst.msk [vmem:[%s581 + $0xf8] sm:$0xff] %vm593, %v4207
        %4272 = vst.msk [vmem:[%s581 + $0x100] sm:$0xff] %vm593, %v4208
        %4273 = vst.msk [vmem:[%s581 + $0x108] sm:$0xff] %vm593, %v4209
        %4274 = vst.msk [vmem:[%s581 + $0x110] sm:$0xff] %vm593, %v4210
        %4275 = vst.msk [vmem:[%s581 + $0x118] sm:$0xff] %vm593, %v4211
        %4276 = vst.msk [vmem:[%s581 + $0x120] sm:$0xff] %vm593, %v4212
        %4277 = vst.msk [vmem:[%s581 + $0x128] sm:$0xff] %vm593, %v4213
        %4278 = vst.msk [vmem:[%s581 + $0x130] sm:$0xff] %vm593, %v4214
        %4279 = vst.msk [vmem:[%s581 + $0x138] sm:$0xff] %vm593, %v4215
        %4280 = vst.msk [vmem:[%s581 + $0x140] sm:$0xff] %vm593, %v4216
        %4281 = vst.msk [vmem:[%s581 + $0x148] sm:$0xff] %vm593, %v4217
        %4282 = vst.msk [vmem:[%s581 + $0x150] sm:$0xff] %vm593, %v4218
        %4283 = vst.msk [vmem:[%s581 + $0x158] sm:$0xff] %vm593, %v4219
        %4284 = vst.msk [vmem:[%s581 + $0x160] sm:$0xff] %vm593, %v4220
        %4285 = vst.msk [vmem:[%s581 + $0x168] sm:$0xff] %vm593, %v4221
        %4286 = vst.msk [vmem:[%s581 + $0x170] sm:$0xff] %vm593, %v4222
        %4287 = vst.msk [vmem:[%s581 + $0x178] sm:$0xff] %vm593, %v4223
        %4288 = vst.msk [vmem:[%s581 + $0x180] sm:$0xff] %vm593, %v4224
        %4289 = vst.msk [vmem:[%s581 + $0x188] sm:$0xff] %vm593, %v4225
        %4290 = vst.msk [vmem:[%s581 + $0x190] sm:$0xff] %vm593, %v4226
        %4291 = vst.msk [vmem:[%s581 + $0x198] sm:$0xff] %vm593, %v4227
        %4292 = vst.msk [vmem:[%s581 + $0x1a0] sm:$0xff] %vm593, %v4228
        %4293 = vst.msk [vmem:[%s581 + $0x1a8] sm:$0xff] %vm593, %v4229
        %4294 = vst.msk [vmem:[%s581 + $0x1b0] sm:$0xff] %vm593, %v4230
        %4295 = vst.msk [vmem:[%s581 + $0x1b8] sm:$0xff] %vm593, %v4231
        %4296 = vst.msk [vmem:[%s581 + $0x1c0] sm:$0xff] %vm593, %v4232
        %4297 = vst.msk [vmem:[%s581 + $0x1c8] sm:$0xff] %vm593, %v4233
        %4298 = vst.msk [vmem:[%s581 + $0x1d0] sm:$0xff] %vm593, %v4234
        %4299 = vst.msk [vmem:[%s581 + $0x1d8] sm:$0xff] %vm593, %v4235
        %4300 = vst.msk [vmem:[%s581 + $0x1e0] sm:$0xff] %vm593, %v4236
        %4301 = vst.msk [vmem:[%s581 + $0x1e8] sm:$0xff] %vm593, %v4237
        %4302 = vst.msk [vmem:[%s581 + $0x1f0] sm:$0xff] %vm593, %v4238
        %4303 = vst.msk [vmem:[%s581 + $0x1f8] sm:$0xff] %vm593, %v4239
        %s4304 = sand.u32 %s300, 1
        %s4305 = scalar_lea.sflag [#allocation4], %s4304
        %s4306 = sand.u32 %s300, 1
        %s4307 = smul.addr %s4306, 512
        %s4308 = scalar_lea.vmem [#allocation22], %s4307
        // Predicated region
        $region117: #{tpu_custom_call.1} parent=67 // pred_check
          %p4309 = pneg %p310
        $region118: #{tpu_custom_call.1} parent=67 // pred_check_branch
          %4311 = sbr.rel (%p4309) target = $region120
        $region119: #{tpu_custom_call.1} parent=67 // pred_region
          %s4313 = ssub.s32 8192, 8192
          %4314 = vsyncadd %s4305, %s4313
          %s4315 = smul.addr %s35, 64
          %s4316 = smul.addr %s4315, 128
          %s4317 = scalar_lea.hbm %s12, %s4316
          %s4318 = sshll.u32 %s4308, 4
          %s4319 = int_to_ptr.vmem [resolvable:$true] %s4318
          %4324 = dma.vmem_to_hbm [thread:$0]  %s4319, 8192, %s4317, %s4305, 128, 128, 8
        $region120: #{tpu_custom_call.1} parent=67 // pred_fallthru
          _
      $region68: #{tpu_custom_call.1} parent=5 // pred_fallthru
        _
      %p4325 = scmp.le.s32.totalorder 2, %s30
      // Predicated region
      $region121: #{tpu_custom_call.1} parent=5 // pred_check
        %p4326 = pneg %p4325
      $region122: #{tpu_custom_call.1} parent=5 // pred_check_branch
        %4328 = sbr.rel (%p4326) target = $region124
      $region123: #{tpu_custom_call.1} parent=5 // pred_region
        %s4329 = ssub.s32 %s30, 2
        // Predicated region
        $region125: #{tpu_custom_call.1} parent=123 // pred_check
          %p4330 = pneg %p316
        $region126: #{tpu_custom_call.1} parent=123 // pred_check_branch
          %4332 = sbr.rel (%p4330) target = $region128
        $region127: #{tpu_custom_call.1} parent=123 // pred_region
          %s4333 = sand.u32 %s301, 1
          %s4334 = scalar_lea.sflag [#allocation4], %s4333
          %s4335 = sand.u32 %s301, 1
          %s4336 = smul.addr %s4335, 512
          %s4337 = scalar_lea.vmem [#allocation22], %s4336
          %4338 = dma.done %s4334, 8192
        $region128: #{tpu_custom_call.1} parent=123 // pred_fallthru
          _
      $region124: #{tpu_custom_call.1} parent=5 // pred_fallthru
        _
    $region6: #{tpu_custom_call.1} parent=1 // loop_footer
      %s34 = sadd.s32 1, %s30
    $region7: #{tpu_custom_call.1} parent=1 // loop_footer_branch
      %29 = sbr.rel target = $region3
    $region8: #{tpu_custom_call.1} parent=1 // loop_exit
      _
    %4339 = vsyncpa [#allocation3], 1
    %s4340 = scalar_lea.sflag [#allocation3], 1
    %4341 = vsyncpa %s4340, 1
    %4342 = vsyncpa [#allocation6], 1
    %4343 = vsyncpa [#allocation9], 1
    %4344 = vsyncpa [#allocation12], 1
    %4345 = vsyncpa [#allocation15], 1
    %4346 = vsyncpa [#allocation18], 1
    %4347 = vsyncpa [#allocation21], 1
    %4348 = vsyncpa [#allocation4], 1
    %s4349 = scalar_lea.sflag [#allocation4], 1
    %4350 = vsyncpa %s4349, 1

</llo_original>
